<compile_context>
chip_gen: v7x
topology: tpu7x:2x2x1
jax: 0.10.0
libtpu: 0.0.40
codegen_flags: <defaults>
</compile_context>

<pallas_src>
import numpy as np
import jax
import jax.numpy as jnp
from jax.experimental import pallas as pl
from jax.experimental.pallas import tpu as pltpu


def _decoder_kernel(x3_ref, xf_ref, y_ref,
                    attn_ref, w2blk_ref, lstm_ref, fin_ref,
                    out_ref):
    X3 = x3_ref[...]                     # (Bt, Tm1, E)  used for the context weighted sum
    Xf = xf_ref[...]                     # (Bt, Tm1*E)   lane-dense view for the tanh path
    Bt, Tm1, E = X3.shape
    TE = Tm1 * E
    D = lstm_ref.shape[1] // 4           # 4D gate width -> decoder hidden

    # ---- parameter slabs (static row slices, no per-tensor DMAs) ------------
    w1x_blk = attn_ref[0:TE, :]                          # (TE, TE) block-diag of W1_x.T
    b1t     = attn_ref[TE:TE + 1, :]                     # (1, TE)  b1 tiled over Tm1 groups
    w1dt    = attn_ref[TE + 1:TE + 1 + D, :]             # (D, TE)  W1_d.T lane-tiled
    w1ct    = attn_ref[TE + 1 + D:TE + 1 + 2 * D, :]     # (D, TE)  W1_c.T lane-tiled
    w2blk   = w2blk_ref[...]                             # (TE, Tm1) block-diag of W2.T

    whht  = lstm_ref[0:D, :]                             # (D, 4D)  W_hh.T (g cols x2)
    wctxg = lstm_ref[D:D + E, :]                         # (E, 4D)  wfc_ctx outer wih (g cols x2)
    wyg   = lstm_ref[D + E:D + E + 1, :]                 # (1, 4D)  wfc_y * wih (g cols x2)
    blstm = lstm_ref[D + E + 1:D + E + 2, :]             # (1, 4D)  b_ih+b_hh+bfc*wih (g cols x2)

    wffd = fin_ref[0:D, :]                               # (D, d_out)
    wffc = fin_ref[D:D + E, :]                           # (E, d_out)
    bff  = fin_ref[D + E:D + E + 1, :]                   # (1, d_out)

    # ---- loop-invariant work, hoisted off the recurrence ---------------------
    # Lane-dense X projection + b1, one (Bt, TE) x (TE, TE) block-diag MXU issue.
    x_projb = jnp.dot(Xf, w1x_blk, preferred_element_type=jnp.float32) + b1t   # (Bt, TE)

    def body(t, carry):
        d_n, c_n, _ = carry

        # attention: tanh over a fully lane-dense (Bt, Tm1*E) slab.
        dc = (jnp.dot(d_n, w1dt, preferred_element_type=jnp.float32)
              + jnp.dot(c_n, w1ct, preferred_element_type=jnp.float32))        # (Bt, TE), tiled
        h = jnp.tanh(x_projb + dc)                                              # 2 dense vregs
        logits = jnp.dot(h, w2blk, preferred_element_type=jnp.float32)          # (Bt, Tm1), MXU

        # softmax over the time axis (b2 dropped: softmax is shift-invariant)
        logits = logits - jnp.max(logits, axis=1, keepdims=True)
        ex = jnp.exp(logits)
        beta = ex / jnp.sum(ex, axis=1, keepdims=True)                          # (Bt, Tm1)
        context = jnp.sum(beta[:, :, None] * X3, axis=1)                        # (Bt, E)

        # LSTM step with fc/bfc folded into the gate weights; single sigmoid pass,
        # g-gate tanh folded as 2*sigmoid(2x)-1 (weights pre-scaled on host).
        y_t = y_ref[t]                                                          # (Bt, 1)
        gates = (jnp.dot(context, wctxg, preferred_element_type=jnp.float32)
                 + jnp.dot(d_n, whht, preferred_element_type=jnp.float32)
                 + y_t * wyg + blstm)                                           # (Bt, 4D)
        sig = jax.nn.sigmoid(gates)
        i_g = sig[:, 0:D]
        f_g = sig[:, D:2 * D]
        o_g = sig[:, 3 * D:4 * D]
        g_g = 2.0 * sig[:, 2 * D:3 * D] - 1.0
        c_new = f_g * c_n + i_g * g_g
        d_new = o_g * jnp.tanh(c_new)
        return (d_new, c_new, context)

    init = (jnp.zeros((Bt, D), jnp.float32),
            jnp.zeros((Bt, D), jnp.float32),
            jnp.zeros((Bt, E), jnp.float32))
    # Short static trip count -> fully unroll so the LLO scheduler sees it all.
    d_n, c_n, context = jax.lax.fori_loop(0, Tm1, body, init, unroll=True)

    # y_pred = fc_final(cat(d_n, context)) without the lane concat.
    y_pred = (jnp.dot(d_n, wffd, preferred_element_type=jnp.float32)
              + jnp.dot(context, wffc, preferred_element_type=jnp.float32) + bff)
    out_ref[...] = y_pred.astype(out_ref.dtype)


def decoder_forward(X, y_prev, p, *, block_b=None):
    """Host wrapper: packs/pre-folds torch-shaped params into slabs, launches kernel."""
    B, Tm1, E = X.shape
    D = p["W_hh"].shape[1]
    d_out = p["Wff"].shape[0]
    TE = Tm1 * E
    f32 = jnp.float32

    if block_b is None:
        if B <= 8:
            block_b = B
        else:
            # Big blocks amortize the serial chain's fixed latencies; keeping
            # >= 2 blocks lets the "parallel" axis use v7x's second TensorCore.
            cands = [d for d in range(8, min(B, 128) + 1, 8)
                     if B % d == 0 and B // d >= 2]
            block_b = max(cands) if cands else B
    assert B % block_b == 0, "batch must be a multiple of the batch block"
    n_blocks = B // block_b

    # ---- attention slab (width Tm1*E) ---------------------------------------
    W1 = p["W1"].astype(f32)                                    # (E, 2D+E)
    eyeT = jnp.eye(Tm1, dtype=f32)
    w1x_blk = jnp.kron(eyeT, W1[:, 2 * D:].T)                   # (TE, TE)
    b1t = jnp.tile(p["b1"].astype(f32), Tm1)[None, :]           # (1, TE)
    w1dt = jnp.tile(W1[:, :D].T, (1, Tm1))                      # (D, TE)
    w1ct = jnp.tile(W1[:, D:2 * D].T, (1, Tm1))                 # (D, TE)
    attn_slab = jnp.concatenate([w1x_blk, b1t, w1dt, w1ct], axis=0)   # (TE+1+2D, TE)

    w2blk = jnp.kron(eyeT, p["W2"].astype(f32).T)               # (TE, Tm1)

    # ---- LSTM slab (width 4D); fold fc/bfc/wfc_y, pre-scale g-gate cols by 2 -
    wih = p["W_ih"].astype(f32)[:, 0]                           # (4D,)
    wfc_ctx = p["Wfc"].astype(f32)[0, :E]                       # (E,)
    wfc_y = p["Wfc"].astype(f32)[0, E]                          # scalar
    bfc = p["bfc"].astype(f32)[0]                               # scalar
    gscale = jnp.concatenate([jnp.ones((2 * D,), f32),
                              jnp.full((D,), 2.0, f32),
                              jnp.ones((D,), f32)])[None, :]    # (1, 4D)
    whht = p["W_hh"].astype(f32).T * gscale                     # (D, 4D)
    wctxg = jnp.outer(wfc_ctx, wih) * gscale                    # (E, 4D)
    wyg = (wfc_y * wih)[None, :] * gscale                       # (1, 4D)
    blstm = (p["b_ih"].astype(f32) + p["b_hh"].astype(f32)
             + bfc * wih)[None, :] * gscale                     # (1, 4D)
    lstm_slab = jnp.concatenate([whht, wctxg, wyg, blstm], axis=0)    # (D+E+2, 4D)

    # ---- final projection slab (width d_out) ---------------------------------
    fin_slab = jnp.concatenate([p["Wff"].astype(f32).T,
                                p["bff"].astype(f32)[None, :]], axis=0)   # (D+E+1, d_out)

    X3 = X.astype(f32)                                          # (B, Tm1, E)
    Xf = X3.reshape(B, TE)                                      # lane-dense view (free in HBM)
    y3 = jnp.transpose(y_prev.astype(f32))[:, :, None]          # (Tm1, B, 1)

    args = (X3, Xf, y3, attn_slab, w2blk, lstm_slab, fin_slab)

    vmem_full = pl.BlockSpec(memory_space=pltpu.MemorySpace.VMEM)
    in_specs = [
        pl.BlockSpec((block_b, Tm1, E), lambda b: (b, 0, 0)),
        pl.BlockSpec((block_b, TE), lambda b: (b, 0)),
        pl.BlockSpec((Tm1, block_b, 1), lambda b: (0, b, 0)),
        vmem_full, vmem_full, vmem_full, vmem_full,
    ]
    out_specs = pl.BlockSpec((block_b, d_out), lambda b: (b, 0))

    return pl.pallas_call(
        _decoder_kernel,
        out_shape=jax.ShapeDtypeStruct((B, d_out), f32),
        grid=(n_blocks,),
        in_specs=in_specs,
        out_specs=out_specs,
        compiler_params=pltpu.CompilerParams(
            dimension_semantics=("parallel",)),
    )(*args)


def decoder_reference(X, y_prev, p):
    """Pure-JAX mirror of the PyTorch Decoder.forward (for validation)."""
    B, Tm1, E = X.shape
    D = p["W_hh"].shape[1]
    d_n = jnp.zeros((B, D), jnp.float32)
    c_n = jnp.zeros((B, D), jnp.float32)
    context = jnp.zeros((B, E), jnp.float32)
    for t in range(Tm1):
        dn_rep = jnp.broadcast_to(d_n[:, None, :], (B, Tm1, D))
        cn_rep = jnp.broadcast_to(c_n[:, None, :], (B, Tm1, D))
        x = jnp.concatenate([dn_rep, cn_rep, X], axis=2).reshape(-1, 2 * D + E)
        hh = jnp.tanh(x @ p["W1"].T + p["b1"])
        logit = (hh @ p["W2"].T + p["b2"]).reshape(B, Tm1)
        beta = jax.nn.softmax(logit, axis=1)
        context = jnp.einsum("bt,bte->be", beta, X)
        y_tilde = (jnp.concatenate([context, y_prev[:, t:t + 1]], axis=1)
                   @ p["Wfc"].T + p["bfc"])                       # (B, 1)
        gates = (y_tilde @ p["W_ih"].T + p["b_ih"]
                 + d_n @ p["W_hh"].T + p["b_hh"])                 # (B, 4D)
        i = jax.nn.sigmoid(gates[:, :D])
        f = jax.nn.sigmoid(gates[:, D:2 * D])
        g = jnp.tanh(gates[:, 2 * D:3 * D])
        o = jax.nn.sigmoid(gates[:, 3 * D:])
        c_n = f * c_n + i * g
        d_n = o * jnp.tanh(c_n)
    return jnp.concatenate([d_n, context], axis=1) @ p["Wff"].T + p["bff"]


def init_params(key, D, E, d_out):
    ks = jax.random.split(key, 12)
    s = 0.1
    f32 = jnp.float32
    return {
        "W1": jax.random.normal(ks[0], (E, 2 * D + E), f32) * s,
        "b1": jax.random.normal(ks[1], (E,), f32) * s,
        "W2": jax.random.normal(ks[2], (1, E), f32) * s,
        "b2": jax.random.normal(ks[3], (1,), f32) * s,
        "W_ih": jax.random.normal(ks[4], (4 * D, 1), f32) * s,
        "W_hh": jax.random.normal(ks[5], (4 * D, D), f32) * s,
        "b_ih": jax.random.normal(ks[6], (4 * D,), f32) * s,
        "b_hh": jax.random.normal(ks[7], (4 * D,), f32) * s,
        "Wfc": jax.random.normal(ks[8], (1, E + 1), f32),  # fc.weight.data.normal_()
        "bfc": jax.random.normal(ks[9], (1,), f32) * s,
        "Wff": jax.random.normal(ks[10], (d_out, D + E), f32) * s,
        "bff": jax.random.normal(ks[11], (d_out,), f32) * s,
    }


if __name__ == "__main__":
    # Small shapes consistent with the module: T=9 -> T-1=8 time steps.
    # Batch = 8 so the f32 sublanes are filled.
    T = 9
    B = 8
    D = 32      # decoder_num_hidden
    E = 32      # encoder_num_hidden
    d_out = 4   # self.d

    key = jax.random.PRNGKey(0)
    k_x, k_y, k_p = jax.random.split(key, 3)
    X_encoded = jax.random.normal(k_x, (B, T - 1, E), jnp.float32)
    y_prev = jax.random.normal(k_y, (B, T - 1), jnp.float32)
    params = init_params(k_p, D, E, d_out)

    y_pred = decoder_forward(X_encoded, y_prev, params)
    y_pred = jax.block_until_ready(y_pred)

    y_ref = decoder_reference(X_encoded, y_prev, params)
    np.testing.assert_allclose(np.asarray(y_pred), np.asarray(y_ref),
                               rtol=1e-4, atol=1e-4)
    print("KERNEL_OK")
</pallas_src>

<mosaic_0001>
module attributes {stable_mosaic.version = 11 : i64} {
  func.func @_decoder_kernel(%arg0: i32, %arg1: memref<8x8x32xf32, #tpu.memory_space<vmem>>, %arg2: memref<8x256xf32, #tpu.memory_space<vmem>>, %arg3: memref<8x8x1xf32, #tpu.memory_space<vmem>>, %arg4: memref<321x256xf32, #tpu.memory_space<vmem>>, %arg5: memref<256x8xf32, #tpu.memory_space<vmem>>, %arg6: memref<66x128xf32, #tpu.memory_space<vmem>>, %arg7: memref<65x4xf32, #tpu.memory_space<vmem>>, %arg8: memref<8x4xf32, #tpu.memory_space<vmem>>) attributes {dimension_semantics = [#tpu.dimension_semantics<parallel>], iteration_bounds = array<i64: 1>, scalar_prefetch = 0 : i64, scratch_operands = 0 : i64, tpu.core_type = #tpu.core_type<tc>, window_params = [{transform_indices = @transform_0, window_bounds = array<i64: 8, 8, 32>}, {transform_indices = @transform_1, window_bounds = array<i64: 8, 256>}, {transform_indices = @transform_2, window_bounds = array<i64: 8, 8, 1>}, {pipeline_mode = #tpu.pipeline_mode<synchronous>, transform_indices = @transform_3, window_bounds = array<i64: 321, 256>}, {pipeline_mode = #tpu.pipeline_mode<synchronous>, transform_indices = @transform_4, window_bounds = array<i64: 256, 8>}, {pipeline_mode = #tpu.pipeline_mode<synchronous>, transform_indices = @transform_5, window_bounds = array<i64: 66, 128>}, {pipeline_mode = #tpu.pipeline_mode<synchronous>, transform_indices = @transform_6, window_bounds = array<i64: 65, 4>}, {transform_indices = @transform_7, window_bounds = array<i64: 8, 4>}]} {
    %c0 = arith.constant 0 : index
    %c0_0 = arith.constant 0 : index
    %c0_1 = arith.constant 0 : index
    %0 = vector.load %arg1[%c0, %c0_0, %c0_1] : memref<8x8x32xf32, #tpu.memory_space<vmem>>, vector<8x8x32xf32>
    %c0_2 = arith.constant 0 : index
    %c0_3 = arith.constant 0 : index
    %1 = vector.load %arg2[%c0_2, %c0_3] : memref<8x256xf32, #tpu.memory_space<vmem>>, vector<8x256xf32>
    %c0_4 = arith.constant 0 : index
    %c0_5 = arith.constant 0 : index
    %2 = vector.load %arg4[%c0_4, %c0_5] : memref<321x256xf32, #tpu.memory_space<vmem>>, vector<256x256xf32>
    %c256 = arith.constant 256 : index
    %c0_6 = arith.constant 0 : index
    %3 = vector.load %arg4[%c256, %c0_6] : memref<321x256xf32, #tpu.memory_space<vmem>>, vector<1x256xf32>
    %c257 = arith.constant 257 : index
    %c0_7 = arith.constant 0 : index
    %4 = vector.load %arg4[%c257, %c0_7] : memref<321x256xf32, #tpu.memory_space<vmem>>, vector<32x256xf32>
    %c289 = arith.constant 289 : index
    %c0_8 = arith.constant 0 : index
    %5 = vector.load %arg4[%c289, %c0_8] : memref<321x256xf32, #tpu.memory_space<vmem>>, vector<32x256xf32>
    %c0_9 = arith.constant 0 : index
    %c0_10 = arith.constant 0 : index
    %6 = vector.load %arg5[%c0_9, %c0_10] : memref<256x8xf32, #tpu.memory_space<vmem>>, vector<256x8xf32>
    %c0_11 = arith.constant 0 : index
    %c0_12 = arith.constant 0 : index
    %7 = vector.load %arg6[%c0_11, %c0_12] : memref<66x128xf32, #tpu.memory_space<vmem>>, vector<32x128xf32>
    %c32 = arith.constant 32 : index
    %c0_13 = arith.constant 0 : index
    %8 = vector.load %arg6[%c32, %c0_13] : memref<66x128xf32, #tpu.memory_space<vmem>>, vector<32x128xf32>
    %c64 = arith.constant 64 : index
    %c0_14 = arith.constant 0 : index
    %9 = vector.load %arg6[%c64, %c0_14] : memref<66x128xf32, #tpu.memory_space<vmem>>, vector<1x128xf32>
    %c65 = arith.constant 65 : index
    %c0_15 = arith.constant 0 : index
    %10 = vector.load %arg6[%c65, %c0_15] : memref<66x128xf32, #tpu.memory_space<vmem>>, vector<1x128xf32>
    %c0_16 = arith.constant 0 : index
    %c0_17 = arith.constant 0 : index
    %11 = vector.load %arg7[%c0_16, %c0_17] : memref<65x4xf32, #tpu.memory_space<vmem>>, vector<32x4xf32>
    %c32_18 = arith.constant 32 : index
    %c0_19 = arith.constant 0 : index
    %12 = vector.load %arg7[%c32_18, %c0_19] : memref<65x4xf32, #tpu.memory_space<vmem>>, vector<32x4xf32>
    %c64_20 = arith.constant 64 : index
    %c0_21 = arith.constant 0 : index
    %13 = vector.load %arg7[%c64_20, %c0_21] : memref<65x4xf32, #tpu.memory_space<vmem>>, vector<1x4xf32>
    %cst = arith.constant dense<0.000000e+00> : vector<8x256xf32>
    %14 = tpu.matmul %1, %2, %cst {dimension_numbers = #tpu.dot_dimension_numbers<[1], [0], [0], [1], [0, 0, 1, 1], [], []>} : vector<8x256xf32>, vector<256x256xf32>, vector<8x256xf32> -> vector<8x256xf32>
    %15 = vector.broadcast %3 : vector<1x256xf32> to vector<8x256xf32>
    %16 = arith.addf %14, %15 : vector<8x256xf32>
    %cst_22 = arith.constant 0.000000e+00 : f32
    %17 = vector.broadcast %cst_22 : f32 to vector<8x32xf32>
    %cst_23 = arith.constant 0.000000e+00 : f32
    %18 = vector.broadcast %cst_23 : f32 to vector<8x32xf32>
    %cst_24 = arith.constant 0.000000e+00 : f32
    %19 = vector.broadcast %cst_24 : f32 to vector<8x32xf32>
    %c0_i32 = arith.constant 0 : i32
    %cst_25 = arith.constant dense<0.000000e+00> : vector<8x256xf32>
    %20 = tpu.matmul %17, %4, %cst_25 {dimension_numbers = #tpu.dot_dimension_numbers<[1], [0], [0], [1], [0, 0, 1, 1], [], []>} : vector<8x32xf32>, vector<32x256xf32>, vector<8x256xf32> -> vector<8x256xf32>
    %cst_26 = arith.constant dense<0.000000e+00> : vector<8x256xf32>
    %21 = tpu.matmul %18, %5, %cst_26 {dimension_numbers = #tpu.dot_dimension_numbers<[1], [0], [0], [1], [0, 0, 1, 1], [], []>} : vector<8x32xf32>, vector<32x256xf32>, vector<8x256xf32> -> vector<8x256xf32>
    %22 = arith.addf %20, %21 : vector<8x256xf32>
    %23 = arith.addf %16, %22 : vector<8x256xf32>
    %24 = math.tanh %23 : vector<8x256xf32>
    %cst_27 = arith.constant dense<0.000000e+00> : vector<8x8xf32>
    %25 = tpu.matmul %24, %6, %cst_27 {dimension_numbers = #tpu.dot_dimension_numbers<[1], [0], [0], [1], [0, 0, 1, 1], [], []>} : vector<8x256xf32>, vector<256x8xf32>, vector<8x8xf32> -> vector<8x8xf32>
    %cst_28 = arith.constant dense<0xFF800000> : vector<8xf32>
    %26 = vector.multi_reduction <maximumf>, %25, %cst_28 [1] : vector<8x8xf32> to vector<8xf32>
    %27 = vector.shape_cast %26 : vector<8xf32> to vector<8x1xf32>
    %28 = vector.broadcast %27 : vector<8x1xf32> to vector<8x8xf32>
    %29 = arith.subf %25, %28 : vector<8x8xf32>
    %30 = math.exp %29 : vector<8x8xf32>
    %cst_29 = arith.constant dense<0.000000e+00> : vector<8xf32>
    %31 = vector.multi_reduction <add>, %30, %cst_29 [1] : vector<8x8xf32> to vector<8xf32>
    %32 = vector.shape_cast %31 : vector<8xf32> to vector<8x1xf32>
    %33 = vector.broadcast %32 : vector<8x1xf32> to vector<8x8xf32>
    %34 = arith.divf %30, %33 : vector<8x8xf32>
    %35 = vector.shape_cast %34 : vector<8x8xf32> to vector<8x8x1xf32>
    %36 = vector.broadcast %35 : vector<8x8x1xf32> to vector<8x8x32xf32>
    %37 = arith.mulf %36, %0 : vector<8x8x32xf32>
    %cst_30 = arith.constant dense<0.000000e+00> : vector<8x32xf32>
    %38 = vector.multi_reduction <add>, %37, %cst_30 [1] : vector<8x8x32xf32> to vector<8x32xf32>
    %39 = arith.index_cast %c0_i32 : i32 to index
    %c0_31 = arith.constant 0 : index
    %c0_32 = arith.constant 0 : index
    %40 = vector.load %arg3[%39, %c0_31, %c0_32] : memref<8x8x1xf32, #tpu.memory_space<vmem>>, vector<1x8x1xf32>
    %41 = vector.shape_cast %40 : vector<1x8x1xf32> to vector<8x1xf32>
    %cst_33 = arith.constant dense<0.000000e+00> : vector<8x128xf32>
    %42 = tpu.matmul %38, %8, %cst_33 {dimension_numbers = #tpu.dot_dimension_numbers<[1], [0], [0], [1], [0, 0, 1, 1], [], []>} : vector<8x32xf32>, vector<32x128xf32>, vector<8x128xf32> -> vector<8x128xf32>
    %cst_34 = arith.constant dense<0.000000e+00> : vector<8x128xf32>
    %43 = tpu.matmul %17, %7, %cst_34 {dimension_numbers = #tpu.dot_dimension_numbers<[1], [0], [0], [1], [0, 0, 1, 1], [], []>} : vector<8x32xf32>, vector<32x128xf32>, vector<8x128xf32> -> vector<8x128xf32>
    %44 = arith.addf %42, %43 : vector<8x128xf32>
    %45 = vector.broadcast %41 : vector<8x1xf32> to vector<8x128xf32>
    %46 = vector.broadcast %9 : vector<1x128xf32> to vector<8x128xf32>
    %47 = arith.mulf %45, %46 : vector<8x128xf32>
    %48 = arith.addf %44, %47 : vector<8x128xf32>
    %49 = vector.broadcast %10 : vector<1x128xf32> to vector<8x128xf32>
    %50 = arith.addf %48, %49 : vector<8x128xf32>
    %51 = arith.negf %50 : vector<8x128xf32>
    %52 = math.exp %51 : vector<8x128xf32>
    %cst_35 = arith.constant 1.000000e+00 : f32
    %53 = vector.broadcast %cst_35 : f32 to vector<8x128xf32>
    %54 = arith.addf %53, %52 : vector<8x128xf32>
    %55 = arith.divf %53, %54 : vector<8x128xf32>
    %56 = vector.extract_strided_slice %55 {offsets = [0, 0], sizes = [8, 32], strides = [1, 1]} : vector<8x128xf32> to vector<8x32xf32>
    %57 = vector.extract_strided_slice %55 {offsets = [0, 32], sizes = [8, 32], strides = [1, 1]} : vector<8x128xf32> to vector<8x32xf32>
    %58 = vector.extract_strided_slice %55 {offsets = [0, 96], sizes = [8, 32], strides = [1, 1]} : vector<8x128xf32> to vector<8x32xf32>
    %59 = vector.extract_strided_slice %55 {offsets = [0, 64], sizes = [8, 32], strides = [1, 1]} : vector<8x128xf32> to vector<8x32xf32>
    %cst_36 = arith.constant 2.000000e+00 : f32
    %60 = vector.broadcast %cst_36 : f32 to vector<8x32xf32>
    %61 = arith.mulf %60, %59 : vector<8x32xf32>
    %cst_37 = arith.constant 1.000000e+00 : f32
    %62 = vector.broadcast %cst_37 : f32 to vector<8x32xf32>
    %63 = arith.subf %61, %62 : vector<8x32xf32>
    %64 = arith.mulf %57, %18 : vector<8x32xf32>
    %65 = arith.mulf %56, %63 : vector<8x32xf32>
    %66 = arith.addf %64, %65 : vector<8x32xf32>
    %67 = math.tanh %66 : vector<8x32xf32>
    %68 = arith.mulf %58, %67 : vector<8x32xf32>
    %c1_i32 = arith.constant 1 : i32
    %cst_38 = arith.constant dense<0.000000e+00> : vector<8x256xf32>
    %69 = tpu.matmul %68, %4, %cst_38 {dimension_numbers = #tpu.dot_dimension_numbers<[1], [0], [0], [1], [0, 0, 1, 1], [], []>} : vector<8x32xf32>, vector<32x256xf32>, vector<8x256xf32> -> vector<8x256xf32>
    %cst_39 = arith.constant dense<0.000000e+00> : vector<8x256xf32>
    %70 = tpu.matmul %66, %5, %cst_39 {dimension_numbers = #tpu.dot_dimension_numbers<[1], [0], [0], [1], [0, 0, 1, 1], [], []>} : vector<8x32xf32>, vector<32x256xf32>, vector<8x256xf32> -> vector<8x256xf32>
    %71 = arith.addf %69, %70 : vector<8x256xf32>
    %72 = arith.addf %16, %71 : vector<8x256xf32>
    %73 = math.tanh %72 : vector<8x256xf32>
    %cst_40 = arith.constant dense<0.000000e+00> : vector<8x8xf32>
    %74 = tpu.matmul %73, %6, %cst_40 {dimension_numbers = #tpu.dot_dimension_numbers<[1], [0], [0], [1], [0, 0, 1, 1], [], []>} : vector<8x256xf32>, vector<256x8xf32>, vector<8x8xf32> -> vector<8x8xf32>
    %cst_41 = arith.constant dense<0xFF800000> : vector<8xf32>
    %75 = vector.multi_reduction <maximumf>, %74, %cst_41 [1] : vector<8x8xf32> to vector<8xf32>
    %76 = vector.shape_cast %75 : vector<8xf32> to vector<8x1xf32>
    %77 = vector.broadcast %76 : vector<8x1xf32> to vector<8x8xf32>
    %78 = arith.subf %74, %77 : vector<8x8xf32>
    %79 = math.exp %78 : vector<8x8xf32>
    %cst_42 = arith.constant dense<0.000000e+00> : vector<8xf32>
    %80 = vector.multi_reduction <add>, %79, %cst_42 [1] : vector<8x8xf32> to vector<8xf32>
    %81 = vector.shape_cast %80 : vector<8xf32> to vector<8x1xf32>
    %82 = vector.broadcast %81 : vector<8x1xf32> to vector<8x8xf32>
    %83 = arith.divf %79, %82 : vector<8x8xf32>
    %84 = vector.shape_cast %83 : vector<8x8xf32> to vector<8x8x1xf32>
    %85 = vector.broadcast %84 : vector<8x8x1xf32> to vector<8x8x32xf32>
    %86 = arith.mulf %85, %0 : vector<8x8x32xf32>
    %cst_43 = arith.constant dense<0.000000e+00> : vector<8x32xf32>
    %87 = vector.multi_reduction <add>, %86, %cst_43 [1] : vector<8x8x32xf32> to vector<8x32xf32>
    %88 = arith.index_cast %c1_i32 : i32 to index
    %c0_44 = arith.constant 0 : index
    %c0_45 = arith.constant 0 : index
    %89 = vector.load %arg3[%88, %c0_44, %c0_45] : memref<8x8x1xf32, #tpu.memory_space<vmem>>, vector<1x8x1xf32>
    %90 = vector.shape_cast %89 : vector<1x8x1xf32> to vector<8x1xf32>
    %cst_46 = arith.constant dense<0.000000e+00> : vector<8x128xf32>
    %91 = tpu.matmul %87, %8, %cst_46 {dimension_numbers = #tpu.dot_dimension_numbers<[1], [0], [0], [1], [0, 0, 1, 1], [], []>} : vector<8x32xf32>, vector<32x128xf32>, vector<8x128xf32> -> vector<8x128xf32>
    %cst_47 = arith.constant dense<0.000000e+00> : vector<8x128xf32>
    %92 = tpu.matmul %68, %7, %cst_47 {dimension_numbers = #tpu.dot_dimension_numbers<[1], [0], [0], [1], [0, 0, 1, 1], [], []>} : vector<8x32xf32>, vector<32x128xf32>, vector<8x128xf32> -> vector<8x128xf32>
    %93 = arith.addf %91, %92 : vector<8x128xf32>
    %94 = vector.broadcast %90 : vector<8x1xf32> to vector<8x128xf32>
    %95 = vector.broadcast %9 : vector<1x128xf32> to vector<8x128xf32>
    %96 = arith.mulf %94, %95 : vector<8x128xf32>
    %97 = arith.addf %93, %96 : vector<8x128xf32>
    %98 = vector.broadcast %10 : vector<1x128xf32> to vector<8x128xf32>
    %99 = arith.addf %97, %98 : vector<8x128xf32>
    %100 = arith.negf %99 : vector<8x128xf32>
    %101 = math.exp %100 : vector<8x128xf32>
    %cst_48 = arith.constant 1.000000e+00 : f32
    %102 = vector.broadcast %cst_48 : f32 to vector<8x128xf32>
    %103 = arith.addf %102, %101 : vector<8x128xf32>
    %104 = arith.divf %102, %103 : vector<8x128xf32>
    %105 = vector.extract_strided_slice %104 {offsets = [0, 0], sizes = [8, 32], strides = [1, 1]} : vector<8x128xf32> to vector<8x32xf32>
    %106 = vector.extract_strided_slice %104 {offsets = [0, 32], sizes = [8, 32], strides = [1, 1]} : vector<8x128xf32> to vector<8x32xf32>
    %107 = vector.extract_strided_slice %104 {offsets = [0, 96], sizes = [8, 32], strides = [1, 1]} : vector<8x128xf32> to vector<8x32xf32>
    %108 = vector.extract_strided_slice %104 {offsets = [0, 64], sizes = [8, 32], strides = [1, 1]} : vector<8x128xf32> to vector<8x32xf32>
    %cst_49 = arith.constant 2.000000e+00 : f32
    %109 = vector.broadcast %cst_49 : f32 to vector<8x32xf32>
    %110 = arith.mulf %109, %108 : vector<8x32xf32>
    %cst_50 = arith.constant 1.000000e+00 : f32
    %111 = vector.broadcast %cst_50 : f32 to vector<8x32xf32>
    %112 = arith.subf %110, %111 : vector<8x32xf32>
    %113 = arith.mulf %106, %66 : vector<8x32xf32>
    %114 = arith.mulf %105, %112 : vector<8x32xf32>
    %115 = arith.addf %113, %114 : vector<8x32xf32>
    %116 = math.tanh %115 : vector<8x32xf32>
    %117 = arith.mulf %107, %116 : vector<8x32xf32>
    %c2_i32 = arith.constant 2 : i32
    %cst_51 = arith.constant dense<0.000000e+00> : vector<8x256xf32>
    %118 = tpu.matmul %117, %4, %cst_51 {dimension_numbers = #tpu.dot_dimension_numbers<[1], [0], [0], [1], [0, 0, 1, 1], [], []>} : vector<8x32xf32>, vector<32x256xf32>, vector<8x256xf32> -> vector<8x256xf32>
    %cst_52 = arith.constant dense<0.000000e+00> : vector<8x256xf32>
    %119 = tpu.matmul %115, %5, %cst_52 {dimension_numbers = #tpu.dot_dimension_numbers<[1], [0], [0], [1], [0, 0, 1, 1], [], []>} : vector<8x32xf32>, vector<32x256xf32>, vector<8x256xf32> -> vector<8x256xf32>
    %120 = arith.addf %118, %119 : vector<8x256xf32>
    %121 = arith.addf %16, %120 : vector<8x256xf32>
    %122 = math.tanh %121 : vector<8x256xf32>
    %cst_53 = arith.constant dense<0.000000e+00> : vector<8x8xf32>
    %123 = tpu.matmul %122, %6, %cst_53 {dimension_numbers = #tpu.dot_dimension_numbers<[1], [0], [0], [1], [0, 0, 1, 1], [], []>} : vector<8x256xf32>, vector<256x8xf32>, vector<8x8xf32> -> vector<8x8xf32>
    %cst_54 = arith.constant dense<0xFF800000> : vector<8xf32>
    %124 = vector.multi_reduction <maximumf>, %123, %cst_54 [1] : vector<8x8xf32> to vector<8xf32>
    %125 = vector.shape_cast %124 : vector<8xf32> to vector<8x1xf32>
    %126 = vector.broadcast %125 : vector<8x1xf32> to vector<8x8xf32>
    %127 = arith.subf %123, %126 : vector<8x8xf32>
    %128 = math.exp %127 : vector<8x8xf32>
    %cst_55 = arith.constant dense<0.000000e+00> : vector<8xf32>
    %129 = vector.multi_reduction <add>, %128, %cst_55 [1] : vector<8x8xf32> to vector<8xf32>
    %130 = vector.shape_cast %129 : vector<8xf32> to vector<8x1xf32>
    %131 = vector.broadcast %130 : vector<8x1xf32> to vector<8x8xf32>
    %132 = arith.divf %128, %131 : vector<8x8xf32>
    %133 = vector.shape_cast %132 : vector<8x8xf32> to vector<8x8x1xf32>
    %134 = vector.broadcast %133 : vector<8x8x1xf32> to vector<8x8x32xf32>
    %135 = arith.mulf %134, %0 : vector<8x8x32xf32>
    %cst_56 = arith.constant dense<0.000000e+00> : vector<8x32xf32>
    %136 = vector.multi_reduction <add>, %135, %cst_56 [1] : vector<8x8x32xf32> to vector<8x32xf32>
    %137 = arith.index_cast %c2_i32 : i32 to index
    %c0_57 = arith.constant 0 : index
    %c0_58 = arith.constant 0 : index
    %138 = vector.load %arg3[%137, %c0_57, %c0_58] : memref<8x8x1xf32, #tpu.memory_space<vmem>>, vector<1x8x1xf32>
    %139 = vector.shape_cast %138 : vector<1x8x1xf32> to vector<8x1xf32>
    %cst_59 = arith.constant dense<0.000000e+00> : vector<8x128xf32>
    %140 = tpu.matmul %136, %8, %cst_59 {dimension_numbers = #tpu.dot_dimension_numbers<[1], [0], [0], [1], [0, 0, 1, 1], [], []>} : vector<8x32xf32>, vector<32x128xf32>, vector<8x128xf32> -> vector<8x128xf32>
    %cst_60 = arith.constant dense<0.000000e+00> : vector<8x128xf32>
    %141 = tpu.matmul %117, %7, %cst_60 {dimension_numbers = #tpu.dot_dimension_numbers<[1], [0], [0], [1], [0, 0, 1, 1], [], []>} : vector<8x32xf32>, vector<32x128xf32>, vector<8x128xf32> -> vector<8x128xf32>
    %142 = arith.addf %140, %141 : vector<8x128xf32>
    %143 = vector.broadcast %139 : vector<8x1xf32> to vector<8x128xf32>
    %144 = vector.broadcast %9 : vector<1x128xf32> to vector<8x128xf32>
    %145 = arith.mulf %143, %144 : vector<8x128xf32>
    %146 = arith.addf %142, %145 : vector<8x128xf32>
    %147 = vector.broadcast %10 : vector<1x128xf32> to vector<8x128xf32>
    %148 = arith.addf %146, %147 : vector<8x128xf32>
    %149 = arith.negf %148 : vector<8x128xf32>
    %150 = math.exp %149 : vector<8x128xf32>
    %cst_61 = arith.constant 1.000000e+00 : f32
    %151 = vector.broadcast %cst_61 : f32 to vector<8x128xf32>
    %152 = arith.addf %151, %150 : vector<8x128xf32>
    %153 = arith.divf %151, %152 : vector<8x128xf32>
    %154 = vector.extract_strided_slice %153 {offsets = [0, 0], sizes = [8, 32], strides = [1, 1]} : vector<8x128xf32> to vector<8x32xf32>
    %155 = vector.extract_strided_slice %153 {offsets = [0, 32], sizes = [8, 32], strides = [1, 1]} : vector<8x128xf32> to vector<8x32xf32>
    %156 = vector.extract_strided_slice %153 {offsets = [0, 96], sizes = [8, 32], strides = [1, 1]} : vector<8x128xf32> to vector<8x32xf32>
    %157 = vector.extract_strided_slice %153 {offsets = [0, 64], sizes = [8, 32], strides = [1, 1]} : vector<8x128xf32> to vector<8x32xf32>
    %cst_62 = arith.constant 2.000000e+00 : f32
    %158 = vector.broadcast %cst_62 : f32 to vector<8x32xf32>
    %159 = arith.mulf %158, %157 : vector<8x32xf32>
    %cst_63 = arith.constant 1.000000e+00 : f32
    %160 = vector.broadcast %cst_63 : f32 to vector<8x32xf32>
    %161 = arith.subf %159, %160 : vector<8x32xf32>
    %162 = arith.mulf %155, %115 : vector<8x32xf32>
    %163 = arith.mulf %154, %161 : vector<8x32xf32>
    %164 = arith.addf %162, %163 : vector<8x32xf32>
    %165 = math.tanh %164 : vector<8x32xf32>
    %166 = arith.mulf %156, %165 : vector<8x32xf32>
    %c3_i32 = arith.constant 3 : i32
    %cst_64 = arith.constant dense<0.000000e+00> : vector<8x256xf32>
    %167 = tpu.matmul %166, %4, %cst_64 {dimension_numbers = #tpu.dot_dimension_numbers<[1], [0], [0], [1], [0, 0, 1, 1], [], []>} : vector<8x32xf32>, vector<32x256xf32>, vector<8x256xf32> -> vector<8x256xf32>
    %cst_65 = arith.constant dense<0.000000e+00> : vector<8x256xf32>
    %168 = tpu.matmul %164, %5, %cst_65 {dimension_numbers = #tpu.dot_dimension_numbers<[1], [0], [0], [1], [0, 0, 1, 1], [], []>} : vector<8x32xf32>, vector<32x256xf32>, vector<8x256xf32> -> vector<8x256xf32>
    %169 = arith.addf %167, %168 : vector<8x256xf32>
    %170 = arith.addf %16, %169 : vector<8x256xf32>
    %171 = math.tanh %170 : vector<8x256xf32>
    %cst_66 = arith.constant dense<0.000000e+00> : vector<8x8xf32>
    %172 = tpu.matmul %171, %6, %cst_66 {dimension_numbers = #tpu.dot_dimension_numbers<[1], [0], [0], [1], [0, 0, 1, 1], [], []>} : vector<8x256xf32>, vector<256x8xf32>, vector<8x8xf32> -> vector<8x8xf32>
    %cst_67 = arith.constant dense<0xFF800000> : vector<8xf32>
    %173 = vector.multi_reduction <maximumf>, %172, %cst_67 [1] : vector<8x8xf32> to vector<8xf32>
    %174 = vector.shape_cast %173 : vector<8xf32> to vector<8x1xf32>
    %175 = vector.broadcast %174 : vector<8x1xf32> to vector<8x8xf32>
    %176 = arith.subf %172, %175 : vector<8x8xf32>
    %177 = math.exp %176 : vector<8x8xf32>
    %cst_68 = arith.constant dense<0.000000e+00> : vector<8xf32>
    %178 = vector.multi_reduction <add>, %177, %cst_68 [1] : vector<8x8xf32> to vector<8xf32>
    %179 = vector.shape_cast %178 : vector<8xf32> to vector<8x1xf32>
    %180 = vector.broadcast %179 : vector<8x1xf32> to vector<8x8xf32>
    %181 = arith.divf %177, %180 : vector<8x8xf32>
    %182 = vector.shape_cast %181 : vector<8x8xf32> to vector<8x8x1xf32>
    %183 = vector.broadcast %182 : vector<8x8x1xf32> to vector<8x8x32xf32>
    %184 = arith.mulf %183, %0 : vector<8x8x32xf32>
    %cst_69 = arith.constant dense<0.000000e+00> : vector<8x32xf32>
    %185 = vector.multi_reduction <add>, %184, %cst_69 [1] : vector<8x8x32xf32> to vector<8x32xf32>
    %186 = arith.index_cast %c3_i32 : i32 to index
    %c0_70 = arith.constant 0 : index
    %c0_71 = arith.constant 0 : index
    %187 = vector.load %arg3[%186, %c0_70, %c0_71] : memref<8x8x1xf32, #tpu.memory_space<vmem>>, vector<1x8x1xf32>
    %188 = vector.shape_cast %187 : vector<1x8x1xf32> to vector<8x1xf32>
    %cst_72 = arith.constant dense<0.000000e+00> : vector<8x128xf32>
    %189 = tpu.matmul %185, %8, %cst_72 {dimension_numbers = #tpu.dot_dimension_numbers<[1], [0], [0], [1], [0, 0, 1, 1], [], []>} : vector<8x32xf32>, vector<32x128xf32>, vector<8x128xf32> -> vector<8x128xf32>
    %cst_73 = arith.constant dense<0.000000e+00> : vector<8x128xf32>
    %190 = tpu.matmul %166, %7, %cst_73 {dimension_numbers = #tpu.dot_dimension_numbers<[1], [0], [0], [1], [0, 0, 1, 1], [], []>} : vector<8x32xf32>, vector<32x128xf32>, vector<8x128xf32> -> vector<8x128xf32>
    %191 = arith.addf %189, %190 : vector<8x128xf32>
    %192 = vector.broadcast %188 : vector<8x1xf32> to vector<8x128xf32>
    %193 = vector.broadcast %9 : vector<1x128xf32> to vector<8x128xf32>
    %194 = arith.mulf %192, %193 : vector<8x128xf32>
    %195 = arith.addf %191, %194 : vector<8x128xf32>
    %196 = vector.broadcast %10 : vector<1x128xf32> to vector<8x128xf32>
    %197 = arith.addf %195, %196 : vector<8x128xf32>
    %198 = arith.negf %197 : vector<8x128xf32>
    %199 = math.exp %198 : vector<8x128xf32>
    %cst_74 = arith.constant 1.000000e+00 : f32
    %200 = vector.broadcast %cst_74 : f32 to vector<8x128xf32>
    %201 = arith.addf %200, %199 : vector<8x128xf32>
    %202 = arith.divf %200, %201 : vector<8x128xf32>
    %203 = vector.extract_strided_slice %202 {offsets = [0, 0], sizes = [8, 32], strides = [1, 1]} : vector<8x128xf32> to vector<8x32xf32>
    %204 = vector.extract_strided_slice %202 {offsets = [0, 32], sizes = [8, 32], strides = [1, 1]} : vector<8x128xf32> to vector<8x32xf32>
    %205 = vector.extract_strided_slice %202 {offsets = [0, 96], sizes = [8, 32], strides = [1, 1]} : vector<8x128xf32> to vector<8x32xf32>
    %206 = vector.extract_strided_slice %202 {offsets = [0, 64], sizes = [8, 32], strides = [1, 1]} : vector<8x128xf32> to vector<8x32xf32>
    %cst_75 = arith.constant 2.000000e+00 : f32
    %207 = vector.broadcast %cst_75 : f32 to vector<8x32xf32>
    %208 = arith.mulf %207, %206 : vector<8x32xf32>
    %cst_76 = arith.constant 1.000000e+00 : f32
    %209 = vector.broadcast %cst_76 : f32 to vector<8x32xf32>
    %210 = arith.subf %208, %209 : vector<8x32xf32>
    %211 = arith.mulf %204, %164 : vector<8x32xf32>
    %212 = arith.mulf %203, %210 : vector<8x32xf32>
    %213 = arith.addf %211, %212 : vector<8x32xf32>
    %214 = math.tanh %213 : vector<8x32xf32>
    %215 = arith.mulf %205, %214 : vector<8x32xf32>
    %c4_i32 = arith.constant 4 : i32
    %cst_77 = arith.constant dense<0.000000e+00> : vector<8x256xf32>
    %216 = tpu.matmul %215, %4, %cst_77 {dimension_numbers = #tpu.dot_dimension_numbers<[1], [0], [0], [1], [0, 0, 1, 1], [], []>} : vector<8x32xf32>, vector<32x256xf32>, vector<8x256xf32> -> vector<8x256xf32>
    %cst_78 = arith.constant dense<0.000000e+00> : vector<8x256xf32>
    %217 = tpu.matmul %213, %5, %cst_78 {dimension_numbers = #tpu.dot_dimension_numbers<[1], [0], [0], [1], [0, 0, 1, 1], [], []>} : vector<8x32xf32>, vector<32x256xf32>, vector<8x256xf32> -> vector<8x256xf32>
    %218 = arith.addf %216, %217 : vector<8x256xf32>
    %219 = arith.addf %16, %218 : vector<8x256xf32>
    %220 = math.tanh %219 : vector<8x256xf32>
    %cst_79 = arith.constant dense<0.000000e+00> : vector<8x8xf32>
    %221 = tpu.matmul %220, %6, %cst_79 {dimension_numbers = #tpu.dot_dimension_numbers<[1], [0], [0], [1], [0, 0, 1, 1], [], []>} : vector<8x256xf32>, vector<256x8xf32>, vector<8x8xf32> -> vector<8x8xf32>
    %cst_80 = arith.constant dense<0xFF800000> : vector<8xf32>
    %222 = vector.multi_reduction <maximumf>, %221, %cst_80 [1] : vector<8x8xf32> to vector<8xf32>
    %223 = vector.shape_cast %222 : vector<8xf32> to vector<8x1xf32>
    %224 = vector.broadcast %223 : vector<8x1xf32> to vector<8x8xf32>
    %225 = arith.subf %221, %224 : vector<8x8xf32>
    %226 = math.exp %225 : vector<8x8xf32>
    %cst_81 = arith.constant dense<0.000000e+00> : vector<8xf32>
    %227 = vector.multi_reduction <add>, %226, %cst_81 [1] : vector<8x8xf32> to vector<8xf32>
    %228 = vector.shape_cast %227 : vector<8xf32> to vector<8x1xf32>
    %229 = vector.broadcast %228 : vector<8x1xf32> to vector<8x8xf32>
    %230 = arith.divf %226, %229 : vector<8x8xf32>
    %231 = vector.shape_cast %230 : vector<8x8xf32> to vector<8x8x1xf32>
    %232 = vector.broadcast %231 : vector<8x8x1xf32> to vector<8x8x32xf32>
    %233 = arith.mulf %232, %0 : vector<8x8x32xf32>
    %cst_82 = arith.constant dense<0.000000e+00> : vector<8x32xf32>
    %234 = vector.multi_reduction <add>, %233, %cst_82 [1] : vector<8x8x32xf32> to vector<8x32xf32>
    %235 = arith.index_cast %c4_i32 : i32 to index
    %c0_83 = arith.constant 0 : index
    %c0_84 = arith.constant 0 : index
    %236 = vector.load %arg3[%235, %c0_83, %c0_84] : memref<8x8x1xf32, #tpu.memory_space<vmem>>, vector<1x8x1xf32>
    %237 = vector.shape_cast %236 : vector<1x8x1xf32> to vector<8x1xf32>
    %cst_85 = arith.constant dense<0.000000e+00> : vector<8x128xf32>
    %238 = tpu.matmul %234, %8, %cst_85 {dimension_numbers = #tpu.dot_dimension_numbers<[1], [0], [0], [1], [0, 0, 1, 1], [], []>} : vector<8x32xf32>, vector<32x128xf32>, vector<8x128xf32> -> vector<8x128xf32>
    %cst_86 = arith.constant dense<0.000000e+00> : vector<8x128xf32>
    %239 = tpu.matmul %215, %7, %cst_86 {dimension_numbers = #tpu.dot_dimension_numbers<[1], [0], [0], [1], [0, 0, 1, 1], [], []>} : vector<8x32xf32>, vector<32x128xf32>, vector<8x128xf32> -> vector<8x128xf32>
    %240 = arith.addf %238, %239 : vector<8x128xf32>
    %241 = vector.broadcast %237 : vector<8x1xf32> to vector<8x128xf32>
    %242 = vector.broadcast %9 : vector<1x128xf32> to vector<8x128xf32>
    %243 = arith.mulf %241, %242 : vector<8x128xf32>
    %244 = arith.addf %240, %243 : vector<8x128xf32>
    %245 = vector.broadcast %10 : vector<1x128xf32> to vector<8x128xf32>
    %246 = arith.addf %244, %245 : vector<8x128xf32>
    %247 = arith.negf %246 : vector<8x128xf32>
    %248 = math.exp %247 : vector<8x128xf32>
    %cst_87 = arith.constant 1.000000e+00 : f32
    %249 = vector.broadcast %cst_87 : f32 to vector<8x128xf32>
    %250 = arith.addf %249, %248 : vector<8x128xf32>
    %251 = arith.divf %249, %250 : vector<8x128xf32>
    %252 = vector.extract_strided_slice %251 {offsets = [0, 0], sizes = [8, 32], strides = [1, 1]} : vector<8x128xf32> to vector<8x32xf32>
    %253 = vector.extract_strided_slice %251 {offsets = [0, 32], sizes = [8, 32], strides = [1, 1]} : vector<8x128xf32> to vector<8x32xf32>
    %254 = vector.extract_strided_slice %251 {offsets = [0, 96], sizes = [8, 32], strides = [1, 1]} : vector<8x128xf32> to vector<8x32xf32>
    %255 = vector.extract_strided_slice %251 {offsets = [0, 64], sizes = [8, 32], strides = [1, 1]} : vector<8x128xf32> to vector<8x32xf32>
    %cst_88 = arith.constant 2.000000e+00 : f32
    %256 = vector.broadcast %cst_88 : f32 to vector<8x32xf32>
    %257 = arith.mulf %256, %255 : vector<8x32xf32>
    %cst_89 = arith.constant 1.000000e+00 : f32
    %258 = vector.broadcast %cst_89 : f32 to vector<8x32xf32>
    %259 = arith.subf %257, %258 : vector<8x32xf32>
    %260 = arith.mulf %253, %213 : vector<8x32xf32>
    %261 = arith.mulf %252, %259 : vector<8x32xf32>
    %262 = arith.addf %260, %261 : vector<8x32xf32>
    %263 = math.tanh %262 : vector<8x32xf32>
    %264 = arith.mulf %254, %263 : vector<8x32xf32>
    %c5_i32 = arith.constant 5 : i32
    %cst_90 = arith.constant dense<0.000000e+00> : vector<8x256xf32>
    %265 = tpu.matmul %264, %4, %cst_90 {dimension_numbers = #tpu.dot_dimension_numbers<[1], [0], [0], [1], [0, 0, 1, 1], [], []>} : vector<8x32xf32>, vector<32x256xf32>, vector<8x256xf32> -> vector<8x256xf32>
    %cst_91 = arith.constant dense<0.000000e+00> : vector<8x256xf32>
    %266 = tpu.matmul %262, %5, %cst_91 {dimension_numbers = #tpu.dot_dimension_numbers<[1], [0], [0], [1], [0, 0, 1, 1], [], []>} : vector<8x32xf32>, vector<32x256xf32>, vector<8x256xf32> -> vector<8x256xf32>
    %267 = arith.addf %265, %266 : vector<8x256xf32>
    %268 = arith.addf %16, %267 : vector<8x256xf32>
    %269 = math.tanh %268 : vector<8x256xf32>
    %cst_92 = arith.constant dense<0.000000e+00> : vector<8x8xf32>
    %270 = tpu.matmul %269, %6, %cst_92 {dimension_numbers = #tpu.dot_dimension_numbers<[1], [0], [0], [1], [0, 0, 1, 1], [], []>} : vector<8x256xf32>, vector<256x8xf32>, vector<8x8xf32> -> vector<8x8xf32>
    %cst_93 = arith.constant dense<0xFF800000> : vector<8xf32>
    %271 = vector.multi_reduction <maximumf>, %270, %cst_93 [1] : vector<8x8xf32> to vector<8xf32>
    %272 = vector.shape_cast %271 : vector<8xf32> to vector<8x1xf32>
    %273 = vector.broadcast %272 : vector<8x1xf32> to vector<8x8xf32>
    %274 = arith.subf %270, %273 : vector<8x8xf32>
    %275 = math.exp %274 : vector<8x8xf32>
    %cst_94 = arith.constant dense<0.000000e+00> : vector<8xf32>
    %276 = vector.multi_reduction <add>, %275, %cst_94 [1] : vector<8x8xf32> to vector<8xf32>
    %277 = vector.shape_cast %276 : vector<8xf32> to vector<8x1xf32>
    %278 = vector.broadcast %277 : vector<8x1xf32> to vector<8x8xf32>
    %279 = arith.divf %275, %278 : vector<8x8xf32>
    %280 = vector.shape_cast %279 : vector<8x8xf32> to vector<8x8x1xf32>
    %281 = vector.broadcast %280 : vector<8x8x1xf32> to vector<8x8x32xf32>
    %282 = arith.mulf %281, %0 : vector<8x8x32xf32>
    %cst_95 = arith.constant dense<0.000000e+00> : vector<8x32xf32>
    %283 = vector.multi_reduction <add>, %282, %cst_95 [1] : vector<8x8x32xf32> to vector<8x32xf32>
    %284 = arith.index_cast %c5_i32 : i32 to index
    %c0_96 = arith.constant 0 : index
    %c0_97 = arith.constant 0 : index
    %285 = vector.load %arg3[%284, %c0_96, %c0_97] : memref<8x8x1xf32, #tpu.memory_space<vmem>>, vector<1x8x1xf32>
    %286 = vector.shape_cast %285 : vector<1x8x1xf32> to vector<8x1xf32>
    %cst_98 = arith.constant dense<0.000000e+00> : vector<8x128xf32>
    %287 = tpu.matmul %283, %8, %cst_98 {dimension_numbers = #tpu.dot_dimension_numbers<[1], [0], [0], [1], [0, 0, 1, 1], [], []>} : vector<8x32xf32>, vector<32x128xf32>, vector<8x128xf32> -> vector<8x128xf32>
    %cst_99 = arith.constant dense<0.000000e+00> : vector<8x128xf32>
    %288 = tpu.matmul %264, %7, %cst_99 {dimension_numbers = #tpu.dot_dimension_numbers<[1], [0], [0], [1], [0, 0, 1, 1], [], []>} : vector<8x32xf32>, vector<32x128xf32>, vector<8x128xf32> -> vector<8x128xf32>
    %289 = arith.addf %287, %288 : vector<8x128xf32>
    %290 = vector.broadcast %286 : vector<8x1xf32> to vector<8x128xf32>
    %291 = vector.broadcast %9 : vector<1x128xf32> to vector<8x128xf32>
    %292 = arith.mulf %290, %291 : vector<8x128xf32>
    %293 = arith.addf %289, %292 : vector<8x128xf32>
    %294 = vector.broadcast %10 : vector<1x128xf32> to vector<8x128xf32>
    %295 = arith.addf %293, %294 : vector<8x128xf32>
    %296 = arith.negf %295 : vector<8x128xf32>
    %297 = math.exp %296 : vector<8x128xf32>
    %cst_100 = arith.constant 1.000000e+00 : f32
    %298 = vector.broadcast %cst_100 : f32 to vector<8x128xf32>
    %299 = arith.addf %298, %297 : vector<8x128xf32>
    %300 = arith.divf %298, %299 : vector<8x128xf32>
    %301 = vector.extract_strided_slice %300 {offsets = [0, 0], sizes = [8, 32], strides = [1, 1]} : vector<8x128xf32> to vector<8x32xf32>
    %302 = vector.extract_strided_slice %300 {offsets = [0, 32], sizes = [8, 32], strides = [1, 1]} : vector<8x128xf32> to vector<8x32xf32>
    %303 = vector.extract_strided_slice %300 {offsets = [0, 96], sizes = [8, 32], strides = [1, 1]} : vector<8x128xf32> to vector<8x32xf32>
    %304 = vector.extract_strided_slice %300 {offsets = [0, 64], sizes = [8, 32], strides = [1, 1]} : vector<8x128xf32> to vector<8x32xf32>
    %cst_101 = arith.constant 2.000000e+00 : f32
    %305 = vector.broadcast %cst_101 : f32 to vector<8x32xf32>
    %306 = arith.mulf %305, %304 : vector<8x32xf32>
    %cst_102 = arith.constant 1.000000e+00 : f32
    %307 = vector.broadcast %cst_102 : f32 to vector<8x32xf32>
    %308 = arith.subf %306, %307 : vector<8x32xf32>
    %309 = arith.mulf %302, %262 : vector<8x32xf32>
    %310 = arith.mulf %301, %308 : vector<8x32xf32>
    %311 = arith.addf %309, %310 : vector<8x32xf32>
    %312 = math.tanh %311 : vector<8x32xf32>
    %313 = arith.mulf %303, %312 : vector<8x32xf32>
    %c6_i32 = arith.constant 6 : i32
    %cst_103 = arith.constant dense<0.000000e+00> : vector<8x256xf32>
    %314 = tpu.matmul %313, %4, %cst_103 {dimension_numbers = #tpu.dot_dimension_numbers<[1], [0], [0], [1], [0, 0, 1, 1], [], []>} : vector<8x32xf32>, vector<32x256xf32>, vector<8x256xf32> -> vector<8x256xf32>
    %cst_104 = arith.constant dense<0.000000e+00> : vector<8x256xf32>
    %315 = tpu.matmul %311, %5, %cst_104 {dimension_numbers = #tpu.dot_dimension_numbers<[1], [0], [0], [1], [0, 0, 1, 1], [], []>} : vector<8x32xf32>, vector<32x256xf32>, vector<8x256xf32> -> vector<8x256xf32>
    %316 = arith.addf %314, %315 : vector<8x256xf32>
    %317 = arith.addf %16, %316 : vector<8x256xf32>
    %318 = math.tanh %317 : vector<8x256xf32>
    %cst_105 = arith.constant dense<0.000000e+00> : vector<8x8xf32>
    %319 = tpu.matmul %318, %6, %cst_105 {dimension_numbers = #tpu.dot_dimension_numbers<[1], [0], [0], [1], [0, 0, 1, 1], [], []>} : vector<8x256xf32>, vector<256x8xf32>, vector<8x8xf32> -> vector<8x8xf32>
    %cst_106 = arith.constant dense<0xFF800000> : vector<8xf32>
    %320 = vector.multi_reduction <maximumf>, %319, %cst_106 [1] : vector<8x8xf32> to vector<8xf32>
    %321 = vector.shape_cast %320 : vector<8xf32> to vector<8x1xf32>
    %322 = vector.broadcast %321 : vector<8x1xf32> to vector<8x8xf32>
    %323 = arith.subf %319, %322 : vector<8x8xf32>
    %324 = math.exp %323 : vector<8x8xf32>
    %cst_107 = arith.constant dense<0.000000e+00> : vector<8xf32>
    %325 = vector.multi_reduction <add>, %324, %cst_107 [1] : vector<8x8xf32> to vector<8xf32>
    %326 = vector.shape_cast %325 : vector<8xf32> to vector<8x1xf32>
    %327 = vector.broadcast %326 : vector<8x1xf32> to vector<8x8xf32>
    %328 = arith.divf %324, %327 : vector<8x8xf32>
    %329 = vector.shape_cast %328 : vector<8x8xf32> to vector<8x8x1xf32>
    %330 = vector.broadcast %329 : vector<8x8x1xf32> to vector<8x8x32xf32>
    %331 = arith.mulf %330, %0 : vector<8x8x32xf32>
    %cst_108 = arith.constant dense<0.000000e+00> : vector<8x32xf32>
    %332 = vector.multi_reduction <add>, %331, %cst_108 [1] : vector<8x8x32xf32> to vector<8x32xf32>
    %333 = arith.index_cast %c6_i32 : i32 to index
    %c0_109 = arith.constant 0 : index
    %c0_110 = arith.constant 0 : index
    %334 = vector.load %arg3[%333, %c0_109, %c0_110] : memref<8x8x1xf32, #tpu.memory_space<vmem>>, vector<1x8x1xf32>
    %335 = vector.shape_cast %334 : vector<1x8x1xf32> to vector<8x1xf32>
    %cst_111 = arith.constant dense<0.000000e+00> : vector<8x128xf32>
    %336 = tpu.matmul %332, %8, %cst_111 {dimension_numbers = #tpu.dot_dimension_numbers<[1], [0], [0], [1], [0, 0, 1, 1], [], []>} : vector<8x32xf32>, vector<32x128xf32>, vector<8x128xf32> -> vector<8x128xf32>
    %cst_112 = arith.constant dense<0.000000e+00> : vector<8x128xf32>
    %337 = tpu.matmul %313, %7, %cst_112 {dimension_numbers = #tpu.dot_dimension_numbers<[1], [0], [0], [1], [0, 0, 1, 1], [], []>} : vector<8x32xf32>, vector<32x128xf32>, vector<8x128xf32> -> vector<8x128xf32>
    %338 = arith.addf %336, %337 : vector<8x128xf32>
    %339 = vector.broadcast %335 : vector<8x1xf32> to vector<8x128xf32>
    %340 = vector.broadcast %9 : vector<1x128xf32> to vector<8x128xf32>
    %341 = arith.mulf %339, %340 : vector<8x128xf32>
    %342 = arith.addf %338, %341 : vector<8x128xf32>
    %343 = vector.broadcast %10 : vector<1x128xf32> to vector<8x128xf32>
    %344 = arith.addf %342, %343 : vector<8x128xf32>
    %345 = arith.negf %344 : vector<8x128xf32>
    %346 = math.exp %345 : vector<8x128xf32>
    %cst_113 = arith.constant 1.000000e+00 : f32
    %347 = vector.broadcast %cst_113 : f32 to vector<8x128xf32>
    %348 = arith.addf %347, %346 : vector<8x128xf32>
    %349 = arith.divf %347, %348 : vector<8x128xf32>
    %350 = vector.extract_strided_slice %349 {offsets = [0, 0], sizes = [8, 32], strides = [1, 1]} : vector<8x128xf32> to vector<8x32xf32>
    %351 = vector.extract_strided_slice %349 {offsets = [0, 32], sizes = [8, 32], strides = [1, 1]} : vector<8x128xf32> to vector<8x32xf32>
    %352 = vector.extract_strided_slice %349 {offsets = [0, 96], sizes = [8, 32], strides = [1, 1]} : vector<8x128xf32> to vector<8x32xf32>
    %353 = vector.extract_strided_slice %349 {offsets = [0, 64], sizes = [8, 32], strides = [1, 1]} : vector<8x128xf32> to vector<8x32xf32>
    %cst_114 = arith.constant 2.000000e+00 : f32
    %354 = vector.broadcast %cst_114 : f32 to vector<8x32xf32>
    %355 = arith.mulf %354, %353 : vector<8x32xf32>
    %cst_115 = arith.constant 1.000000e+00 : f32
    %356 = vector.broadcast %cst_115 : f32 to vector<8x32xf32>
    %357 = arith.subf %355, %356 : vector<8x32xf32>
    %358 = arith.mulf %351, %311 : vector<8x32xf32>
    %359 = arith.mulf %350, %357 : vector<8x32xf32>
    %360 = arith.addf %358, %359 : vector<8x32xf32>
    %361 = math.tanh %360 : vector<8x32xf32>
    %362 = arith.mulf %352, %361 : vector<8x32xf32>
    %c7_i32 = arith.constant 7 : i32
    %cst_116 = arith.constant dense<0.000000e+00> : vector<8x256xf32>
    %363 = tpu.matmul %362, %4, %cst_116 {dimension_numbers = #tpu.dot_dimension_numbers<[1], [0], [0], [1], [0, 0, 1, 1], [], []>} : vector<8x32xf32>, vector<32x256xf32>, vector<8x256xf32> -> vector<8x256xf32>
    %cst_117 = arith.constant dense<0.000000e+00> : vector<8x256xf32>
    %364 = tpu.matmul %360, %5, %cst_117 {dimension_numbers = #tpu.dot_dimension_numbers<[1], [0], [0], [1], [0, 0, 1, 1], [], []>} : vector<8x32xf32>, vector<32x256xf32>, vector<8x256xf32> -> vector<8x256xf32>
    %365 = arith.addf %363, %364 : vector<8x256xf32>
    %366 = arith.addf %16, %365 : vector<8x256xf32>
    %367 = math.tanh %366 : vector<8x256xf32>
    %cst_118 = arith.constant dense<0.000000e+00> : vector<8x8xf32>
    %368 = tpu.matmul %367, %6, %cst_118 {dimension_numbers = #tpu.dot_dimension_numbers<[1], [0], [0], [1], [0, 0, 1, 1], [], []>} : vector<8x256xf32>, vector<256x8xf32>, vector<8x8xf32> -> vector<8x8xf32>
    %cst_119 = arith.constant dense<0xFF800000> : vector<8xf32>
    %369 = vector.multi_reduction <maximumf>, %368, %cst_119 [1] : vector<8x8xf32> to vector<8xf32>
    %370 = vector.shape_cast %369 : vector<8xf32> to vector<8x1xf32>
    %371 = vector.broadcast %370 : vector<8x1xf32> to vector<8x8xf32>
    %372 = arith.subf %368, %371 : vector<8x8xf32>
    %373 = math.exp %372 : vector<8x8xf32>
    %cst_120 = arith.constant dense<0.000000e+00> : vector<8xf32>
    %374 = vector.multi_reduction <add>, %373, %cst_120 [1] : vector<8x8xf32> to vector<8xf32>
    %375 = vector.shape_cast %374 : vector<8xf32> to vector<8x1xf32>
    %376 = vector.broadcast %375 : vector<8x1xf32> to vector<8x8xf32>
    %377 = arith.divf %373, %376 : vector<8x8xf32>
    %378 = vector.shape_cast %377 : vector<8x8xf32> to vector<8x8x1xf32>
    %379 = vector.broadcast %378 : vector<8x8x1xf32> to vector<8x8x32xf32>
    %380 = arith.mulf %379, %0 : vector<8x8x32xf32>
    %cst_121 = arith.constant dense<0.000000e+00> : vector<8x32xf32>
    %381 = vector.multi_reduction <add>, %380, %cst_121 [1] : vector<8x8x32xf32> to vector<8x32xf32>
    %382 = arith.index_cast %c7_i32 : i32 to index
    %c0_122 = arith.constant 0 : index
    %c0_123 = arith.constant 0 : index
    %383 = vector.load %arg3[%382, %c0_122, %c0_123] : memref<8x8x1xf32, #tpu.memory_space<vmem>>, vector<1x8x1xf32>
    %384 = vector.shape_cast %383 : vector<1x8x1xf32> to vector<8x1xf32>
    %cst_124 = arith.constant dense<0.000000e+00> : vector<8x128xf32>
    %385 = tpu.matmul %381, %8, %cst_124 {dimension_numbers = #tpu.dot_dimension_numbers<[1], [0], [0], [1], [0, 0, 1, 1], [], []>} : vector<8x32xf32>, vector<32x128xf32>, vector<8x128xf32> -> vector<8x128xf32>
    %cst_125 = arith.constant dense<0.000000e+00> : vector<8x128xf32>
    %386 = tpu.matmul %362, %7, %cst_125 {dimension_numbers = #tpu.dot_dimension_numbers<[1], [0], [0], [1], [0, 0, 1, 1], [], []>} : vector<8x32xf32>, vector<32x128xf32>, vector<8x128xf32> -> vector<8x128xf32>
    %387 = arith.addf %385, %386 : vector<8x128xf32>
    %388 = vector.broadcast %384 : vector<8x1xf32> to vector<8x128xf32>
    %389 = vector.broadcast %9 : vector<1x128xf32> to vector<8x128xf32>
    %390 = arith.mulf %388, %389 : vector<8x128xf32>
    %391 = arith.addf %387, %390 : vector<8x128xf32>
    %392 = vector.broadcast %10 : vector<1x128xf32> to vector<8x128xf32>
    %393 = arith.addf %391, %392 : vector<8x128xf32>
    %394 = arith.negf %393 : vector<8x128xf32>
    %395 = math.exp %394 : vector<8x128xf32>
    %cst_126 = arith.constant 1.000000e+00 : f32
    %396 = vector.broadcast %cst_126 : f32 to vector<8x128xf32>
    %397 = arith.addf %396, %395 : vector<8x128xf32>
    %398 = arith.divf %396, %397 : vector<8x128xf32>
    %399 = vector.extract_strided_slice %398 {offsets = [0, 0], sizes = [8, 32], strides = [1, 1]} : vector<8x128xf32> to vector<8x32xf32>
    %400 = vector.extract_strided_slice %398 {offsets = [0, 32], sizes = [8, 32], strides = [1, 1]} : vector<8x128xf32> to vector<8x32xf32>
    %401 = vector.extract_strided_slice %398 {offsets = [0, 96], sizes = [8, 32], strides = [1, 1]} : vector<8x128xf32> to vector<8x32xf32>
    %402 = vector.extract_strided_slice %398 {offsets = [0, 64], sizes = [8, 32], strides = [1, 1]} : vector<8x128xf32> to vector<8x32xf32>
    %cst_127 = arith.constant 2.000000e+00 : f32
    %403 = vector.broadcast %cst_127 : f32 to vector<8x32xf32>
    %404 = arith.mulf %403, %402 : vector<8x32xf32>
    %cst_128 = arith.constant 1.000000e+00 : f32
    %405 = vector.broadcast %cst_128 : f32 to vector<8x32xf32>
    %406 = arith.subf %404, %405 : vector<8x32xf32>
    %407 = arith.mulf %400, %360 : vector<8x32xf32>
    %408 = arith.mulf %399, %406 : vector<8x32xf32>
    %409 = arith.addf %407, %408 : vector<8x32xf32>
    %410 = math.tanh %409 : vector<8x32xf32>
    %411 = arith.mulf %401, %410 : vector<8x32xf32>
    %c8_i32 = arith.constant 8 : i32
    %cst_129 = arith.constant dense<0.000000e+00> : vector<8x4xf32>
    %412 = tpu.matmul %411, %11, %cst_129 {dimension_numbers = #tpu.dot_dimension_numbers<[1], [0], [0], [1], [0, 0, 1, 1], [], []>} : vector<8x32xf32>, vector<32x4xf32>, vector<8x4xf32> -> vector<8x4xf32>
    %cst_130 = arith.constant dense<0.000000e+00> : vector<8x4xf32>
    %413 = tpu.matmul %381, %12, %cst_130 {dimension_numbers = #tpu.dot_dimension_numbers<[1], [0], [0], [1], [0, 0, 1, 1], [], []>} : vector<8x32xf32>, vector<32x4xf32>, vector<8x4xf32> -> vector<8x4xf32>
    %414 = arith.addf %412, %413 : vector<8x4xf32>
    %415 = vector.broadcast %13 : vector<1x4xf32> to vector<8x4xf32>
    %416 = arith.addf %414, %415 : vector<8x4xf32>
    %c0_131 = arith.constant 0 : index
    %c0_132 = arith.constant 0 : index
    %417 = vector.load %arg8[%c0_131, %c0_132] : memref<8x4xf32, #tpu.memory_space<vmem>>, vector<8x4xf32>
    tpu.vector_store %arg8[%c0_131, %c0_132], %416 {strides = array<i32>} : memref<8x4xf32, #tpu.memory_space<vmem>>, vector<8x4xf32>,
    return
  }
  func.func @transform_0(%arg0: i32) -> (i32, i32, i32) {
    %c0_i32 = arith.constant 0 : i32
    %c0_i32_0 = arith.constant 0 : i32
    %c0_i32_1 = arith.constant 0 : i32
    return %arg0, %c0_i32, %c0_i32_0 : i32, i32, i32
  }
  func.func @transform_1(%arg0: i32) -> (i32, i32) {
    %c0_i32 = arith.constant 0 : i32
    %c0_i32_0 = arith.constant 0 : i32
    return %arg0, %c0_i32 : i32, i32
  }
  func.func @transform_2(%arg0: i32) -> (i32, i32, i32) {
    %c0_i32 = arith.constant 0 : i32
    %c0_i32_0 = arith.constant 0 : i32
    %c0_i32_1 = arith.constant 0 : i32
    return %c0_i32, %arg0, %c0_i32_0 : i32, i32, i32
  }
  func.func @transform_3(%arg0: i32) -> (i32, i32) {
    %c0_i32 = arith.constant 0 : i32
    %c0_i32_0 = arith.constant 0 : i32
    %c0_i32_1 = arith.constant 0 : i32
    return %c0_i32, %c0_i32_0 : i32, i32
  }
  func.func @transform_4(%arg0: i32) -> (i32, i32) {
    %c0_i32 = arith.constant 0 : i32
    %c0_i32_0 = arith.constant 0 : i32
    %c0_i32_1 = arith.constant 0 : i32
    return %c0_i32, %c0_i32_0 : i32, i32
  }
  func.func @transform_5(%arg0: i32) -> (i32, i32) {
    %c0_i32 = arith.constant 0 : i32
    %c0_i32_0 = arith.constant 0 : i32
    %c0_i32_1 = arith.constant 0 : i32
    return %c0_i32, %c0_i32_0 : i32, i32
  }
  func.func @transform_6(%arg0: i32) -> (i32, i32) {
    %c0_i32 = arith.constant 0 : i32
    %c0_i32_0 = arith.constant 0 : i32
    %c0_i32_1 = arith.constant 0 : i32
    return %c0_i32, %c0_i32_0 : i32, i32
  }
  func.func @transform_7(%arg0: i32) -> (i32, i32) {
    %c0_i32 = arith.constant 0 : i32
    %c0_i32_0 = arith.constant 0 : i32
    return %arg0, %c0_i32 : i32, i32
  }
}

</mosaic_0001>

<llo_original>
// kernel: tpu_custom_call.1
$region0: #{tpu_custom_call.1}
  #allocation0 [shape = 'u32[]', space=smem, size = 0x4, offset = 0x4, fixed_abs, tag = 'smem constant byte address 0x4 - core index']
  #allocation1 [shape = 'u32[144,128]{1,0:T(1,128)}', space=vmem, size = 0x12000, scoped, tag = 'internal scratch']
  %s0 = inlined_call_operand.vmem [shape: f32[8,8,32], index: 0, kind: input, shape index: {}]
  %s1 = inlined_call_operand.vmem [shape: f32[8,256], index: 1, kind: input, shape index: {}]
  %s2 = inlined_call_operand.vmem [shape: f32[8,8,1], index: 2, kind: input, shape index: {}]
  %s3 = inlined_call_operand.hbm [shape: f32[321,256], index: 3, kind: input, shape index: {}]
  %s4 = inlined_call_operand.vmem [shape: f32[256,8], index: 4, kind: input, shape index: {}]
  %s5 = inlined_call_operand.vmem [shape: f32[66,128], index: 5, kind: input, shape index: {}]
  %s6 = inlined_call_operand.vmem [shape: f32[65,4], index: 6, kind: input, shape index: {}]
  %s7 = inlined_call_operand.vmem [shape: f32[8,4], index: 7, kind: output, shape index: {}]
  %s8 = sld [smem:[#allocation0]]
  $region42: #{tpu_custom_call.1} parent=0
    _
  %s10 = ssub.s32 1, %s8
  %s11 = scalar_select 0, %s10, %s8
  $region1: #{tpu_custom_call.1} parent=0
    #allocation2 [shape = 'u8[335872]{0}', space=vmem, size = 0x52000, scoped, tag = 'input window, operand 3, single buffered']
    #allocation3 [shape = 's32[1]{0}', space=sflag, size = 0x4, scoped, tag = 'scoped memory for tpu_custom_call.1']
    %12 = vsyncpa [#allocation3], 0
    // Predicated region
    $region2: #{tpu_custom_call.1} parent=1 // pred_check
      _
    $region3: #{tpu_custom_call.1} parent=1 // pred_check_branch
      %14 = sbr.rel (0) target = $region5
    $region4: #{tpu_custom_call.1} parent=1 // pred_region
      _
    $region5: #{tpu_custom_call.1} parent=1 // pred_fallthru
      _
    // Predicated region
    $region6: #{tpu_custom_call.1} parent=1 // pred_check
      _
    $region7: #{tpu_custom_call.1} parent=1 // pred_check_branch
      %16 = sbr.rel (0) target = $region9
    $region8: #{tpu_custom_call.1} parent=1 // pred_region
      _
    $region9: #{tpu_custom_call.1} parent=1 // pred_fallthru
      _
    // Predicated region
    $region10: #{tpu_custom_call.1} parent=1 // pred_check
      _
    $region11: #{tpu_custom_call.1} parent=1 // pred_check_branch
      %18 = sbr.rel (0) target = $region13
    $region12: #{tpu_custom_call.1} parent=1 // pred_region
      _
    $region13: #{tpu_custom_call.1} parent=1 // pred_fallthru
      _
    // Predicated region
    $region14: #{tpu_custom_call.1} parent=1 // pred_check
      _
    $region15: #{tpu_custom_call.1} parent=1 // pred_check_branch
      %20 = sbr.rel (0) target = $region17
    $region16: #{tpu_custom_call.1} parent=1 // pred_region
      %s22 = ssub.s32 10496, 10496
      %23 = vsyncadd [#allocation3], %s22
      %s24 = sshll.u32 [#allocation2], 4
      %s25 = int_to_ptr.vmem [resolvable:$true] %s24
      %30 = dma.hbm_to_vmem [thread:$0]  %s3, 10496, %s25, [#allocation3], 256, 256, 16
    $region17: #{tpu_custom_call.1} parent=1 // pred_fallthru
      _
    // Predicated region
    $region18: #{tpu_custom_call.1} parent=1 // pred_check
      _
    $region19: #{tpu_custom_call.1} parent=1 // pred_check_branch
      %32 = sbr.rel (0) target = $region21
    $region20: #{tpu_custom_call.1} parent=1 // pred_region
      _
    $region21: #{tpu_custom_call.1} parent=1 // pred_fallthru
      _
    // Predicated region
    $region22: #{tpu_custom_call.1} parent=1 // pred_check
      _
    $region23: #{tpu_custom_call.1} parent=1 // pred_check_branch
      %34 = sbr.rel (0) target = $region25
    $region24: #{tpu_custom_call.1} parent=1 // pred_region
      _
    $region25: #{tpu_custom_call.1} parent=1 // pred_fallthru
      _
    // Predicated region
    $region26: #{tpu_custom_call.1} parent=1 // pred_check
      _
    $region27: #{tpu_custom_call.1} parent=1 // pred_check_branch
      %36 = sbr.rel (0) target = $region29
    $region28: #{tpu_custom_call.1} parent=1 // pred_region
      _
    $region29: #{tpu_custom_call.1} parent=1 // pred_fallthru
      _
    // Predicated region
    $region30: #{tpu_custom_call.1} parent=1 // pred_check
      _
    $region31: #{tpu_custom_call.1} parent=1 // pred_check_branch
      %38 = sbr.rel (0) target = $region33
    $region32: #{tpu_custom_call.1} parent=1 // pred_region
      %39 = dma.done [#allocation3], 10496
    $region33: #{tpu_custom_call.1} parent=1 // pred_fallthru
      _
    %v40 = vld [vmem:[%s0] sm:$0xff]
    %v41 = vld [vmem:[%s0 + $0x8] sm:$0xff]
    %v42 = vld [vmem:[%s0 + $0x10] sm:$0xff]
    %v43 = vld [vmem:[%s0 + $0x18] sm:$0xff]
    %v44 = vld [vmem:[%s0 + $0x20] sm:$0xff]
    %v45 = vld [vmem:[%s0 + $0x28] sm:$0xff]
    %v46 = vld [vmem:[%s0 + $0x30] sm:$0xff]
    %v47 = vld [vmem:[%s0 + $0x38] sm:$0xff]
    %v48 = vld [vmem:[%s1] sm:$0xff]
    %v49 = vld [vmem:[%s1 + $0x8] sm:$0xff]
    %v50 = vld [vmem:[#allocation2] sm:$0xff]
    %v51 = vld [vmem:[#allocation2 + $0x8] sm:$0xff]
    %v52 = vld [vmem:[#allocation2 + $0x10] sm:$0xff]
    %v53 = vld [vmem:[#allocation2 + $0x18] sm:$0xff]
    %v54 = vld [vmem:[#allocation2 + $0x20] sm:$0xff]
    %v55 = vld [vmem:[#allocation2 + $0x28] sm:$0xff]
    %v56 = vld [vmem:[#allocation2 + $0x30] sm:$0xff]
    %v57 = vld [vmem:[#allocation2 + $0x38] sm:$0xff]
    %v58 = vld [vmem:[#allocation2 + $0x40] sm:$0xff]
    %v59 = vld [vmem:[#allocation2 + $0x48] sm:$0xff]
    %v60 = vld [vmem:[#allocation2 + $0x50] sm:$0xff]
    %v61 = vld [vmem:[#allocation2 + $0x58] sm:$0xff]
    %v62 = vld [vmem:[#allocation2 + $0x60] sm:$0xff]
    %v63 = vld [vmem:[#allocation2 + $0x68] sm:$0xff]
    %v64 = vld [vmem:[#allocation2 + $0x70] sm:$0xff]
    %v65 = vld [vmem:[#allocation2 + $0x78] sm:$0xff]
    %v66 = vld [vmem:[#allocation2 + $0x80] sm:$0xff]
    %v67 = vld [vmem:[#allocation2 + $0x88] sm:$0xff]
    %v68 = vld [vmem:[#allocation2 + $0x90] sm:$0xff]
    %v69 = vld [vmem:[#allocation2 + $0x98] sm:$0xff]
    %v70 = vld [vmem:[#allocation2 + $0xa0] sm:$0xff]
    %v71 = vld [vmem:[#allocation2 + $0xa8] sm:$0xff]
    %v72 = vld [vmem:[#allocation2 + $0xb0] sm:$0xff]
    %v73 = vld [vmem:[#allocation2 + $0xb8] sm:$0xff]
    %v74 = vld [vmem:[#allocation2 + $0xc0] sm:$0xff]
    %v75 = vld [vmem:[#allocation2 + $0xc8] sm:$0xff]
    %v76 = vld [vmem:[#allocation2 + $0xd0] sm:$0xff]
    %v77 = vld [vmem:[#allocation2 + $0xd8] sm:$0xff]
    %v78 = vld [vmem:[#allocation2 + $0xe0] sm:$0xff]
    %v79 = vld [vmem:[#allocation2 + $0xe8] sm:$0xff]
    %v80 = vld [vmem:[#allocation2 + $0xf0] sm:$0xff]
    %v81 = vld [vmem:[#allocation2 + $0xf8] sm:$0xff]
    %v82 = vld [vmem:[#allocation2 + $0x100] sm:$0xff]
    %v83 = vld [vmem:[#allocation2 + $0x108] sm:$0xff]
    %v84 = vld [vmem:[#allocation2 + $0x110] sm:$0xff]
    %v85 = vld [vmem:[#allocation2 + $0x118] sm:$0xff]
    %v86 = vld [vmem:[#allocation2 + $0x120] sm:$0xff]
    %v87 = vld [vmem:[#allocation2 + $0x128] sm:$0xff]
    %v88 = vld [vmem:[#allocation2 + $0x130] sm:$0xff]
    %v89 = vld [vmem:[#allocation2 + $0x138] sm:$0xff]
    %v90 = vld [vmem:[#allocation2 + $0x140] sm:$0xff]
    %v91 = vld [vmem:[#allocation2 + $0x148] sm:$0xff]
    %v92 = vld [vmem:[#allocation2 + $0x150] sm:$0xff]
    %v93 = vld [vmem:[#allocation2 + $0x158] sm:$0xff]
    %v94 = vld [vmem:[#allocation2 + $0x160] sm:$0xff]
    %v95 = vld [vmem:[#allocation2 + $0x168] sm:$0xff]
    %v96 = vld [vmem:[#allocation2 + $0x170] sm:$0xff]
    %v97 = vld [vmem:[#allocation2 + $0x178] sm:$0xff]
    %v98 = vld [vmem:[#allocation2 + $0x180] sm:$0xff]
    %v99 = vld [vmem:[#allocation2 + $0x188] sm:$0xff]
    %v100 = vld [vmem:[#allocation2 + $0x190] sm:$0xff]
    %v101 = vld [vmem:[#allocation2 + $0x198] sm:$0xff]
    %v102 = vld [vmem:[#allocation2 + $0x1a0] sm:$0xff]
    %v103 = vld [vmem:[#allocation2 + $0x1a8] sm:$0xff]
    %v104 = vld [vmem:[#allocation2 + $0x1b0] sm:$0xff]
    %v105 = vld [vmem:[#allocation2 + $0x1b8] sm:$0xff]
    %v106 = vld [vmem:[#allocation2 + $0x1c0] sm:$0xff]
    %v107 = vld [vmem:[#allocation2 + $0x1c8] sm:$0xff]
    %v108 = vld [vmem:[#allocation2 + $0x1d0] sm:$0xff]
    %v109 = vld [vmem:[#allocation2 + $0x1d8] sm:$0xff]
    %v110 = vld [vmem:[#allocation2 + $0x1e0] sm:$0xff]
    %v111 = vld [vmem:[#allocation2 + $0x1e8] sm:$0xff]
    %v112 = vld [vmem:[#allocation2 + $0x1f0] sm:$0xff]
    %v113 = vld [vmem:[#allocation2 + $0x1f8] sm:$0xff]
    %s114 = scalar_lea.vmem [#allocation2], 512
    %v115 = vld [vmem:[%s114] ss:$8 sm:$0x3]
    %v116 = vld [vmem:[#allocation2 + $0x200] sm:$0xfe]
    %v117 = vld [vmem:[#allocation2 + $0x208] sm:$0xfe]
    %v118 = vld [vmem:[#allocation2 + $0x210] sm:$0xff]
    %v119 = vld [vmem:[#allocation2 + $0x218] sm:$0xff]
    %v120 = vld [vmem:[#allocation2 + $0x220] sm:$0xff]
    %v121 = vld [vmem:[#allocation2 + $0x228] sm:$0xff]
    %v122 = vld [vmem:[#allocation2 + $0x230] sm:$0xff]
    %v123 = vld [vmem:[#allocation2 + $0x238] sm:$0xff]
    %v124 = vld [vmem:[#allocation2 + $0x240] sm:$0x1]
    %v125 = vld [vmem:[#allocation2 + $0x248] sm:$0x1]
    %v126 = vld [vmem:[#allocation2 + $0x240] sm:$0xfe]
    %v127 = vld [vmem:[#allocation2 + $0x248] sm:$0xfe]
    %v128 = vld [vmem:[#allocation2 + $0x250] sm:$0xff]
    %v129 = vld [vmem:[#allocation2 + $0x258] sm:$0xff]
    %v130 = vld [vmem:[#allocation2 + $0x260] sm:$0xff]
    %v131 = vld [vmem:[#allocation2 + $0x268] sm:$0xff]
    %v132 = vld [vmem:[#allocation2 + $0x270] sm:$0xff]
    %v133 = vld [vmem:[#allocation2 + $0x278] sm:$0xff]
    %v134 = vld [vmem:[#allocation2 + $0x280] sm:$0x1]
    %v135 = vld [vmem:[#allocation2 + $0x288] sm:$0x1]
    %v136 = vld [vmem:[%s4] sm:$0xff]
    %v137 = vld [vmem:[%s4 + $0x8] sm:$0xff]
    %v138 = vld [vmem:[%s4 + $0x10] sm:$0xff]
    %v139 = vld [vmem:[%s4 + $0x18] sm:$0xff]
    %v140 = vld [vmem:[%s4 + $0x20] sm:$0xff]
    %v141 = vld [vmem:[%s4 + $0x28] sm:$0xff]
    %v142 = vld [vmem:[%s4 + $0x30] sm:$0xff]
    %v143 = vld [vmem:[%s4 + $0x38] sm:$0xff]
    %v144 = vld [vmem:[%s4 + $0x40] sm:$0xff]
    %v145 = vld [vmem:[%s4 + $0x48] sm:$0xff]
    %v146 = vld [vmem:[%s4 + $0x50] sm:$0xff]
    %v147 = vld [vmem:[%s4 + $0x58] sm:$0xff]
    %v148 = vld [vmem:[%s4 + $0x60] sm:$0xff]
    %v149 = vld [vmem:[%s4 + $0x68] sm:$0xff]
    %v150 = vld [vmem:[%s4 + $0x70] sm:$0xff]
    %v151 = vld [vmem:[%s4 + $0x78] sm:$0xff]
    %v152 = vld [vmem:[%s4 + $0x80] sm:$0xff]
    %v153 = vld [vmem:[%s4 + $0x88] sm:$0xff]
    %v154 = vld [vmem:[%s4 + $0x90] sm:$0xff]
    %v155 = vld [vmem:[%s4 + $0x98] sm:$0xff]
    %v156 = vld [vmem:[%s4 + $0xa0] sm:$0xff]
    %v157 = vld [vmem:[%s4 + $0xa8] sm:$0xff]
    %v158 = vld [vmem:[%s4 + $0xb0] sm:$0xff]
    %v159 = vld [vmem:[%s4 + $0xb8] sm:$0xff]
    %v160 = vld [vmem:[%s4 + $0xc0] sm:$0xff]
    %v161 = vld [vmem:[%s4 + $0xc8] sm:$0xff]
    %v162 = vld [vmem:[%s4 + $0xd0] sm:$0xff]
    %v163 = vld [vmem:[%s4 + $0xd8] sm:$0xff]
    %v164 = vld [vmem:[%s4 + $0xe0] sm:$0xff]
    %v165 = vld [vmem:[%s4 + $0xe8] sm:$0xff]
    %v166 = vld [vmem:[%s4 + $0xf0] sm:$0xff]
    %v167 = vld [vmem:[%s4 + $0xf8] sm:$0xff]
    %v168 = vld [vmem:[%s5] sm:$0xff]
    %v169 = vld [vmem:[%s5 + $0x8] sm:$0xff]
    %v170 = vld [vmem:[%s5 + $0x10] sm:$0xff]
    %v171 = vld [vmem:[%s5 + $0x18] sm:$0xff]
    %v172 = vld [vmem:[%s5 + $0x20] sm:$0xff]
    %v173 = vld [vmem:[%s5 + $0x28] sm:$0xff]
    %v174 = vld [vmem:[%s5 + $0x30] sm:$0xff]
    %v175 = vld [vmem:[%s5 + $0x38] sm:$0xff]
    %v176 = vld [vmem:[%s5 + $0x40] sm:$0x1]
    %v177 = vld [vmem:[%s5 + $0x41] sm:$0x1]
    %v178 = vld [vmem:[%s6] sm:$0xff]
    %v179 = vld [vmem:[%s6 + $0x8] sm:$0xff]
    %v180 = vld [vmem:[%s6 + $0x10] sm:$0xff]
    %v181 = vld [vmem:[%s6 + $0x18] sm:$0xff]
    %v182 = vld [vmem:[%s6 + $0x20] sm:$0xff]
    %v183 = vld [vmem:[%s6 + $0x28] sm:$0xff]
    %v184 = vld [vmem:[%s6 + $0x30] sm:$0xff]
    %v185 = vld [vmem:[%s6 + $0x38] sm:$0xff]
    %v186 = vld [vmem:[%s6 + $0x40] sm:$0x1]
    %v188 = vlaneseq
    %v189 = vshrl.u32 %v188, 7
    %v190 = vsub.s32 0, %v189
    %v191 = vrot.slane %v115, %v190
    %v192 = vlaneseq
    %v193 = vshrl.u32 %v192, 7
    %v194 = vsub.s32 1, %v193
    %v195 = vrot.slane %v115, %v194
    %198 = vmatprep.subr.mxu0 %v51
    %199 = vmatpush1.msra.mxu0 %v50
    %200 = vmatprep.subr.mxu0 %v53
    %201 = vmatpush1.msra.mxu0 %v52
    %202 = vmatprep.subr.mxu0 %v55
    %203 = vmatpush1.msra.mxu0 %v54
    %204 = vmatprep.subr.mxu0 %v57
    %205 = vmatpush1.msra.mxu0 %v56
    %206 = vmatprep.subr.mxu0 %v59
    %207 = vmatpush1.msra.mxu0 %v58
    %208 = vmatprep.subr.mxu0 %v61
    %209 = vmatpush1.msra.mxu0 %v60
    %210 = vmatprep.subr.mxu0 %v63
    %211 = vmatpush1.msra.mxu0 %v62
    %212 = vmatprep.subr.mxu0 %v65
    %213 = vmatpush1.msra.mxu0 %v64
    %214 = vmatprep.subr.mxu0 %v67
    %215 = vmatpush1.msra.mxu0 %v66
    %216 = vmatprep.subr.mxu0 %v69
    %217 = vmatpush1.msra.mxu0 %v68
    %218 = vmatprep.subr.mxu0 %v71
    %219 = vmatpush1.msra.mxu0 %v70
    %220 = vmatprep.subr.mxu0 %v73
    %221 = vmatpush1.msra.mxu0 %v72
    %222 = vmatprep.subr.mxu0 %v75
    %223 = vmatpush1.msra.mxu0 %v74
    %224 = vmatprep.subr.mxu0 %v77
    %225 = vmatpush1.msra.mxu0 %v76
    %226 = vmatprep.subr.mxu0 %v79
    %227 = vmatpush1.msra.mxu0 %v78
    %228 = vmatprep.subr.mxu0 %v81
    %229 = vmatpush1.msra.mxu0 %v80
    %230 = vmatprep.subr.mxu0 %v83
    %231 = vmatpush1.msra.mxu0 %v82
    %232 = vmatprep.subr.mxu0 %v85
    %233 = vmatpush1.msra.mxu0 %v84
    %234 = vmatprep.subr.mxu0 %v87
    %235 = vmatpush1.msra.mxu0 %v86
    %236 = vmatprep.subr.mxu0 %v89
    %237 = vmatpush1.msra.mxu0 %v88
    %238 = vmatprep.subr.mxu0 %v91
    %239 = vmatpush1.msra.mxu0 %v90
    %240 = vmatprep.subr.mxu0 %v93
    %241 = vmatpush1.msra.mxu0 %v92
    %242 = vmatprep.subr.mxu0 %v95
    %243 = vmatpush1.msra.mxu0 %v94
    %244 = vmatprep.subr.mxu0 %v97
    %245 = vmatpush1.msra.mxu0 %v96
    %246 = vmatprep.subr.mxu0 %v99
    %247 = vmatpush1.msra.mxu0 %v98
    %248 = vmatprep.subr.mxu0 %v101
    %249 = vmatpush1.msra.mxu0 %v100
    %250 = vmatprep.subr.mxu0 %v103
    %251 = vmatpush1.msra.mxu0 %v102
    %252 = vmatprep.subr.mxu0 %v105
    %253 = vmatpush1.msra.mxu0 %v104
    %254 = vmatprep.subr.mxu0 %v107
    %255 = vmatpush1.msra.mxu0 %v106
    %256 = vmatprep.subr.mxu0 %v109
    %257 = vmatpush1.msra.mxu0 %v108
    %258 = vmatprep.subr.mxu0 %v111
    %259 = vmatpush1.msra.mxu0 %v110
    %260 = vmatprep.subr.mxu0 %v113
    %261 = vmatpush1.msra.mxu0 %v112
    %262 = vmatprep.mubr.f32.mxu0 %v49
    %263 = vmatmul.mubr.f32.gmra.mrb[0].mxu0 %v48
    %v264 = vpop.f32.mrb[0].mxu0
    %v265 = vadd.f32 %v191, %v264
    %v266 = vpop.f32.mrb[0].mxu0
    %v267 = vadd.f32 %v195, %v266
    %268 = vdwg.mxu0
    %vm279 = vcmask 1046528
    %v280 = vrot.slane %v126, 1
    %v281 = vrot.slane %v128, 1
    %v282 = vsel %vm279, %v280, %v281
    %v283 = vrot.slane %v127, 1
    %v284 = vrot.slane %v129, 1
    %v285 = vsel %vm279, %v283, %v284
    %v286 = vrot.slane %v130, 1
    %v287 = vsel %vm279, %v281, %v286
    %v288 = vrot.slane %v131, 1
    %v289 = vsel %vm279, %v284, %v288
    %v290 = vrot.slane %v132, 1
    %v291 = vsel %vm279, %v286, %v290
    %v292 = vrot.slane %v133, 1
    %v293 = vsel %vm279, %v288, %v292
    %v294 = vrot.slane %v134, 1
    %v295 = vsel %vm279, %v290, %v294
    %v296 = vrot.slane %v135, 1
    %v297 = vsel %vm279, %v292, %v296
    %vm306 = vcmask 261120
    %v308 = vsel %vm306, 0.0, 0
    %310 = vmatprep.subr.mxu0 %v285
    %311 = vmatpush1.msra.mxu0 %v282
    %312 = vmatprep.subr.mxu0 %v289
    %313 = vmatpush1.msra.mxu0 %v287
    %314 = vmatprep.subr.mxu0 %v293
    %315 = vmatpush1.msra.mxu0 %v291
    %316 = vmatprep.subr.mxu0 %v297
    %317 = vmatpush1.msra.mxu0 %v295
    %318 = vmatprep.subr.mxu0 0.0
    %319 = vmatpush1.msra.mxu0 0.0
    %320 = vmatprep.subr.mxu0 0.0
    %321 = vmatpush1.msra.mxu0 0.0
    %322 = vmatprep.subr.mxu0 0.0
    %323 = vmatpush1.msra.mxu0 0.0
    %324 = vmatprep.subr.mxu0 0.0
    %325 = vmatpush1.msra.mxu0 0.0
    %326 = vmatprep.subr.mxu0 0.0
    %327 = vmatpush1.msra.mxu0 0.0
    %328 = vmatprep.subr.mxu0 0.0
    %329 = vmatpush1.msra.mxu0 0.0
    %330 = vmatprep.subr.mxu0 0.0
    %331 = vmatpush1.msra.mxu0 0.0
    %332 = vmatprep.subr.mxu0 0.0
    %333 = vmatpush1.msra.mxu0 0.0
    %334 = vmatprep.subr.mxu0 0.0
    %335 = vmatpush1.msra.mxu0 0.0
    %336 = vmatprep.subr.mxu0 0.0
    %337 = vmatpush1.msra.mxu0 0.0
    %338 = vmatprep.subr.mxu0 0.0
    %339 = vmatpush1.msra.mxu0 0.0
    %340 = vmatprep.subr.mxu0 0.0
    %341 = vmatpush1.msra.mxu0 0.0
    %342 = vmatprep.subr.mxu0 0.0
    %343 = vmatpush1.msra.mxu0 0.0
    %344 = vmatprep.subr.mxu0 0.0
    %345 = vmatpush1.msra.mxu0 0.0
    %346 = vmatprep.subr.mxu0 0.0
    %347 = vmatpush1.msra.mxu0 0.0
    %348 = vmatprep.subr.mxu0 0.0
    %349 = vmatpush1.msra.mxu0 0.0
    %350 = vmatprep.subr.mxu0 0.0
    %351 = vmatpush1.msra.mxu0 0.0
    %352 = vmatprep.subr.mxu0 0.0
    %353 = vmatpush1.msra.mxu0 0.0
    %354 = vmatprep.subr.mxu0 0.0
    %355 = vmatpush1.msra.mxu0 0.0
    %356 = vmatprep.subr.mxu0 0.0
    %357 = vmatpush1.msra.mxu0 0.0
    %358 = vmatprep.subr.mxu0 0.0
    %359 = vmatpush1.msra.mxu0 0.0
    %360 = vmatprep.subr.mxu0 0.0
    %361 = vmatpush1.msra.mxu0 0.0
    %362 = vmatprep.subr.mxu0 0.0
    %363 = vmatpush1.msra.mxu0 0.0
    %364 = vmatprep.subr.mxu0 0.0
    %365 = vmatpush1.msra.mxu0 0.0
    %366 = vmatprep.subr.mxu0 0.0
    %367 = vmatpush1.msra.mxu0 0.0
    %368 = vmatprep.subr.mxu0 0.0
    %369 = vmatpush1.msra.mxu0 0.0
    %370 = vmatprep.subr.mxu0 0.0
    %371 = vmatpush1.msra.mxu0 0.0
    %372 = vmatprep.subr.mxu0 0.0
    %373 = vmatpush1.msra.mxu0 0.0
    %374 = vmatprep.mubr.f32.mxu0 0.0
    %375 = vmatmul.mubr.f32.gmra.mrb[0].mxu0 %v308
    %v376 = vpop.f32.mrb[0].mxu0
    %v377 = vadd.f32 0.0, %v376
    %v378 = vpop.f32.mrb[0].mxu0
    %v379 = vadd.f32 0.0, %v378
    %380 = vdwg.mxu0
    %v391 = vrot.slane %v116, 1
    %v392 = vrot.slane %v118, 1
    %v393 = vsel %vm279, %v391, %v392
    %v394 = vrot.slane %v117, 1
    %v395 = vrot.slane %v119, 1
    %v396 = vsel %vm279, %v394, %v395
    %v397 = vrot.slane %v120, 1
    %v398 = vsel %vm279, %v392, %v397
    %v399 = vrot.slane %v121, 1
    %v400 = vsel %vm279, %v395, %v399
    %v401 = vrot.slane %v122, 1
    %v402 = vsel %vm279, %v397, %v401
    %v403 = vrot.slane %v123, 1
    %v404 = vsel %vm279, %v399, %v403
    %v405 = vrot.slane %v124, 1
    %v406 = vsel %vm279, %v401, %v405
    %v407 = vrot.slane %v125, 1
    %v408 = vsel %vm279, %v403, %v407
    %417 = vmatprep.subr.mxu0 %v396
    %418 = vmatpush1.msra.mxu0 %v393
    %419 = vmatprep.subr.mxu0 %v400
    %420 = vmatpush1.msra.mxu0 %v398
    %421 = vmatprep.subr.mxu0 %v404
    %422 = vmatpush1.msra.mxu0 %v402
    %423 = vmatprep.subr.mxu0 %v408
    %424 = vmatpush1.msra.mxu0 %v406
    %425 = vmatprep.subr.mxu0 0.0
    %426 = vmatpush1.msra.mxu0 0.0
    %427 = vmatprep.subr.mxu0 0.0
    %428 = vmatpush1.msra.mxu0 0.0
    %429 = vmatprep.subr.mxu0 0.0
    %430 = vmatpush1.msra.mxu0 0.0
    %431 = vmatprep.subr.mxu0 0.0
    %432 = vmatpush1.msra.mxu0 0.0
    %433 = vmatprep.subr.mxu0 0.0
    %434 = vmatpush1.msra.mxu0 0.0
    %435 = vmatprep.subr.mxu0 0.0
    %436 = vmatpush1.msra.mxu0 0.0
    %437 = vmatprep.subr.mxu0 0.0
    %438 = vmatpush1.msra.mxu0 0.0
    %439 = vmatprep.subr.mxu0 0.0
    %440 = vmatpush1.msra.mxu0 0.0
    %441 = vmatprep.subr.mxu0 0.0
    %442 = vmatpush1.msra.mxu0 0.0
    %443 = vmatprep.subr.mxu0 0.0
    %444 = vmatpush1.msra.mxu0 0.0
    %445 = vmatprep.subr.mxu0 0.0
    %446 = vmatpush1.msra.mxu0 0.0
    %447 = vmatprep.subr.mxu0 0.0
    %448 = vmatpush1.msra.mxu0 0.0
    %449 = vmatprep.subr.mxu0 0.0
    %450 = vmatpush1.msra.mxu0 0.0
    %451 = vmatprep.subr.mxu0 0.0
    %452 = vmatpush1.msra.mxu0 0.0
    %453 = vmatprep.subr.mxu0 0.0
    %454 = vmatpush1.msra.mxu0 0.0
    %455 = vmatprep.subr.mxu0 0.0
    %456 = vmatpush1.msra.mxu0 0.0
    %457 = vmatprep.subr.mxu0 0.0
    %458 = vmatpush1.msra.mxu0 0.0
    %459 = vmatprep.subr.mxu0 0.0
    %460 = vmatpush1.msra.mxu0 0.0
    %461 = vmatprep.subr.mxu0 0.0
    %462 = vmatpush1.msra.mxu0 0.0
    %463 = vmatprep.subr.mxu0 0.0
    %464 = vmatpush1.msra.mxu0 0.0
    %465 = vmatprep.subr.mxu0 0.0
    %466 = vmatpush1.msra.mxu0 0.0
    %467 = vmatprep.subr.mxu0 0.0
    %468 = vmatpush1.msra.mxu0 0.0
    %469 = vmatprep.subr.mxu0 0.0
    %470 = vmatpush1.msra.mxu0 0.0
    %471 = vmatprep.subr.mxu0 0.0
    %472 = vmatpush1.msra.mxu0 0.0
    %473 = vmatprep.subr.mxu0 0.0
    %474 = vmatpush1.msra.mxu0 0.0
    %475 = vmatprep.subr.mxu0 0.0
    %476 = vmatpush1.msra.mxu0 0.0
    %477 = vmatprep.subr.mxu0 0.0
    %478 = vmatpush1.msra.mxu0 0.0
    %479 = vmatprep.subr.mxu0 0.0
    %480 = vmatpush1.msra.mxu0 0.0
    %481 = vmatprep.mubr.f32.mxu0 0.0
    %482 = vmatmul.mubr.f32.gmra.mrb[0].mxu0 %v308
    %v483 = vpop.f32.mrb[0].mxu0
    %v484 = vadd.f32 %v377, %v483
    %v485 = vpop.f32.mrb[0].mxu0
    %v486 = vadd.f32 %v379, %v485
    %487 = vdwg.mxu0
    %v488 = vadd.f32 %v265, %v484
    %v489 = vadd.f32 %v267, %v486
    %v490 = vtanh.pop %v488
    %v491 = vtanh.pop %v489
    %492 = vmatprep.subr.mxu0 0.0
    %493 = vmatpush1.msra.mxu0 %v136
    %494 = vmatprep.subr.mxu0 0.0
    %495 = vmatpush1.msra.mxu0 %v137
    %496 = vmatprep.subr.mxu0 0.0
    %497 = vmatpush1.msra.mxu0 %v138
    %498 = vmatprep.subr.mxu0 0.0
    %499 = vmatpush1.msra.mxu0 %v139
    %500 = vmatprep.subr.mxu0 0.0
    %501 = vmatpush1.msra.mxu0 %v140
    %502 = vmatprep.subr.mxu0 0.0
    %503 = vmatpush1.msra.mxu0 %v141
    %504 = vmatprep.subr.mxu0 0.0
    %505 = vmatpush1.msra.mxu0 %v142
    %506 = vmatprep.subr.mxu0 0.0
    %507 = vmatpush1.msra.mxu0 %v143
    %508 = vmatprep.subr.mxu0 0.0
    %509 = vmatpush1.msra.mxu0 %v144
    %510 = vmatprep.subr.mxu0 0.0
    %511 = vmatpush1.msra.mxu0 %v145
    %512 = vmatprep.subr.mxu0 0.0
    %513 = vmatpush1.msra.mxu0 %v146
    %514 = vmatprep.subr.mxu0 0.0
    %515 = vmatpush1.msra.mxu0 %v147
    %516 = vmatprep.subr.mxu0 0.0
    %517 = vmatpush1.msra.mxu0 %v148
    %518 = vmatprep.subr.mxu0 0.0
    %519 = vmatpush1.msra.mxu0 %v149
    %520 = vmatprep.subr.mxu0 0.0
    %521 = vmatpush1.msra.mxu0 %v150
    %522 = vmatprep.subr.mxu0 0.0
    %523 = vmatpush1.msra.mxu0 %v151
    %524 = vmatprep.subr.mxu0 0.0
    %525 = vmatpush1.msra.mxu0 %v152
    %526 = vmatprep.subr.mxu0 0.0
    %527 = vmatpush1.msra.mxu0 %v153
    %528 = vmatprep.subr.mxu0 0.0
    %529 = vmatpush1.msra.mxu0 %v154
    %530 = vmatprep.subr.mxu0 0.0
    %531 = vmatpush1.msra.mxu0 %v155
    %532 = vmatprep.subr.mxu0 0.0
    %533 = vmatpush1.msra.mxu0 %v156
    %534 = vmatprep.subr.mxu0 0.0
    %535 = vmatpush1.msra.mxu0 %v157
    %536 = vmatprep.subr.mxu0 0.0
    %537 = vmatpush1.msra.mxu0 %v158
    %538 = vmatprep.subr.mxu0 0.0
    %539 = vmatpush1.msra.mxu0 %v159
    %540 = vmatprep.subr.mxu0 0.0
    %541 = vmatpush1.msra.mxu0 %v160
    %542 = vmatprep.subr.mxu0 0.0
    %543 = vmatpush1.msra.mxu0 %v161
    %544 = vmatprep.subr.mxu0 0.0
    %545 = vmatpush1.msra.mxu0 %v162
    %546 = vmatprep.subr.mxu0 0.0
    %547 = vmatpush1.msra.mxu0 %v163
    %548 = vmatprep.subr.mxu0 0.0
    %549 = vmatpush1.msra.mxu0 %v164
    %550 = vmatprep.subr.mxu0 0.0
    %551 = vmatpush1.msra.mxu0 %v165
    %552 = vmatprep.subr.mxu0 0.0
    %553 = vmatpush1.msra.mxu0 %v166
    %554 = vmatprep.subr.mxu0 0.0
    %555 = vmatpush1.msra.mxu0 %v167
    %556 = vmatprep.mubr.f32.mxu0 %v491
    %557 = vmatmul.mubr.f32.gmra.mrb[0].mxu0 %v490
    %v558 = vpop.f32.mrb[0].mxu0
    %v559 = vadd.f32 0.0, %v558
    %v560 = vpop.f32.mrb[0].mxu0
    %561 = vdwg.mxu0
    %vm562 = vcmask 64512
    %v563 = vsel %vm562, %v559, -inf
    %564 = vmax.xlane.f32.xlu0 %v563
    %v565 = vpop.xlane.xlu0 %564
    %v566 = vsub.f32 %v559, %v565
    %v567 = vmul.f32 %v566, 1.442695
    %v568 = vpow.pop %v567
    %v569 = vsel %vm562, %v568, 0.0
    %570 = vadd.xlane.f32.xlu0 %v569
    %v571 = vpop.xlane.xlu0 %570
    %v572 = vrcp.pop %v571
    %v573 = vmul.f32 %v568, %v572
    %v574 = vlaneseq
    %v575 = vshrl.u32 %v574, 7
    %v576 = vsub.s32 0, %v575
    %v577 = vrot.slane %v573, %v576
    %579 = vbcast.lane.b32.xlu0 %v577, 256
    %v580 = vpop.permute.xlu0 %579
    %v581 = vlaneseq
    %v582 = vshrl.u32 %v581, 7
    %v583 = vsub.s32 1, %v582
    %v584 = vrot.slane %v573, %v583
    %586 = vbcast.lane.b32.xlu0 %v584, 256
    %v587 = vpop.permute.xlu0 %586
    %v588 = vlaneseq
    %v589 = vshrl.u32 %v588, 7
    %v590 = vsub.s32 2, %v589
    %v591 = vrot.slane %v573, %v590
    %593 = vbcast.lane.b32.xlu0 %v591, 256
    %v594 = vpop.permute.xlu0 %593
    %v595 = vlaneseq
    %v596 = vshrl.u32 %v595, 7
    %v597 = vsub.s32 3, %v596
    %v598 = vrot.slane %v573, %v597
    %600 = vbcast.lane.b32.xlu0 %v598, 256
    %v601 = vpop.permute.xlu0 %600
    %v602 = vlaneseq
    %v603 = vshrl.u32 %v602, 7
    %v604 = vsub.s32 4, %v603
    %v605 = vrot.slane %v573, %v604
    %607 = vbcast.lane.b32.xlu0 %v605, 256
    %v608 = vpop.permute.xlu0 %607
    %v609 = vlaneseq
    %v610 = vshrl.u32 %v609, 7
    %v611 = vsub.s32 5, %v610
    %v612 = vrot.slane %v573, %v611
    %614 = vbcast.lane.b32.xlu0 %v612, 256
    %v615 = vpop.permute.xlu0 %614
    %v616 = vlaneseq
    %v617 = vshrl.u32 %v616, 7
    %v618 = vsub.s32 6, %v617
    %v619 = vrot.slane %v573, %v618
    %621 = vbcast.lane.b32.xlu0 %v619, 256
    %v622 = vpop.permute.xlu0 %621
    %v623 = vlaneseq
    %v624 = vshrl.u32 %v623, 7
    %v625 = vsub.s32 7, %v624
    %v626 = vrot.slane %v573, %v625
    %628 = vbcast.lane.b32.xlu0 %v626, 256
    %v629 = vpop.permute.xlu0 %628
    %v630 = vmul.f32 %v580, %v40
    %v631 = vmul.f32 %v587, %v41
    %v632 = vmul.f32 %v594, %v42
    %v633 = vmul.f32 %v601, %v43
    %v634 = vmul.f32 %v608, %v44
    %v635 = vmul.f32 %v615, %v45
    %v636 = vmul.f32 %v622, %v46
    %v637 = vmul.f32 %v629, %v47
    %v638 = vsel %vm306, %v630, 0.0
    %v639 = vrot.slane %v638, 4
    %v640 = vadd.f32 %v638, %v639
    %v641 = vrot.slane %v640, 2
    %v642 = vadd.f32 %v640, %v641
    %v643 = vrot.slane %v642, 1
    %v644 = vadd.f32 %v642, %v643
    %v645 = vsel %vm306, %v631, 0.0
    %v646 = vrot.slane %v645, 4
    %v647 = vadd.f32 %v645, %v646
    %v648 = vrot.slane %v647, 2
    %v649 = vadd.f32 %v647, %v648
    %v650 = vrot.slane %v649, 1
    %v651 = vadd.f32 %v649, %v650
    %v652 = vsel %vm306, %v632, 0.0
    %v653 = vrot.slane %v652, 4
    %v654 = vadd.f32 %v652, %v653
    %v655 = vrot.slane %v654, 2
    %v656 = vadd.f32 %v654, %v655
    %v657 = vrot.slane %v656, 1
    %v658 = vadd.f32 %v656, %v657
    %v659 = vsel %vm306, %v633, 0.0
    %v660 = vrot.slane %v659, 4
    %v661 = vadd.f32 %v659, %v660
    %v662 = vrot.slane %v661, 2
    %v663 = vadd.f32 %v661, %v662
    %v664 = vrot.slane %v663, 1
    %v665 = vadd.f32 %v663, %v664
    %v666 = vsel %vm306, %v634, 0.0
    %v667 = vrot.slane %v666, 4
    %v668 = vadd.f32 %v666, %v667
    %v669 = vrot.slane %v668, 2
    %v670 = vadd.f32 %v668, %v669
    %v671 = vrot.slane %v670, 1
    %v672 = vadd.f32 %v670, %v671
    %v673 = vsel %vm306, %v635, 0.0
    %v674 = vrot.slane %v673, 4
    %v675 = vadd.f32 %v673, %v674
    %v676 = vrot.slane %v675, 2
    %v677 = vadd.f32 %v675, %v676
    %v678 = vrot.slane %v677, 1
    %v679 = vadd.f32 %v677, %v678
    %v680 = vsel %vm306, %v636, 0.0
    %v681 = vrot.slane %v680, 4
    %v682 = vadd.f32 %v680, %v681
    %v683 = vrot.slane %v682, 2
    %v684 = vadd.f32 %v682, %v683
    %v685 = vrot.slane %v684, 1
    %v686 = vadd.f32 %v684, %v685
    %v687 = vsel %vm306, %v637, 0.0
    %v688 = vrot.slane %v687, 4
    %v689 = vadd.f32 %v687, %v688
    %v690 = vrot.slane %v689, 2
    %v691 = vadd.f32 %v689, %v690
    %v692 = vrot.slane %v691, 1
    %v693 = vadd.f32 %v691, %v692
    %v694 = vld [vmem:[%s2] sm:$0xff]
    %695 = vmatprep.subr.mxu0 0.0
    %696 = vmatpush1.msra.mxu0 %v168
    %697 = vmatprep.subr.mxu0 0.0
    %698 = vmatpush1.msra.mxu0 %v169
    %699 = vmatprep.subr.mxu0 0.0
    %700 = vmatpush1.msra.mxu0 %v170
    %701 = vmatprep.subr.mxu0 0.0
    %702 = vmatpush1.msra.mxu0 %v171
    %703 = vmatprep.subr.mxu0 0.0
    %704 = vmatpush1.msra.mxu0 0.0
    %705 = vmatprep.subr.mxu0 0.0
    %706 = vmatpush1.msra.mxu0 0.0
    %707 = vmatprep.subr.mxu0 0.0
    %708 = vmatpush1.msra.mxu0 0.0
    %709 = vmatprep.subr.mxu0 0.0
    %710 = vmatpush1.msra.mxu0 0.0
    %711 = vmatprep.subr.mxu0 0.0
    %712 = vmatpush1.msra.mxu0 0.0
    %713 = vmatprep.subr.mxu0 0.0
    %714 = vmatpush1.msra.mxu0 0.0
    %715 = vmatprep.subr.mxu0 0.0
    %716 = vmatpush1.msra.mxu0 0.0
    %717 = vmatprep.subr.mxu0 0.0
    %718 = vmatpush1.msra.mxu0 0.0
    %719 = vmatprep.subr.mxu0 0.0
    %720 = vmatpush1.msra.mxu0 0.0
    %721 = vmatprep.subr.mxu0 0.0
    %722 = vmatpush1.msra.mxu0 0.0
    %723 = vmatprep.subr.mxu0 0.0
    %724 = vmatpush1.msra.mxu0 0.0
    %725 = vmatprep.subr.mxu0 0.0
    %726 = vmatpush1.msra.mxu0 0.0
    %727 = vmatprep.subr.mxu0 0.0
    %728 = vmatpush1.msra.mxu0 0.0
    %729 = vmatprep.subr.mxu0 0.0
    %730 = vmatpush1.msra.mxu0 0.0
    %731 = vmatprep.subr.mxu0 0.0
    %732 = vmatpush1.msra.mxu0 0.0
    %733 = vmatprep.subr.mxu0 0.0
    %734 = vmatpush1.msra.mxu0 0.0
    %735 = vmatprep.subr.mxu0 0.0
    %736 = vmatpush1.msra.mxu0 0.0
    %737 = vmatprep.subr.mxu0 0.0
    %738 = vmatpush1.msra.mxu0 0.0
    %739 = vmatprep.subr.mxu0 0.0
    %740 = vmatpush1.msra.mxu0 0.0
    %741 = vmatprep.subr.mxu0 0.0
    %742 = vmatpush1.msra.mxu0 0.0
    %743 = vmatprep.subr.mxu0 0.0
    %744 = vmatpush1.msra.mxu0 0.0
    %745 = vmatprep.subr.mxu0 0.0
    %746 = vmatpush1.msra.mxu0 0.0
    %747 = vmatprep.subr.mxu0 0.0
    %748 = vmatpush1.msra.mxu0 0.0
    %749 = vmatprep.subr.mxu0 0.0
    %750 = vmatpush1.msra.mxu0 0.0
    %751 = vmatprep.subr.mxu0 0.0
    %752 = vmatpush1.msra.mxu0 0.0
    %753 = vmatprep.subr.mxu0 0.0
    %754 = vmatpush1.msra.mxu0 0.0
    %755 = vmatprep.subr.mxu0 0.0
    %756 = vmatpush1.msra.mxu0 0.0
    %757 = vmatprep.subr.mxu0 0.0
    %758 = vmatpush1.msra.mxu0 0.0
    %759 = vmatprep.mubr.f32.mxu0 0.0
    %760 = vmatmul.mubr.f32.gmra.mrb[0].mxu0 %v308
    %v761 = vpop.f32.mrb[0].mxu0
    %v762 = vadd.f32 0.0, %v761
    %v763 = vpop.f32.mrb[0].mxu0
    %764 = vdwg.mxu0
    %vm773 = vcmask 1041409
    %v774 = vsel %vm773, %v651, %v644
    %vm775 = vcmask 1042434
    %v776 = vsel %vm775, %v658, %v774
    %vm777 = vcmask 1043459
    %v778 = vsel %vm777, %v665, %v776
    %vm779 = vcmask 1044484
    %v780 = vsel %vm779, %v672, %v778
    %vm781 = vcmask 1045509
    %v782 = vsel %vm781, %v679, %v780
    %vm783 = vcmask 1046534
    %v784 = vsel %vm783, %v686, %v782
    %vm785 = vcmask 1047559
    %v786 = vsel %vm785, %v693, %v784
    %v787 = vsel %vm306, %v786, 0
    %789 = vmatprep.subr.mxu0 0.0
    %790 = vmatpush1.msra.mxu0 %v172
    %791 = vmatprep.subr.mxu0 0.0
    %792 = vmatpush1.msra.mxu0 %v173
    %793 = vmatprep.subr.mxu0 0.0
    %794 = vmatpush1.msra.mxu0 %v174
    %795 = vmatprep.subr.mxu0 0.0
    %796 = vmatpush1.msra.mxu0 %v175
    %797 = vmatprep.subr.mxu0 0.0
    %798 = vmatpush1.msra.mxu0 0.0
    %799 = vmatprep.subr.mxu0 0.0
    %800 = vmatpush1.msra.mxu0 0.0
    %801 = vmatprep.subr.mxu0 0.0
    %802 = vmatpush1.msra.mxu0 0.0
    %803 = vmatprep.subr.mxu0 0.0
    %804 = vmatpush1.msra.mxu0 0.0
    %805 = vmatprep.subr.mxu0 0.0
    %806 = vmatpush1.msra.mxu0 0.0
    %807 = vmatprep.subr.mxu0 0.0
    %808 = vmatpush1.msra.mxu0 0.0
    %809 = vmatprep.subr.mxu0 0.0
    %810 = vmatpush1.msra.mxu0 0.0
    %811 = vmatprep.subr.mxu0 0.0
    %812 = vmatpush1.msra.mxu0 0.0
    %813 = vmatprep.subr.mxu0 0.0
    %814 = vmatpush1.msra.mxu0 0.0
    %815 = vmatprep.subr.mxu0 0.0
    %816 = vmatpush1.msra.mxu0 0.0
    %817 = vmatprep.subr.mxu0 0.0
    %818 = vmatpush1.msra.mxu0 0.0
    %819 = vmatprep.subr.mxu0 0.0
    %820 = vmatpush1.msra.mxu0 0.0
    %821 = vmatprep.subr.mxu0 0.0
    %822 = vmatpush1.msra.mxu0 0.0
    %823 = vmatprep.subr.mxu0 0.0
    %824 = vmatpush1.msra.mxu0 0.0
    %825 = vmatprep.subr.mxu0 0.0
    %826 = vmatpush1.msra.mxu0 0.0
    %827 = vmatprep.subr.mxu0 0.0
    %828 = vmatpush1.msra.mxu0 0.0
    %829 = vmatprep.subr.mxu0 0.0
    %830 = vmatpush1.msra.mxu0 0.0
    %831 = vmatprep.subr.mxu0 0.0
    %832 = vmatpush1.msra.mxu0 0.0
    %833 = vmatprep.subr.mxu0 0.0
    %834 = vmatpush1.msra.mxu0 0.0
    %835 = vmatprep.subr.mxu0 0.0
    %836 = vmatpush1.msra.mxu0 0.0
    %837 = vmatprep.subr.mxu0 0.0
    %838 = vmatpush1.msra.mxu0 0.0
    %839 = vmatprep.subr.mxu0 0.0
    %840 = vmatpush1.msra.mxu0 0.0
    %841 = vmatprep.subr.mxu0 0.0
    %842 = vmatpush1.msra.mxu0 0.0
    %843 = vmatprep.subr.mxu0 0.0
    %844 = vmatpush1.msra.mxu0 0.0
    %845 = vmatprep.subr.mxu0 0.0
    %846 = vmatpush1.msra.mxu0 0.0
    %847 = vmatprep.subr.mxu0 0.0
    %848 = vmatpush1.msra.mxu0 0.0
    %849 = vmatprep.subr.mxu0 0.0
    %850 = vmatpush1.msra.mxu0 0.0
    %851 = vmatprep.subr.mxu0 0.0
    %852 = vmatpush1.msra.mxu0 0.0
    %853 = vmatprep.mubr.f32.mxu0 0.0
    %854 = vmatmul.mubr.f32.gmra.mrb[0].mxu0 %v787
    %v855 = vpop.f32.mrb[0].mxu0
    %v856 = vadd.f32 %v762, %v855
    %v857 = vpop.f32.mrb[0].mxu0
    %858 = vdwg.mxu0
    %860 = vset.pattern.permute.xlu0 0
    %861 = vperm.xlu0 %860, %v694
    %v862 = vpop.permute.xlu0 %861
    %v864 = vlaneseq
    %v865 = vshrl.u32 %v864, 7
    %v866 = vsub.s32 0, %v865
    %v867 = vrot.slane %v176, %v866
    %v868 = vmul.f32 %v862, %v867
    %v869 = vadd.f32 %v856, %v868
    %v870 = vlaneseq
    %v871 = vshrl.u32 %v870, 7
    %v872 = vsub.s32 0, %v871
    %v873 = vrot.slane %v177, %v872
    %v874 = vadd.f32 %v869, %v873
    %v875 = vxor.u32 %v874, 2147483648
    %v876 = vmul.f32 %v875, 1.442695
    %v877 = vpow.pop %v876
    %v878 = vadd.f32 %v877, 1.0
    %v879 = vrcp.pop %v878
    %v880 = vmul.f32 1.0, %v879
    %v881 = vmul.f32 %v880, 2.0
    %v882 = vsub.f32 %v881, 1.0
    %v883 = vmul.f32 %v880, 0.0
    %885 = vrot.lane.b32.xlu0 %v882, 64
    %v886 = vpop.permute.xlu0 %885
    %v888 = vmul.f32 %v880, %v886
    %890 = vrot.lane.b32.xlu0 %v888, 32
    %v891 = vpop.permute.xlu0 %890
    %v893 = vadd.f32 %v883, %v891
    %v894 = vtanh.pop %v893
    %896 = vrot.lane.b32.xlu0 %v894, 64
    %v897 = vpop.permute.xlu0 %896
    %v899 = vmul.f32 %v880, %v897
    %901 = vrot.lane.b32.xlu0 %v893, 96
    %v902 = vpop.permute.xlu0 %901
    %v903 = vsel %vm306, %v902, 0
    %905 = vmatprep.subr.mxu0 %v285
    %906 = vmatpush1.msra.mxu0 %v282
    %907 = vmatprep.subr.mxu0 %v289
    %908 = vmatpush1.msra.mxu0 %v287
    %909 = vmatprep.subr.mxu0 %v293
    %910 = vmatpush1.msra.mxu0 %v291
    %911 = vmatprep.subr.mxu0 %v297
    %912 = vmatpush1.msra.mxu0 %v295
    %913 = vmatprep.subr.mxu0 0.0
    %914 = vmatpush1.msra.mxu0 0.0
    %915 = vmatprep.subr.mxu0 0.0
    %916 = vmatpush1.msra.mxu0 0.0
    %917 = vmatprep.subr.mxu0 0.0
    %918 = vmatpush1.msra.mxu0 0.0
    %919 = vmatprep.subr.mxu0 0.0
    %920 = vmatpush1.msra.mxu0 0.0
    %921 = vmatprep.subr.mxu0 0.0
    %922 = vmatpush1.msra.mxu0 0.0
    %923 = vmatprep.subr.mxu0 0.0
    %924 = vmatpush1.msra.mxu0 0.0
    %925 = vmatprep.subr.mxu0 0.0
    %926 = vmatpush1.msra.mxu0 0.0
    %927 = vmatprep.subr.mxu0 0.0
    %928 = vmatpush1.msra.mxu0 0.0
    %929 = vmatprep.subr.mxu0 0.0
    %930 = vmatpush1.msra.mxu0 0.0
    %931 = vmatprep.subr.mxu0 0.0
    %932 = vmatpush1.msra.mxu0 0.0
    %933 = vmatprep.subr.mxu0 0.0
    %934 = vmatpush1.msra.mxu0 0.0
    %935 = vmatprep.subr.mxu0 0.0
    %936 = vmatpush1.msra.mxu0 0.0
    %937 = vmatprep.subr.mxu0 0.0
    %938 = vmatpush1.msra.mxu0 0.0
    %939 = vmatprep.subr.mxu0 0.0
    %940 = vmatpush1.msra.mxu0 0.0
    %941 = vmatprep.subr.mxu0 0.0
    %942 = vmatpush1.msra.mxu0 0.0
    %943 = vmatprep.subr.mxu0 0.0
    %944 = vmatpush1.msra.mxu0 0.0
    %945 = vmatprep.subr.mxu0 0.0
    %946 = vmatpush1.msra.mxu0 0.0
    %947 = vmatprep.subr.mxu0 0.0
    %948 = vmatpush1.msra.mxu0 0.0
    %949 = vmatprep.subr.mxu0 0.0
    %950 = vmatpush1.msra.mxu0 0.0
    %951 = vmatprep.subr.mxu0 0.0
    %952 = vmatpush1.msra.mxu0 0.0
    %953 = vmatprep.subr.mxu0 0.0
    %954 = vmatpush1.msra.mxu0 0.0
    %955 = vmatprep.subr.mxu0 0.0
    %956 = vmatpush1.msra.mxu0 0.0
    %957 = vmatprep.subr.mxu0 0.0
    %958 = vmatpush1.msra.mxu0 0.0
    %959 = vmatprep.subr.mxu0 0.0
    %960 = vmatpush1.msra.mxu0 0.0
    %961 = vmatprep.subr.mxu0 0.0
    %962 = vmatpush1.msra.mxu0 0.0
    %963 = vmatprep.subr.mxu0 0.0
    %964 = vmatpush1.msra.mxu0 0.0
    %965 = vmatprep.subr.mxu0 0.0
    %966 = vmatpush1.msra.mxu0 0.0
    %967 = vmatprep.subr.mxu0 0.0
    %968 = vmatpush1.msra.mxu0 0.0
    %969 = vmatprep.mubr.f32.mxu0 0.0
    %970 = vmatmul.mubr.f32.gmra.mrb[0].mxu0 %v903
    %v971 = vpop.f32.mrb[0].mxu0
    %v972 = vadd.f32 0.0, %v971
    %v973 = vpop.f32.mrb[0].mxu0
    %v974 = vadd.f32 0.0, %v973
    %975 = vdwg.mxu0
    %977 = vrot.lane.b32.xlu0 %v899, 32
    %v978 = vpop.permute.xlu0 %977
    %v979 = vsel %vm306, %v978, 0
    %981 = vmatprep.subr.mxu0 %v396
    %982 = vmatpush1.msra.mxu0 %v393
    %983 = vmatprep.subr.mxu0 %v400
    %984 = vmatpush1.msra.mxu0 %v398
    %985 = vmatprep.subr.mxu0 %v404
    %986 = vmatpush1.msra.mxu0 %v402
    %987 = vmatprep.subr.mxu0 %v408
    %988 = vmatpush1.msra.mxu0 %v406
    %989 = vmatprep.subr.mxu0 0.0
    %990 = vmatpush1.msra.mxu0 0.0
    %991 = vmatprep.subr.mxu0 0.0
    %992 = vmatpush1.msra.mxu0 0.0
    %993 = vmatprep.subr.mxu0 0.0
    %994 = vmatpush1.msra.mxu0 0.0
    %995 = vmatprep.subr.mxu0 0.0
    %996 = vmatpush1.msra.mxu0 0.0
    %997 = vmatprep.subr.mxu0 0.0
    %998 = vmatpush1.msra.mxu0 0.0
    %999 = vmatprep.subr.mxu0 0.0
    %1000 = vmatpush1.msra.mxu0 0.0
    %1001 = vmatprep.subr.mxu0 0.0
    %1002 = vmatpush1.msra.mxu0 0.0
    %1003 = vmatprep.subr.mxu0 0.0
    %1004 = vmatpush1.msra.mxu0 0.0
    %1005 = vmatprep.subr.mxu0 0.0
    %1006 = vmatpush1.msra.mxu0 0.0
    %1007 = vmatprep.subr.mxu0 0.0
    %1008 = vmatpush1.msra.mxu0 0.0
    %1009 = vmatprep.subr.mxu0 0.0
    %1010 = vmatpush1.msra.mxu0 0.0
    %1011 = vmatprep.subr.mxu0 0.0
    %1012 = vmatpush1.msra.mxu0 0.0
    %1013 = vmatprep.subr.mxu0 0.0
    %1014 = vmatpush1.msra.mxu0 0.0
    %1015 = vmatprep.subr.mxu0 0.0
    %1016 = vmatpush1.msra.mxu0 0.0
    %1017 = vmatprep.subr.mxu0 0.0
    %1018 = vmatpush1.msra.mxu0 0.0
    %1019 = vmatprep.subr.mxu0 0.0
    %1020 = vmatpush1.msra.mxu0 0.0
    %1021 = vmatprep.subr.mxu0 0.0
    %1022 = vmatpush1.msra.mxu0 0.0
    %1023 = vmatprep.subr.mxu0 0.0
    %1024 = vmatpush1.msra.mxu0 0.0
    %1025 = vmatprep.subr.mxu0 0.0
    %1026 = vmatpush1.msra.mxu0 0.0
    %1027 = vmatprep.subr.mxu0 0.0
    %1028 = vmatpush1.msra.mxu0 0.0
    %1029 = vmatprep.subr.mxu0 0.0
    %1030 = vmatpush1.msra.mxu0 0.0
    %1031 = vmatprep.subr.mxu0 0.0
    %1032 = vmatpush1.msra.mxu0 0.0
    %1033 = vmatprep.subr.mxu0 0.0
    %1034 = vmatpush1.msra.mxu0 0.0
    %1035 = vmatprep.subr.mxu0 0.0
    %1036 = vmatpush1.msra.mxu0 0.0
    %1037 = vmatprep.subr.mxu0 0.0
    %1038 = vmatpush1.msra.mxu0 0.0
    %1039 = vmatprep.subr.mxu0 0.0
    %1040 = vmatpush1.msra.mxu0 0.0
    %1041 = vmatprep.subr.mxu0 0.0
    %1042 = vmatpush1.msra.mxu0 0.0
    %1043 = vmatprep.subr.mxu0 0.0
    %1044 = vmatpush1.msra.mxu0 0.0
    %1045 = vmatprep.mubr.f32.mxu0 0.0
    %1046 = vmatmul.mubr.f32.gmra.mrb[0].mxu0 %v979
    %v1047 = vpop.f32.mrb[0].mxu0
    %v1048 = vadd.f32 %v972, %v1047
    %v1049 = vpop.f32.mrb[0].mxu0
    %v1050 = vadd.f32 %v974, %v1049
    %1051 = vdwg.mxu0
    %v1052 = vadd.f32 %v265, %v1048
    %v1053 = vadd.f32 %v267, %v1050
    %v1054 = vtanh.pop %v1052
    %v1055 = vtanh.pop %v1053
    %1056 = vmatprep.subr.mxu0 0.0
    %1057 = vmatpush1.msra.mxu0 %v136
    %1058 = vmatprep.subr.mxu0 0.0
    %1059 = vmatpush1.msra.mxu0 %v137
    %1060 = vmatprep.subr.mxu0 0.0
    %1061 = vmatpush1.msra.mxu0 %v138
    %1062 = vmatprep.subr.mxu0 0.0
    %1063 = vmatpush1.msra.mxu0 %v139
    %1064 = vmatprep.subr.mxu0 0.0
    %1065 = vmatpush1.msra.mxu0 %v140
    %1066 = vmatprep.subr.mxu0 0.0
    %1067 = vmatpush1.msra.mxu0 %v141
    %1068 = vmatprep.subr.mxu0 0.0
    %1069 = vmatpush1.msra.mxu0 %v142
    %1070 = vmatprep.subr.mxu0 0.0
    %1071 = vmatpush1.msra.mxu0 %v143
    %1072 = vmatprep.subr.mxu0 0.0
    %1073 = vmatpush1.msra.mxu0 %v144
    %1074 = vmatprep.subr.mxu0 0.0
    %1075 = vmatpush1.msra.mxu0 %v145
    %1076 = vmatprep.subr.mxu0 0.0
    %1077 = vmatpush1.msra.mxu0 %v146
    %1078 = vmatprep.subr.mxu0 0.0
    %1079 = vmatpush1.msra.mxu0 %v147
    %1080 = vmatprep.subr.mxu0 0.0
    %1081 = vmatpush1.msra.mxu0 %v148
    %1082 = vmatprep.subr.mxu0 0.0
    %1083 = vmatpush1.msra.mxu0 %v149
    %1084 = vmatprep.subr.mxu0 0.0
    %1085 = vmatpush1.msra.mxu0 %v150
    %1086 = vmatprep.subr.mxu0 0.0
    %1087 = vmatpush1.msra.mxu0 %v151
    %1088 = vmatprep.subr.mxu0 0.0
    %1089 = vmatpush1.msra.mxu0 %v152
    %1090 = vmatprep.subr.mxu0 0.0
    %1091 = vmatpush1.msra.mxu0 %v153
    %1092 = vmatprep.subr.mxu0 0.0
    %1093 = vmatpush1.msra.mxu0 %v154
    %1094 = vmatprep.subr.mxu0 0.0
    %1095 = vmatpush1.msra.mxu0 %v155
    %1096 = vmatprep.subr.mxu0 0.0
    %1097 = vmatpush1.msra.mxu0 %v156
    %1098 = vmatprep.subr.mxu0 0.0
    %1099 = vmatpush1.msra.mxu0 %v157
    %1100 = vmatprep.subr.mxu0 0.0
    %1101 = vmatpush1.msra.mxu0 %v158
    %1102 = vmatprep.subr.mxu0 0.0
    %1103 = vmatpush1.msra.mxu0 %v159
    %1104 = vmatprep.subr.mxu0 0.0
    %1105 = vmatpush1.msra.mxu0 %v160
    %1106 = vmatprep.subr.mxu0 0.0
    %1107 = vmatpush1.msra.mxu0 %v161
    %1108 = vmatprep.subr.mxu0 0.0
    %1109 = vmatpush1.msra.mxu0 %v162
    %1110 = vmatprep.subr.mxu0 0.0
    %1111 = vmatpush1.msra.mxu0 %v163
    %1112 = vmatprep.subr.mxu0 0.0
    %1113 = vmatpush1.msra.mxu0 %v164
    %1114 = vmatprep.subr.mxu0 0.0
    %1115 = vmatpush1.msra.mxu0 %v165
    %1116 = vmatprep.subr.mxu0 0.0
    %1117 = vmatpush1.msra.mxu0 %v166
    %1118 = vmatprep.subr.mxu0 0.0
    %1119 = vmatpush1.msra.mxu0 %v167
    %1120 = vmatprep.mubr.f32.mxu0 %v1055
    %1121 = vmatmul.mubr.f32.gmra.mrb[0].mxu0 %v1054
    %v1122 = vpop.f32.mrb[0].mxu0
    %v1123 = vadd.f32 0.0, %v1122
    %v1124 = vpop.f32.mrb[0].mxu0
    %1125 = vdwg.mxu0
    %v1126 = vsel %vm562, %v1123, -inf
    %1127 = vmax.xlane.f32.xlu0 %v1126
    %v1128 = vpop.xlane.xlu0 %1127
    %v1129 = vsub.f32 %v1123, %v1128
    %v1130 = vmul.f32 %v1129, 1.442695
    %v1131 = vpow.pop %v1130
    %v1132 = vsel %vm562, %v1131, 0.0
    %1133 = vadd.xlane.f32.xlu0 %v1132
    %v1134 = vpop.xlane.xlu0 %1133
    %v1135 = vrcp.pop %v1134
    %v1136 = vmul.f32 %v1131, %v1135
    %v1137 = vlaneseq
    %v1138 = vshrl.u32 %v1137, 7
    %v1139 = vsub.s32 0, %v1138
    %v1140 = vrot.slane %v1136, %v1139
    %1142 = vbcast.lane.b32.xlu0 %v1140, 256
    %v1143 = vpop.permute.xlu0 %1142
    %v1144 = vlaneseq
    %v1145 = vshrl.u32 %v1144, 7
    %v1146 = vsub.s32 1, %v1145
    %v1147 = vrot.slane %v1136, %v1146
    %1149 = vbcast.lane.b32.xlu0 %v1147, 256
    %v1150 = vpop.permute.xlu0 %1149
    %v1151 = vlaneseq
    %v1152 = vshrl.u32 %v1151, 7
    %v1153 = vsub.s32 2, %v1152
    %v1154 = vrot.slane %v1136, %v1153
    %1156 = vbcast.lane.b32.xlu0 %v1154, 256
    %v1157 = vpop.permute.xlu0 %1156
    %v1158 = vlaneseq
    %v1159 = vshrl.u32 %v1158, 7
    %v1160 = vsub.s32 3, %v1159
    %v1161 = vrot.slane %v1136, %v1160
    %1163 = vbcast.lane.b32.xlu0 %v1161, 256
    %v1164 = vpop.permute.xlu0 %1163
    %v1165 = vlaneseq
    %v1166 = vshrl.u32 %v1165, 7
    %v1167 = vsub.s32 4, %v1166
    %v1168 = vrot.slane %v1136, %v1167
    %1170 = vbcast.lane.b32.xlu0 %v1168, 256
    %v1171 = vpop.permute.xlu0 %1170
    %v1172 = vlaneseq
    %v1173 = vshrl.u32 %v1172, 7
    %v1174 = vsub.s32 5, %v1173
    %v1175 = vrot.slane %v1136, %v1174
    %1177 = vbcast.lane.b32.xlu0 %v1175, 256
    %v1178 = vpop.permute.xlu0 %1177
    %v1179 = vlaneseq
    %v1180 = vshrl.u32 %v1179, 7
    %v1181 = vsub.s32 6, %v1180
    %v1182 = vrot.slane %v1136, %v1181
    %1184 = vbcast.lane.b32.xlu0 %v1182, 256
    %v1185 = vpop.permute.xlu0 %1184
    %v1186 = vlaneseq
    %v1187 = vshrl.u32 %v1186, 7
    %v1188 = vsub.s32 7, %v1187
    %v1189 = vrot.slane %v1136, %v1188
    %1191 = vbcast.lane.b32.xlu0 %v1189, 256
    %v1192 = vpop.permute.xlu0 %1191
    %v1193 = vmul.f32 %v1143, %v40
    %v1194 = vmul.f32 %v1150, %v41
    %v1195 = vmul.f32 %v1157, %v42
    %v1196 = vmul.f32 %v1164, %v43
    %v1197 = vmul.f32 %v1171, %v44
    %v1198 = vmul.f32 %v1178, %v45
    %v1199 = vmul.f32 %v1185, %v46
    %v1200 = vmul.f32 %v1192, %v47
    %v1201 = vsel %vm306, %v1193, 0.0
    %v1202 = vrot.slane %v1201, 4
    %v1203 = vadd.f32 %v1201, %v1202
    %v1204 = vrot.slane %v1203, 2
    %v1205 = vadd.f32 %v1203, %v1204
    %v1206 = vrot.slane %v1205, 1
    %v1207 = vadd.f32 %v1205, %v1206
    %v1208 = vsel %vm306, %v1194, 0.0
    %v1209 = vrot.slane %v1208, 4
    %v1210 = vadd.f32 %v1208, %v1209
    %v1211 = vrot.slane %v1210, 2
    %v1212 = vadd.f32 %v1210, %v1211
    %v1213 = vrot.slane %v1212, 1
    %v1214 = vadd.f32 %v1212, %v1213
    %v1215 = vsel %vm306, %v1195, 0.0
    %v1216 = vrot.slane %v1215, 4
    %v1217 = vadd.f32 %v1215, %v1216
    %v1218 = vrot.slane %v1217, 2
    %v1219 = vadd.f32 %v1217, %v1218
    %v1220 = vrot.slane %v1219, 1
    %v1221 = vadd.f32 %v1219, %v1220
    %v1222 = vsel %vm306, %v1196, 0.0
    %v1223 = vrot.slane %v1222, 4
    %v1224 = vadd.f32 %v1222, %v1223
    %v1225 = vrot.slane %v1224, 2
    %v1226 = vadd.f32 %v1224, %v1225
    %v1227 = vrot.slane %v1226, 1
    %v1228 = vadd.f32 %v1226, %v1227
    %v1229 = vsel %vm306, %v1197, 0.0
    %v1230 = vrot.slane %v1229, 4
    %v1231 = vadd.f32 %v1229, %v1230
    %v1232 = vrot.slane %v1231, 2
    %v1233 = vadd.f32 %v1231, %v1232
    %v1234 = vrot.slane %v1233, 1
    %v1235 = vadd.f32 %v1233, %v1234
    %v1236 = vsel %vm306, %v1198, 0.0
    %v1237 = vrot.slane %v1236, 4
    %v1238 = vadd.f32 %v1236, %v1237
    %v1239 = vrot.slane %v1238, 2
    %v1240 = vadd.f32 %v1238, %v1239
    %v1241 = vrot.slane %v1240, 1
    %v1242 = vadd.f32 %v1240, %v1241
    %v1243 = vsel %vm306, %v1199, 0.0
    %v1244 = vrot.slane %v1243, 4
    %v1245 = vadd.f32 %v1243, %v1244
    %v1246 = vrot.slane %v1245, 2
    %v1247 = vadd.f32 %v1245, %v1246
    %v1248 = vrot.slane %v1247, 1
    %v1249 = vadd.f32 %v1247, %v1248
    %v1250 = vsel %vm306, %v1200, 0.0
    %v1251 = vrot.slane %v1250, 4
    %v1252 = vadd.f32 %v1250, %v1251
    %v1253 = vrot.slane %v1252, 2
    %v1254 = vadd.f32 %v1252, %v1253
    %v1255 = vrot.slane %v1254, 1
    %v1256 = vadd.f32 %v1254, %v1255
    %s1257 = scalar_lea.vmem %s2, 8
    %v1258 = vld [vmem:[%s1257] sm:$0xff]
    %1259 = vmatprep.subr.mxu0 0.0
    %1260 = vmatpush1.msra.mxu0 %v168
    %1261 = vmatprep.subr.mxu0 0.0
    %1262 = vmatpush1.msra.mxu0 %v169
    %1263 = vmatprep.subr.mxu0 0.0
    %1264 = vmatpush1.msra.mxu0 %v170
    %1265 = vmatprep.subr.mxu0 0.0
    %1266 = vmatpush1.msra.mxu0 %v171
    %1267 = vmatprep.subr.mxu0 0.0
    %1268 = vmatpush1.msra.mxu0 0.0
    %1269 = vmatprep.subr.mxu0 0.0
    %1270 = vmatpush1.msra.mxu0 0.0
    %1271 = vmatprep.subr.mxu0 0.0
    %1272 = vmatpush1.msra.mxu0 0.0
    %1273 = vmatprep.subr.mxu0 0.0
    %1274 = vmatpush1.msra.mxu0 0.0
    %1275 = vmatprep.subr.mxu0 0.0
    %1276 = vmatpush1.msra.mxu0 0.0
    %1277 = vmatprep.subr.mxu0 0.0
    %1278 = vmatpush1.msra.mxu0 0.0
    %1279 = vmatprep.subr.mxu0 0.0
    %1280 = vmatpush1.msra.mxu0 0.0
    %1281 = vmatprep.subr.mxu0 0.0
    %1282 = vmatpush1.msra.mxu0 0.0
    %1283 = vmatprep.subr.mxu0 0.0
    %1284 = vmatpush1.msra.mxu0 0.0
    %1285 = vmatprep.subr.mxu0 0.0
    %1286 = vmatpush1.msra.mxu0 0.0
    %1287 = vmatprep.subr.mxu0 0.0
    %1288 = vmatpush1.msra.mxu0 0.0
    %1289 = vmatprep.subr.mxu0 0.0
    %1290 = vmatpush1.msra.mxu0 0.0
    %1291 = vmatprep.subr.mxu0 0.0
    %1292 = vmatpush1.msra.mxu0 0.0
    %1293 = vmatprep.subr.mxu0 0.0
    %1294 = vmatpush1.msra.mxu0 0.0
    %1295 = vmatprep.subr.mxu0 0.0
    %1296 = vmatpush1.msra.mxu0 0.0
    %1297 = vmatprep.subr.mxu0 0.0
    %1298 = vmatpush1.msra.mxu0 0.0
    %1299 = vmatprep.subr.mxu0 0.0
    %1300 = vmatpush1.msra.mxu0 0.0
    %1301 = vmatprep.subr.mxu0 0.0
    %1302 = vmatpush1.msra.mxu0 0.0
    %1303 = vmatprep.subr.mxu0 0.0
    %1304 = vmatpush1.msra.mxu0 0.0
    %1305 = vmatprep.subr.mxu0 0.0
    %1306 = vmatpush1.msra.mxu0 0.0
    %1307 = vmatprep.subr.mxu0 0.0
    %1308 = vmatpush1.msra.mxu0 0.0
    %1309 = vmatprep.subr.mxu0 0.0
    %1310 = vmatpush1.msra.mxu0 0.0
    %1311 = vmatprep.subr.mxu0 0.0
    %1312 = vmatpush1.msra.mxu0 0.0
    %1313 = vmatprep.subr.mxu0 0.0
    %1314 = vmatpush1.msra.mxu0 0.0
    %1315 = vmatprep.subr.mxu0 0.0
    %1316 = vmatpush1.msra.mxu0 0.0
    %1317 = vmatprep.subr.mxu0 0.0
    %1318 = vmatpush1.msra.mxu0 0.0
    %1319 = vmatprep.subr.mxu0 0.0
    %1320 = vmatpush1.msra.mxu0 0.0
    %1321 = vmatprep.subr.mxu0 0.0
    %1322 = vmatpush1.msra.mxu0 0.0
    %1323 = vmatprep.mubr.f32.mxu0 0.0
    %1324 = vmatmul.mubr.f32.gmra.mrb[0].mxu0 %v979
    %v1325 = vpop.f32.mrb[0].mxu0
    %v1326 = vadd.f32 0.0, %v1325
    %v1327 = vpop.f32.mrb[0].mxu0
    %1328 = vdwg.mxu0
    %v1337 = vsel %vm773, %v1214, %v1207
    %v1338 = vsel %vm775, %v1221, %v1337
    %v1339 = vsel %vm777, %v1228, %v1338
    %v1340 = vsel %vm779, %v1235, %v1339
    %v1341 = vsel %vm781, %v1242, %v1340
    %v1342 = vsel %vm783, %v1249, %v1341
    %v1343 = vsel %vm785, %v1256, %v1342
    %v1344 = vsel %vm306, %v1343, 0
    %1346 = vmatprep.subr.mxu0 0.0
    %1347 = vmatpush1.msra.mxu0 %v172
    %1348 = vmatprep.subr.mxu0 0.0
    %1349 = vmatpush1.msra.mxu0 %v173
    %1350 = vmatprep.subr.mxu0 0.0
    %1351 = vmatpush1.msra.mxu0 %v174
    %1352 = vmatprep.subr.mxu0 0.0
    %1353 = vmatpush1.msra.mxu0 %v175
    %1354 = vmatprep.subr.mxu0 0.0
    %1355 = vmatpush1.msra.mxu0 0.0
    %1356 = vmatprep.subr.mxu0 0.0
    %1357 = vmatpush1.msra.mxu0 0.0
    %1358 = vmatprep.subr.mxu0 0.0
    %1359 = vmatpush1.msra.mxu0 0.0
    %1360 = vmatprep.subr.mxu0 0.0
    %1361 = vmatpush1.msra.mxu0 0.0
    %1362 = vmatprep.subr.mxu0 0.0
    %1363 = vmatpush1.msra.mxu0 0.0
    %1364 = vmatprep.subr.mxu0 0.0
    %1365 = vmatpush1.msra.mxu0 0.0
    %1366 = vmatprep.subr.mxu0 0.0
    %1367 = vmatpush1.msra.mxu0 0.0
    %1368 = vmatprep.subr.mxu0 0.0
    %1369 = vmatpush1.msra.mxu0 0.0
    %1370 = vmatprep.subr.mxu0 0.0
    %1371 = vmatpush1.msra.mxu0 0.0
    %1372 = vmatprep.subr.mxu0 0.0
    %1373 = vmatpush1.msra.mxu0 0.0
    %1374 = vmatprep.subr.mxu0 0.0
    %1375 = vmatpush1.msra.mxu0 0.0
    %1376 = vmatprep.subr.mxu0 0.0
    %1377 = vmatpush1.msra.mxu0 0.0
    %1378 = vmatprep.subr.mxu0 0.0
    %1379 = vmatpush1.msra.mxu0 0.0
    %1380 = vmatprep.subr.mxu0 0.0
    %1381 = vmatpush1.msra.mxu0 0.0
    %1382 = vmatprep.subr.mxu0 0.0
    %1383 = vmatpush1.msra.mxu0 0.0
    %1384 = vmatprep.subr.mxu0 0.0
    %1385 = vmatpush1.msra.mxu0 0.0
    %1386 = vmatprep.subr.mxu0 0.0
    %1387 = vmatpush1.msra.mxu0 0.0
    %1388 = vmatprep.subr.mxu0 0.0
    %1389 = vmatpush1.msra.mxu0 0.0
    %1390 = vmatprep.subr.mxu0 0.0
    %1391 = vmatpush1.msra.mxu0 0.0
    %1392 = vmatprep.subr.mxu0 0.0
    %1393 = vmatpush1.msra.mxu0 0.0
    %1394 = vmatprep.subr.mxu0 0.0
    %1395 = vmatpush1.msra.mxu0 0.0
    %1396 = vmatprep.subr.mxu0 0.0
    %1397 = vmatpush1.msra.mxu0 0.0
    %1398 = vmatprep.subr.mxu0 0.0
    %1399 = vmatpush1.msra.mxu0 0.0
    %1400 = vmatprep.subr.mxu0 0.0
    %1401 = vmatpush1.msra.mxu0 0.0
    %1402 = vmatprep.subr.mxu0 0.0
    %1403 = vmatpush1.msra.mxu0 0.0
    %1404 = vmatprep.subr.mxu0 0.0
    %1405 = vmatpush1.msra.mxu0 0.0
    %1406 = vmatprep.subr.mxu0 0.0
    %1407 = vmatpush1.msra.mxu0 0.0
    %1408 = vmatprep.subr.mxu0 0.0
    %1409 = vmatpush1.msra.mxu0 0.0
    %1410 = vmatprep.mubr.f32.mxu0 0.0
    %1411 = vmatmul.mubr.f32.gmra.mrb[0].mxu0 %v1344
    %v1412 = vpop.f32.mrb[0].mxu0
    %v1413 = vadd.f32 %v1326, %v1412
    %v1414 = vpop.f32.mrb[0].mxu0
    %1415 = vdwg.mxu0
    %1417 = vset.pattern.permute.xlu0 0
    %1418 = vperm.xlu0 %1417, %v1258
    %v1419 = vpop.permute.xlu0 %1418
    %v1421 = vmul.f32 %v1419, %v867
    %v1422 = vadd.f32 %v1413, %v1421
    %v1423 = vadd.f32 %v1422, %v873
    %v1424 = vxor.u32 %v1423, 2147483648
    %v1425 = vmul.f32 %v1424, 1.442695
    %v1426 = vpow.pop %v1425
    %v1427 = vadd.f32 %v1426, 1.0
    %v1428 = vrcp.pop %v1427
    %v1429 = vmul.f32 1.0, %v1428
    %v1430 = vmul.f32 %v1429, 2.0
    %v1431 = vsub.f32 %v1430, 1.0
    %v1432 = vmul.f32 %v1429, %v893
    %1434 = vrot.lane.b32.xlu0 %v1431, 64
    %v1435 = vpop.permute.xlu0 %1434
    %v1437 = vmul.f32 %v1429, %v1435
    %1439 = vrot.lane.b32.xlu0 %v1437, 32
    %v1440 = vpop.permute.xlu0 %1439
    %v1442 = vadd.f32 %v1432, %v1440
    %v1443 = vtanh.pop %v1442
    %1445 = vrot.lane.b32.xlu0 %v1443, 64
    %v1446 = vpop.permute.xlu0 %1445
    %v1448 = vmul.f32 %v1429, %v1446
    %1450 = vrot.lane.b32.xlu0 %v1442, 96
    %v1451 = vpop.permute.xlu0 %1450
    %v1452 = vsel %vm306, %v1451, 0
    %1454 = vmatprep.subr.mxu0 %v285
    %1455 = vmatpush1.msra.mxu0 %v282
    %1456 = vmatprep.subr.mxu0 %v289
    %1457 = vmatpush1.msra.mxu0 %v287
    %1458 = vmatprep.subr.mxu0 %v293
    %1459 = vmatpush1.msra.mxu0 %v291
    %1460 = vmatprep.subr.mxu0 %v297
    %1461 = vmatpush1.msra.mxu0 %v295
    %1462 = vmatprep.subr.mxu0 0.0
    %1463 = vmatpush1.msra.mxu0 0.0
    %1464 = vmatprep.subr.mxu0 0.0
    %1465 = vmatpush1.msra.mxu0 0.0
    %1466 = vmatprep.subr.mxu0 0.0
    %1467 = vmatpush1.msra.mxu0 0.0
    %1468 = vmatprep.subr.mxu0 0.0
    %1469 = vmatpush1.msra.mxu0 0.0
    %1470 = vmatprep.subr.mxu0 0.0
    %1471 = vmatpush1.msra.mxu0 0.0
    %1472 = vmatprep.subr.mxu0 0.0
    %1473 = vmatpush1.msra.mxu0 0.0
    %1474 = vmatprep.subr.mxu0 0.0
    %1475 = vmatpush1.msra.mxu0 0.0
    %1476 = vmatprep.subr.mxu0 0.0
    %1477 = vmatpush1.msra.mxu0 0.0
    %1478 = vmatprep.subr.mxu0 0.0
    %1479 = vmatpush1.msra.mxu0 0.0
    %1480 = vmatprep.subr.mxu0 0.0
    %1481 = vmatpush1.msra.mxu0 0.0
    %1482 = vmatprep.subr.mxu0 0.0
    %1483 = vmatpush1.msra.mxu0 0.0
    %1484 = vmatprep.subr.mxu0 0.0
    %1485 = vmatpush1.msra.mxu0 0.0
    %1486 = vmatprep.subr.mxu0 0.0
    %1487 = vmatpush1.msra.mxu0 0.0
    %1488 = vmatprep.subr.mxu0 0.0
    %1489 = vmatpush1.msra.mxu0 0.0
    %1490 = vmatprep.subr.mxu0 0.0
    %1491 = vmatpush1.msra.mxu0 0.0
    %1492 = vmatprep.subr.mxu0 0.0
    %1493 = vmatpush1.msra.mxu0 0.0
    %1494 = vmatprep.subr.mxu0 0.0
    %1495 = vmatpush1.msra.mxu0 0.0
    %1496 = vmatprep.subr.mxu0 0.0
    %1497 = vmatpush1.msra.mxu0 0.0
    %1498 = vmatprep.subr.mxu0 0.0
    %1499 = vmatpush1.msra.mxu0 0.0
    %1500 = vmatprep.subr.mxu0 0.0
    %1501 = vmatpush1.msra.mxu0 0.0
    %1502 = vmatprep.subr.mxu0 0.0
    %1503 = vmatpush1.msra.mxu0 0.0
    %1504 = vmatprep.subr.mxu0 0.0
    %1505 = vmatpush1.msra.mxu0 0.0
    %1506 = vmatprep.subr.mxu0 0.0
    %1507 = vmatpush1.msra.mxu0 0.0
    %1508 = vmatprep.subr.mxu0 0.0
    %1509 = vmatpush1.msra.mxu0 0.0
    %1510 = vmatprep.subr.mxu0 0.0
    %1511 = vmatpush1.msra.mxu0 0.0
    %1512 = vmatprep.subr.mxu0 0.0
    %1513 = vmatpush1.msra.mxu0 0.0
    %1514 = vmatprep.subr.mxu0 0.0
    %1515 = vmatpush1.msra.mxu0 0.0
    %1516 = vmatprep.subr.mxu0 0.0
    %1517 = vmatpush1.msra.mxu0 0.0
    %1518 = vmatprep.mubr.f32.mxu0 0.0
    %1519 = vmatmul.mubr.f32.gmra.mrb[0].mxu0 %v1452
    %v1520 = vpop.f32.mrb[0].mxu0
    %v1521 = vadd.f32 0.0, %v1520
    %v1522 = vpop.f32.mrb[0].mxu0
    %v1523 = vadd.f32 0.0, %v1522
    %1524 = vdwg.mxu0
    %1526 = vrot.lane.b32.xlu0 %v1448, 32
    %v1527 = vpop.permute.xlu0 %1526
    %v1528 = vsel %vm306, %v1527, 0
    %1530 = vmatprep.subr.mxu0 %v396
    %1531 = vmatpush1.msra.mxu0 %v393
    %1532 = vmatprep.subr.mxu0 %v400
    %1533 = vmatpush1.msra.mxu0 %v398
    %1534 = vmatprep.subr.mxu0 %v404
    %1535 = vmatpush1.msra.mxu0 %v402
    %1536 = vmatprep.subr.mxu0 %v408
    %1537 = vmatpush1.msra.mxu0 %v406
    %1538 = vmatprep.subr.mxu0 0.0
    %1539 = vmatpush1.msra.mxu0 0.0
    %1540 = vmatprep.subr.mxu0 0.0
    %1541 = vmatpush1.msra.mxu0 0.0
    %1542 = vmatprep.subr.mxu0 0.0
    %1543 = vmatpush1.msra.mxu0 0.0
    %1544 = vmatprep.subr.mxu0 0.0
    %1545 = vmatpush1.msra.mxu0 0.0
    %1546 = vmatprep.subr.mxu0 0.0
    %1547 = vmatpush1.msra.mxu0 0.0
    %1548 = vmatprep.subr.mxu0 0.0
    %1549 = vmatpush1.msra.mxu0 0.0
    %1550 = vmatprep.subr.mxu0 0.0
    %1551 = vmatpush1.msra.mxu0 0.0
    %1552 = vmatprep.subr.mxu0 0.0
    %1553 = vmatpush1.msra.mxu0 0.0
    %1554 = vmatprep.subr.mxu0 0.0
    %1555 = vmatpush1.msra.mxu0 0.0
    %1556 = vmatprep.subr.mxu0 0.0
    %1557 = vmatpush1.msra.mxu0 0.0
    %1558 = vmatprep.subr.mxu0 0.0
    %1559 = vmatpush1.msra.mxu0 0.0
    %1560 = vmatprep.subr.mxu0 0.0
    %1561 = vmatpush1.msra.mxu0 0.0
    %1562 = vmatprep.subr.mxu0 0.0
    %1563 = vmatpush1.msra.mxu0 0.0
    %1564 = vmatprep.subr.mxu0 0.0
    %1565 = vmatpush1.msra.mxu0 0.0
    %1566 = vmatprep.subr.mxu0 0.0
    %1567 = vmatpush1.msra.mxu0 0.0
    %1568 = vmatprep.subr.mxu0 0.0
    %1569 = vmatpush1.msra.mxu0 0.0
    %1570 = vmatprep.subr.mxu0 0.0
    %1571 = vmatpush1.msra.mxu0 0.0
    %1572 = vmatprep.subr.mxu0 0.0
    %1573 = vmatpush1.msra.mxu0 0.0
    %1574 = vmatprep.subr.mxu0 0.0
    %1575 = vmatpush1.msra.mxu0 0.0
    %1576 = vmatprep.subr.mxu0 0.0
    %1577 = vmatpush1.msra.mxu0 0.0
    %1578 = vmatprep.subr.mxu0 0.0
    %1579 = vmatpush1.msra.mxu0 0.0
    %1580 = vmatprep.subr.mxu0 0.0
    %1581 = vmatpush1.msra.mxu0 0.0
    %1582 = vmatprep.subr.mxu0 0.0
    %1583 = vmatpush1.msra.mxu0 0.0
    %1584 = vmatprep.subr.mxu0 0.0
    %1585 = vmatpush1.msra.mxu0 0.0
    %1586 = vmatprep.subr.mxu0 0.0
    %1587 = vmatpush1.msra.mxu0 0.0
    %1588 = vmatprep.subr.mxu0 0.0
    %1589 = vmatpush1.msra.mxu0 0.0
    %1590 = vmatprep.subr.mxu0 0.0
    %1591 = vmatpush1.msra.mxu0 0.0
    %1592 = vmatprep.subr.mxu0 0.0
    %1593 = vmatpush1.msra.mxu0 0.0
    %1594 = vmatprep.mubr.f32.mxu0 0.0
    %1595 = vmatmul.mubr.f32.gmra.mrb[0].mxu0 %v1528
    %v1596 = vpop.f32.mrb[0].mxu0
    %v1597 = vadd.f32 %v1521, %v1596
    %v1598 = vpop.f32.mrb[0].mxu0
    %v1599 = vadd.f32 %v1523, %v1598
    %1600 = vdwg.mxu0
    %v1601 = vadd.f32 %v265, %v1597
    %v1602 = vadd.f32 %v267, %v1599
    %v1603 = vtanh.pop %v1601
    %v1604 = vtanh.pop %v1602
    %1605 = vmatprep.subr.mxu0 0.0
    %1606 = vmatpush1.msra.mxu0 %v136
    %1607 = vmatprep.subr.mxu0 0.0
    %1608 = vmatpush1.msra.mxu0 %v137
    %1609 = vmatprep.subr.mxu0 0.0
    %1610 = vmatpush1.msra.mxu0 %v138
    %1611 = vmatprep.subr.mxu0 0.0
    %1612 = vmatpush1.msra.mxu0 %v139
    %1613 = vmatprep.subr.mxu0 0.0
    %1614 = vmatpush1.msra.mxu0 %v140
    %1615 = vmatprep.subr.mxu0 0.0
    %1616 = vmatpush1.msra.mxu0 %v141
    %1617 = vmatprep.subr.mxu0 0.0
    %1618 = vmatpush1.msra.mxu0 %v142
    %1619 = vmatprep.subr.mxu0 0.0
    %1620 = vmatpush1.msra.mxu0 %v143
    %1621 = vmatprep.subr.mxu0 0.0
    %1622 = vmatpush1.msra.mxu0 %v144
    %1623 = vmatprep.subr.mxu0 0.0
    %1624 = vmatpush1.msra.mxu0 %v145
    %1625 = vmatprep.subr.mxu0 0.0
    %1626 = vmatpush1.msra.mxu0 %v146
    %1627 = vmatprep.subr.mxu0 0.0
    %1628 = vmatpush1.msra.mxu0 %v147
    %1629 = vmatprep.subr.mxu0 0.0
    %1630 = vmatpush1.msra.mxu0 %v148
    %1631 = vmatprep.subr.mxu0 0.0
    %1632 = vmatpush1.msra.mxu0 %v149
    %1633 = vmatprep.subr.mxu0 0.0
    %1634 = vmatpush1.msra.mxu0 %v150
    %1635 = vmatprep.subr.mxu0 0.0
    %1636 = vmatpush1.msra.mxu0 %v151
    %1637 = vmatprep.subr.mxu0 0.0
    %1638 = vmatpush1.msra.mxu0 %v152
    %1639 = vmatprep.subr.mxu0 0.0
    %1640 = vmatpush1.msra.mxu0 %v153
    %1641 = vmatprep.subr.mxu0 0.0
    %1642 = vmatpush1.msra.mxu0 %v154
    %1643 = vmatprep.subr.mxu0 0.0
    %1644 = vmatpush1.msra.mxu0 %v155
    %1645 = vmatprep.subr.mxu0 0.0
    %1646 = vmatpush1.msra.mxu0 %v156
    %1647 = vmatprep.subr.mxu0 0.0
    %1648 = vmatpush1.msra.mxu0 %v157
    %1649 = vmatprep.subr.mxu0 0.0
    %1650 = vmatpush1.msra.mxu0 %v158
    %1651 = vmatprep.subr.mxu0 0.0
    %1652 = vmatpush1.msra.mxu0 %v159
    %1653 = vmatprep.subr.mxu0 0.0
    %1654 = vmatpush1.msra.mxu0 %v160
    %1655 = vmatprep.subr.mxu0 0.0
    %1656 = vmatpush1.msra.mxu0 %v161
    %1657 = vmatprep.subr.mxu0 0.0
    %1658 = vmatpush1.msra.mxu0 %v162
    %1659 = vmatprep.subr.mxu0 0.0
    %1660 = vmatpush1.msra.mxu0 %v163
    %1661 = vmatprep.subr.mxu0 0.0
    %1662 = vmatpush1.msra.mxu0 %v164
    %1663 = vmatprep.subr.mxu0 0.0
    %1664 = vmatpush1.msra.mxu0 %v165
    %1665 = vmatprep.subr.mxu0 0.0
    %1666 = vmatpush1.msra.mxu0 %v166
    %1667 = vmatprep.subr.mxu0 0.0
    %1668 = vmatpush1.msra.mxu0 %v167
    %1669 = vmatprep.mubr.f32.mxu0 %v1604
    %1670 = vmatmul.mubr.f32.gmra.mrb[0].mxu0 %v1603
    %v1671 = vpop.f32.mrb[0].mxu0
    %v1672 = vadd.f32 0.0, %v1671
    %v1673 = vpop.f32.mrb[0].mxu0
    %1674 = vdwg.mxu0
    %v1675 = vsel %vm562, %v1672, -inf
    %1676 = vmax.xlane.f32.xlu0 %v1675
    %v1677 = vpop.xlane.xlu0 %1676
    %v1678 = vsub.f32 %v1672, %v1677
    %v1679 = vmul.f32 %v1678, 1.442695
    %v1680 = vpow.pop %v1679
    %v1681 = vsel %vm562, %v1680, 0.0
    %1682 = vadd.xlane.f32.xlu0 %v1681
    %v1683 = vpop.xlane.xlu0 %1682
    %v1684 = vrcp.pop %v1683
    %v1685 = vmul.f32 %v1680, %v1684
    %v1686 = vlaneseq
    %v1687 = vshrl.u32 %v1686, 7
    %v1688 = vsub.s32 0, %v1687
    %v1689 = vrot.slane %v1685, %v1688
    %1691 = vbcast.lane.b32.xlu0 %v1689, 256
    %v1692 = vpop.permute.xlu0 %1691
    %v1693 = vlaneseq
    %v1694 = vshrl.u32 %v1693, 7
    %v1695 = vsub.s32 1, %v1694
    %v1696 = vrot.slane %v1685, %v1695
    %1698 = vbcast.lane.b32.xlu0 %v1696, 256
    %v1699 = vpop.permute.xlu0 %1698
    %v1700 = vlaneseq
    %v1701 = vshrl.u32 %v1700, 7
    %v1702 = vsub.s32 2, %v1701
    %v1703 = vrot.slane %v1685, %v1702
    %1705 = vbcast.lane.b32.xlu0 %v1703, 256
    %v1706 = vpop.permute.xlu0 %1705
    %v1707 = vlaneseq
    %v1708 = vshrl.u32 %v1707, 7
    %v1709 = vsub.s32 3, %v1708
    %v1710 = vrot.slane %v1685, %v1709
    %1712 = vbcast.lane.b32.xlu0 %v1710, 256
    %v1713 = vpop.permute.xlu0 %1712
    %v1714 = vlaneseq
    %v1715 = vshrl.u32 %v1714, 7
    %v1716 = vsub.s32 4, %v1715
    %v1717 = vrot.slane %v1685, %v1716
    %1719 = vbcast.lane.b32.xlu0 %v1717, 256
    %v1720 = vpop.permute.xlu0 %1719
    %v1721 = vlaneseq
    %v1722 = vshrl.u32 %v1721, 7
    %v1723 = vsub.s32 5, %v1722
    %v1724 = vrot.slane %v1685, %v1723
    %1726 = vbcast.lane.b32.xlu0 %v1724, 256
    %v1727 = vpop.permute.xlu0 %1726
    %v1728 = vlaneseq
    %v1729 = vshrl.u32 %v1728, 7
    %v1730 = vsub.s32 6, %v1729
    %v1731 = vrot.slane %v1685, %v1730
    %1733 = vbcast.lane.b32.xlu0 %v1731, 256
    %v1734 = vpop.permute.xlu0 %1733
    %v1735 = vlaneseq
    %v1736 = vshrl.u32 %v1735, 7
    %v1737 = vsub.s32 7, %v1736
    %v1738 = vrot.slane %v1685, %v1737
    %1740 = vbcast.lane.b32.xlu0 %v1738, 256
    %v1741 = vpop.permute.xlu0 %1740
    %v1742 = vmul.f32 %v1692, %v40
    %v1743 = vmul.f32 %v1699, %v41
    %v1744 = vmul.f32 %v1706, %v42
    %v1745 = vmul.f32 %v1713, %v43
    %v1746 = vmul.f32 %v1720, %v44
    %v1747 = vmul.f32 %v1727, %v45
    %v1748 = vmul.f32 %v1734, %v46
    %v1749 = vmul.f32 %v1741, %v47
    %v1750 = vsel %vm306, %v1742, 0.0
    %v1751 = vrot.slane %v1750, 4
    %v1752 = vadd.f32 %v1750, %v1751
    %v1753 = vrot.slane %v1752, 2
    %v1754 = vadd.f32 %v1752, %v1753
    %v1755 = vrot.slane %v1754, 1
    %v1756 = vadd.f32 %v1754, %v1755
    %v1757 = vsel %vm306, %v1743, 0.0
    %v1758 = vrot.slane %v1757, 4
    %v1759 = vadd.f32 %v1757, %v1758
    %v1760 = vrot.slane %v1759, 2
    %v1761 = vadd.f32 %v1759, %v1760
    %v1762 = vrot.slane %v1761, 1
    %v1763 = vadd.f32 %v1761, %v1762
    %v1764 = vsel %vm306, %v1744, 0.0
    %v1765 = vrot.slane %v1764, 4
    %v1766 = vadd.f32 %v1764, %v1765
    %v1767 = vrot.slane %v1766, 2
    %v1768 = vadd.f32 %v1766, %v1767
    %v1769 = vrot.slane %v1768, 1
    %v1770 = vadd.f32 %v1768, %v1769
    %v1771 = vsel %vm306, %v1745, 0.0
    %v1772 = vrot.slane %v1771, 4
    %v1773 = vadd.f32 %v1771, %v1772
    %v1774 = vrot.slane %v1773, 2
    %v1775 = vadd.f32 %v1773, %v1774
    %v1776 = vrot.slane %v1775, 1
    %v1777 = vadd.f32 %v1775, %v1776
    %v1778 = vsel %vm306, %v1746, 0.0
    %v1779 = vrot.slane %v1778, 4
    %v1780 = vadd.f32 %v1778, %v1779
    %v1781 = vrot.slane %v1780, 2
    %v1782 = vadd.f32 %v1780, %v1781
    %v1783 = vrot.slane %v1782, 1
    %v1784 = vadd.f32 %v1782, %v1783
    %v1785 = vsel %vm306, %v1747, 0.0
    %v1786 = vrot.slane %v1785, 4
    %v1787 = vadd.f32 %v1785, %v1786
    %v1788 = vrot.slane %v1787, 2
    %v1789 = vadd.f32 %v1787, %v1788
    %v1790 = vrot.slane %v1789, 1
    %v1791 = vadd.f32 %v1789, %v1790
    %v1792 = vsel %vm306, %v1748, 0.0
    %v1793 = vrot.slane %v1792, 4
    %v1794 = vadd.f32 %v1792, %v1793
    %v1795 = vrot.slane %v1794, 2
    %v1796 = vadd.f32 %v1794, %v1795
    %v1797 = vrot.slane %v1796, 1
    %v1798 = vadd.f32 %v1796, %v1797
    %v1799 = vsel %vm306, %v1749, 0.0
    %v1800 = vrot.slane %v1799, 4
    %v1801 = vadd.f32 %v1799, %v1800
    %v1802 = vrot.slane %v1801, 2
    %v1803 = vadd.f32 %v1801, %v1802
    %v1804 = vrot.slane %v1803, 1
    %v1805 = vadd.f32 %v1803, %v1804
    %s1806 = scalar_lea.vmem %s2, 16
    %v1807 = vld [vmem:[%s1806] sm:$0xff]
    %1808 = vmatprep.subr.mxu0 0.0
    %1809 = vmatpush1.msra.mxu0 %v168
    %1810 = vmatprep.subr.mxu0 0.0
    %1811 = vmatpush1.msra.mxu0 %v169
    %1812 = vmatprep.subr.mxu0 0.0
    %1813 = vmatpush1.msra.mxu0 %v170
    %1814 = vmatprep.subr.mxu0 0.0
    %1815 = vmatpush1.msra.mxu0 %v171
    %1816 = vmatprep.subr.mxu0 0.0
    %1817 = vmatpush1.msra.mxu0 0.0
    %1818 = vmatprep.subr.mxu0 0.0
    %1819 = vmatpush1.msra.mxu0 0.0
    %1820 = vmatprep.subr.mxu0 0.0
    %1821 = vmatpush1.msra.mxu0 0.0
    %1822 = vmatprep.subr.mxu0 0.0
    %1823 = vmatpush1.msra.mxu0 0.0
    %1824 = vmatprep.subr.mxu0 0.0
    %1825 = vmatpush1.msra.mxu0 0.0
    %1826 = vmatprep.subr.mxu0 0.0
    %1827 = vmatpush1.msra.mxu0 0.0
    %1828 = vmatprep.subr.mxu0 0.0
    %1829 = vmatpush1.msra.mxu0 0.0
    %1830 = vmatprep.subr.mxu0 0.0
    %1831 = vmatpush1.msra.mxu0 0.0
    %1832 = vmatprep.subr.mxu0 0.0
    %1833 = vmatpush1.msra.mxu0 0.0
    %1834 = vmatprep.subr.mxu0 0.0
    %1835 = vmatpush1.msra.mxu0 0.0
    %1836 = vmatprep.subr.mxu0 0.0
    %1837 = vmatpush1.msra.mxu0 0.0
    %1838 = vmatprep.subr.mxu0 0.0
    %1839 = vmatpush1.msra.mxu0 0.0
    %1840 = vmatprep.subr.mxu0 0.0
    %1841 = vmatpush1.msra.mxu0 0.0
    %1842 = vmatprep.subr.mxu0 0.0
    %1843 = vmatpush1.msra.mxu0 0.0
    %1844 = vmatprep.subr.mxu0 0.0
    %1845 = vmatpush1.msra.mxu0 0.0
    %1846 = vmatprep.subr.mxu0 0.0
    %1847 = vmatpush1.msra.mxu0 0.0
    %1848 = vmatprep.subr.mxu0 0.0
    %1849 = vmatpush1.msra.mxu0 0.0
    %1850 = vmatprep.subr.mxu0 0.0
    %1851 = vmatpush1.msra.mxu0 0.0
    %1852 = vmatprep.subr.mxu0 0.0
    %1853 = vmatpush1.msra.mxu0 0.0
    %1854 = vmatprep.subr.mxu0 0.0
    %1855 = vmatpush1.msra.mxu0 0.0
    %1856 = vmatprep.subr.mxu0 0.0
    %1857 = vmatpush1.msra.mxu0 0.0
    %1858 = vmatprep.subr.mxu0 0.0
    %1859 = vmatpush1.msra.mxu0 0.0
    %1860 = vmatprep.subr.mxu0 0.0
    %1861 = vmatpush1.msra.mxu0 0.0
    %1862 = vmatprep.subr.mxu0 0.0
    %1863 = vmatpush1.msra.mxu0 0.0
    %1864 = vmatprep.subr.mxu0 0.0
    %1865 = vmatpush1.msra.mxu0 0.0
    %1866 = vmatprep.subr.mxu0 0.0
    %1867 = vmatpush1.msra.mxu0 0.0
    %1868 = vmatprep.subr.mxu0 0.0
    %1869 = vmatpush1.msra.mxu0 0.0
    %1870 = vmatprep.subr.mxu0 0.0
    %1871 = vmatpush1.msra.mxu0 0.0
    %1872 = vmatprep.mubr.f32.mxu0 0.0
    %1873 = vmatmul.mubr.f32.gmra.mrb[0].mxu0 %v1528
    %v1874 = vpop.f32.mrb[0].mxu0
    %v1875 = vadd.f32 0.0, %v1874
    %v1876 = vpop.f32.mrb[0].mxu0
    %1877 = vdwg.mxu0
    %v1886 = vsel %vm773, %v1763, %v1756
    %v1887 = vsel %vm775, %v1770, %v1886
    %v1888 = vsel %vm777, %v1777, %v1887
    %v1889 = vsel %vm779, %v1784, %v1888
    %v1890 = vsel %vm781, %v1791, %v1889
    %v1891 = vsel %vm783, %v1798, %v1890
    %v1892 = vsel %vm785, %v1805, %v1891
    %v1893 = vsel %vm306, %v1892, 0
    %1895 = vmatprep.subr.mxu0 0.0
    %1896 = vmatpush1.msra.mxu0 %v172
    %1897 = vmatprep.subr.mxu0 0.0
    %1898 = vmatpush1.msra.mxu0 %v173
    %1899 = vmatprep.subr.mxu0 0.0
    %1900 = vmatpush1.msra.mxu0 %v174
    %1901 = vmatprep.subr.mxu0 0.0
    %1902 = vmatpush1.msra.mxu0 %v175
    %1903 = vmatprep.subr.mxu0 0.0
    %1904 = vmatpush1.msra.mxu0 0.0
    %1905 = vmatprep.subr.mxu0 0.0
    %1906 = vmatpush1.msra.mxu0 0.0
    %1907 = vmatprep.subr.mxu0 0.0
    %1908 = vmatpush1.msra.mxu0 0.0
    %1909 = vmatprep.subr.mxu0 0.0
    %1910 = vmatpush1.msra.mxu0 0.0
    %1911 = vmatprep.subr.mxu0 0.0
    %1912 = vmatpush1.msra.mxu0 0.0
    %1913 = vmatprep.subr.mxu0 0.0
    %1914 = vmatpush1.msra.mxu0 0.0
    %1915 = vmatprep.subr.mxu0 0.0
    %1916 = vmatpush1.msra.mxu0 0.0
    %1917 = vmatprep.subr.mxu0 0.0
    %1918 = vmatpush1.msra.mxu0 0.0
    %1919 = vmatprep.subr.mxu0 0.0
    %1920 = vmatpush1.msra.mxu0 0.0
    %1921 = vmatprep.subr.mxu0 0.0
    %1922 = vmatpush1.msra.mxu0 0.0
    %1923 = vmatprep.subr.mxu0 0.0
    %1924 = vmatpush1.msra.mxu0 0.0
    %1925 = vmatprep.subr.mxu0 0.0
    %1926 = vmatpush1.msra.mxu0 0.0
    %1927 = vmatprep.subr.mxu0 0.0
    %1928 = vmatpush1.msra.mxu0 0.0
    %1929 = vmatprep.subr.mxu0 0.0
    %1930 = vmatpush1.msra.mxu0 0.0
    %1931 = vmatprep.subr.mxu0 0.0
    %1932 = vmatpush1.msra.mxu0 0.0
    %1933 = vmatprep.subr.mxu0 0.0
    %1934 = vmatpush1.msra.mxu0 0.0
    %1935 = vmatprep.subr.mxu0 0.0
    %1936 = vmatpush1.msra.mxu0 0.0
    %1937 = vmatprep.subr.mxu0 0.0
    %1938 = vmatpush1.msra.mxu0 0.0
    %1939 = vmatprep.subr.mxu0 0.0
    %1940 = vmatpush1.msra.mxu0 0.0
    %1941 = vmatprep.subr.mxu0 0.0
    %1942 = vmatpush1.msra.mxu0 0.0
    %1943 = vmatprep.subr.mxu0 0.0
    %1944 = vmatpush1.msra.mxu0 0.0
    %1945 = vmatprep.subr.mxu0 0.0
    %1946 = vmatpush1.msra.mxu0 0.0
    %1947 = vmatprep.subr.mxu0 0.0
    %1948 = vmatpush1.msra.mxu0 0.0
    %1949 = vmatprep.subr.mxu0 0.0
    %1950 = vmatpush1.msra.mxu0 0.0
    %1951 = vmatprep.subr.mxu0 0.0
    %1952 = vmatpush1.msra.mxu0 0.0
    %1953 = vmatprep.subr.mxu0 0.0
    %1954 = vmatpush1.msra.mxu0 0.0
    %1955 = vmatprep.subr.mxu0 0.0
    %1956 = vmatpush1.msra.mxu0 0.0
    %1957 = vmatprep.subr.mxu0 0.0
    %1958 = vmatpush1.msra.mxu0 0.0
    %1959 = vmatprep.mubr.f32.mxu0 0.0
    %1960 = vmatmul.mubr.f32.gmra.mrb[0].mxu0 %v1893
    %v1961 = vpop.f32.mrb[0].mxu0
    %v1962 = vadd.f32 %v1875, %v1961
    %v1963 = vpop.f32.mrb[0].mxu0
    %1964 = vdwg.mxu0
    %1966 = vset.pattern.permute.xlu0 0
    %1967 = vperm.xlu0 %1966, %v1807
    %v1968 = vpop.permute.xlu0 %1967
    %v1970 = vmul.f32 %v1968, %v867
    %v1971 = vadd.f32 %v1962, %v1970
    %v1972 = vadd.f32 %v1971, %v873
    %v1973 = vxor.u32 %v1972, 2147483648
    %v1974 = vmul.f32 %v1973, 1.442695
    %v1975 = vpow.pop %v1974
    %v1976 = vadd.f32 %v1975, 1.0
    %v1977 = vrcp.pop %v1976
    %v1978 = vmul.f32 1.0, %v1977
    %v1979 = vmul.f32 %v1978, 2.0
    %v1980 = vsub.f32 %v1979, 1.0
    %v1981 = vmul.f32 %v1978, %v1442
    %1983 = vrot.lane.b32.xlu0 %v1980, 64
    %v1984 = vpop.permute.xlu0 %1983
    %v1986 = vmul.f32 %v1978, %v1984
    %1988 = vrot.lane.b32.xlu0 %v1986, 32
    %v1989 = vpop.permute.xlu0 %1988
    %v1991 = vadd.f32 %v1981, %v1989
    %v1992 = vtanh.pop %v1991
    %1994 = vrot.lane.b32.xlu0 %v1992, 64
    %v1995 = vpop.permute.xlu0 %1994
    %v1997 = vmul.f32 %v1978, %v1995
    %1999 = vrot.lane.b32.xlu0 %v1991, 96
    %v2000 = vpop.permute.xlu0 %1999
    %v2001 = vsel %vm306, %v2000, 0
    %2003 = vmatprep.subr.mxu0 %v285
    %2004 = vmatpush1.msra.mxu0 %v282
    %2005 = vmatprep.subr.mxu0 %v289
    %2006 = vmatpush1.msra.mxu0 %v287
    %2007 = vmatprep.subr.mxu0 %v293
    %2008 = vmatpush1.msra.mxu0 %v291
    %2009 = vmatprep.subr.mxu0 %v297
    %2010 = vmatpush1.msra.mxu0 %v295
    %2011 = vmatprep.subr.mxu0 0.0
    %2012 = vmatpush1.msra.mxu0 0.0
    %2013 = vmatprep.subr.mxu0 0.0
    %2014 = vmatpush1.msra.mxu0 0.0
    %2015 = vmatprep.subr.mxu0 0.0
    %2016 = vmatpush1.msra.mxu0 0.0
    %2017 = vmatprep.subr.mxu0 0.0
    %2018 = vmatpush1.msra.mxu0 0.0
    %2019 = vmatprep.subr.mxu0 0.0
    %2020 = vmatpush1.msra.mxu0 0.0
    %2021 = vmatprep.subr.mxu0 0.0
    %2022 = vmatpush1.msra.mxu0 0.0
    %2023 = vmatprep.subr.mxu0 0.0
    %2024 = vmatpush1.msra.mxu0 0.0
    %2025 = vmatprep.subr.mxu0 0.0
    %2026 = vmatpush1.msra.mxu0 0.0
    %2027 = vmatprep.subr.mxu0 0.0
    %2028 = vmatpush1.msra.mxu0 0.0
    %2029 = vmatprep.subr.mxu0 0.0
    %2030 = vmatpush1.msra.mxu0 0.0
    %2031 = vmatprep.subr.mxu0 0.0
    %2032 = vmatpush1.msra.mxu0 0.0
    %2033 = vmatprep.subr.mxu0 0.0
    %2034 = vmatpush1.msra.mxu0 0.0
    %2035 = vmatprep.subr.mxu0 0.0
    %2036 = vmatpush1.msra.mxu0 0.0
    %2037 = vmatprep.subr.mxu0 0.0
    %2038 = vmatpush1.msra.mxu0 0.0
    %2039 = vmatprep.subr.mxu0 0.0
    %2040 = vmatpush1.msra.mxu0 0.0
    %2041 = vmatprep.subr.mxu0 0.0
    %2042 = vmatpush1.msra.mxu0 0.0
    %2043 = vmatprep.subr.mxu0 0.0
    %2044 = vmatpush1.msra.mxu0 0.0
    %2045 = vmatprep.subr.mxu0 0.0
    %2046 = vmatpush1.msra.mxu0 0.0
    %2047 = vmatprep.subr.mxu0 0.0
    %2048 = vmatpush1.msra.mxu0 0.0
    %2049 = vmatprep.subr.mxu0 0.0
    %2050 = vmatpush1.msra.mxu0 0.0
    %2051 = vmatprep.subr.mxu0 0.0
    %2052 = vmatpush1.msra.mxu0 0.0
    %2053 = vmatprep.subr.mxu0 0.0
    %2054 = vmatpush1.msra.mxu0 0.0
    %2055 = vmatprep.subr.mxu0 0.0
    %2056 = vmatpush1.msra.mxu0 0.0
    %2057 = vmatprep.subr.mxu0 0.0
    %2058 = vmatpush1.msra.mxu0 0.0
    %2059 = vmatprep.subr.mxu0 0.0
    %2060 = vmatpush1.msra.mxu0 0.0
    %2061 = vmatprep.subr.mxu0 0.0
    %2062 = vmatpush1.msra.mxu0 0.0
    %2063 = vmatprep.subr.mxu0 0.0
    %2064 = vmatpush1.msra.mxu0 0.0
    %2065 = vmatprep.subr.mxu0 0.0
    %2066 = vmatpush1.msra.mxu0 0.0
    %2067 = vmatprep.mubr.f32.mxu0 0.0
    %2068 = vmatmul.mubr.f32.gmra.mrb[0].mxu0 %v2001
    %v2069 = vpop.f32.mrb[0].mxu0
    %v2070 = vadd.f32 0.0, %v2069
    %v2071 = vpop.f32.mrb[0].mxu0
    %v2072 = vadd.f32 0.0, %v2071
    %2073 = vdwg.mxu0
    %2075 = vrot.lane.b32.xlu0 %v1997, 32
    %v2076 = vpop.permute.xlu0 %2075
    %v2077 = vsel %vm306, %v2076, 0
    %2079 = vmatprep.subr.mxu0 %v396
    %2080 = vmatpush1.msra.mxu0 %v393
    %2081 = vmatprep.subr.mxu0 %v400
    %2082 = vmatpush1.msra.mxu0 %v398
    %2083 = vmatprep.subr.mxu0 %v404
    %2084 = vmatpush1.msra.mxu0 %v402
    %2085 = vmatprep.subr.mxu0 %v408
    %2086 = vmatpush1.msra.mxu0 %v406
    %2087 = vmatprep.subr.mxu0 0.0
    %2088 = vmatpush1.msra.mxu0 0.0
    %2089 = vmatprep.subr.mxu0 0.0
    %2090 = vmatpush1.msra.mxu0 0.0
    %2091 = vmatprep.subr.mxu0 0.0
    %2092 = vmatpush1.msra.mxu0 0.0
    %2093 = vmatprep.subr.mxu0 0.0
    %2094 = vmatpush1.msra.mxu0 0.0
    %2095 = vmatprep.subr.mxu0 0.0
    %2096 = vmatpush1.msra.mxu0 0.0
    %2097 = vmatprep.subr.mxu0 0.0
    %2098 = vmatpush1.msra.mxu0 0.0
    %2099 = vmatprep.subr.mxu0 0.0
    %2100 = vmatpush1.msra.mxu0 0.0
    %2101 = vmatprep.subr.mxu0 0.0
    %2102 = vmatpush1.msra.mxu0 0.0
    %2103 = vmatprep.subr.mxu0 0.0
    %2104 = vmatpush1.msra.mxu0 0.0
    %2105 = vmatprep.subr.mxu0 0.0
    %2106 = vmatpush1.msra.mxu0 0.0
    %2107 = vmatprep.subr.mxu0 0.0
    %2108 = vmatpush1.msra.mxu0 0.0
    %2109 = vmatprep.subr.mxu0 0.0
    %2110 = vmatpush1.msra.mxu0 0.0
    %2111 = vmatprep.subr.mxu0 0.0
    %2112 = vmatpush1.msra.mxu0 0.0
    %2113 = vmatprep.subr.mxu0 0.0
    %2114 = vmatpush1.msra.mxu0 0.0
    %2115 = vmatprep.subr.mxu0 0.0
    %2116 = vmatpush1.msra.mxu0 0.0
    %2117 = vmatprep.subr.mxu0 0.0
    %2118 = vmatpush1.msra.mxu0 0.0
    %2119 = vmatprep.subr.mxu0 0.0
    %2120 = vmatpush1.msra.mxu0 0.0
    %2121 = vmatprep.subr.mxu0 0.0
    %2122 = vmatpush1.msra.mxu0 0.0
    %2123 = vmatprep.subr.mxu0 0.0
    %2124 = vmatpush1.msra.mxu0 0.0
    %2125 = vmatprep.subr.mxu0 0.0
    %2126 = vmatpush1.msra.mxu0 0.0
    %2127 = vmatprep.subr.mxu0 0.0
    %2128 = vmatpush1.msra.mxu0 0.0
    %2129 = vmatprep.subr.mxu0 0.0
    %2130 = vmatpush1.msra.mxu0 0.0
    %2131 = vmatprep.subr.mxu0 0.0
    %2132 = vmatpush1.msra.mxu0 0.0
    %2133 = vmatprep.subr.mxu0 0.0
    %2134 = vmatpush1.msra.mxu0 0.0
    %2135 = vmatprep.subr.mxu0 0.0
    %2136 = vmatpush1.msra.mxu0 0.0
    %2137 = vmatprep.subr.mxu0 0.0
    %2138 = vmatpush1.msra.mxu0 0.0
    %2139 = vmatprep.subr.mxu0 0.0
    %2140 = vmatpush1.msra.mxu0 0.0
    %2141 = vmatprep.subr.mxu0 0.0
    %2142 = vmatpush1.msra.mxu0 0.0
    %2143 = vmatprep.mubr.f32.mxu0 0.0
    %2144 = vmatmul.mubr.f32.gmra.mrb[0].mxu0 %v2077
    %v2145 = vpop.f32.mrb[0].mxu0
    %v2146 = vadd.f32 %v2070, %v2145
    %v2147 = vpop.f32.mrb[0].mxu0
    %v2148 = vadd.f32 %v2072, %v2147
    %2149 = vdwg.mxu0
    %v2150 = vadd.f32 %v265, %v2146
    %v2151 = vadd.f32 %v267, %v2148
    %v2152 = vtanh.pop %v2150
    %v2153 = vtanh.pop %v2151
    %2154 = vmatprep.subr.mxu0 0.0
    %2155 = vmatpush1.msra.mxu0 %v136
    %2156 = vmatprep.subr.mxu0 0.0
    %2157 = vmatpush1.msra.mxu0 %v137
    %2158 = vmatprep.subr.mxu0 0.0
    %2159 = vmatpush1.msra.mxu0 %v138
    %2160 = vmatprep.subr.mxu0 0.0
    %2161 = vmatpush1.msra.mxu0 %v139
    %2162 = vmatprep.subr.mxu0 0.0
    %2163 = vmatpush1.msra.mxu0 %v140
    %2164 = vmatprep.subr.mxu0 0.0
    %2165 = vmatpush1.msra.mxu0 %v141
    %2166 = vmatprep.subr.mxu0 0.0
    %2167 = vmatpush1.msra.mxu0 %v142
    %2168 = vmatprep.subr.mxu0 0.0
    %2169 = vmatpush1.msra.mxu0 %v143
    %2170 = vmatprep.subr.mxu0 0.0
    %2171 = vmatpush1.msra.mxu0 %v144
    %2172 = vmatprep.subr.mxu0 0.0
    %2173 = vmatpush1.msra.mxu0 %v145
    %2174 = vmatprep.subr.mxu0 0.0
    %2175 = vmatpush1.msra.mxu0 %v146
    %2176 = vmatprep.subr.mxu0 0.0
    %2177 = vmatpush1.msra.mxu0 %v147
    %2178 = vmatprep.subr.mxu0 0.0
    %2179 = vmatpush1.msra.mxu0 %v148
    %2180 = vmatprep.subr.mxu0 0.0
    %2181 = vmatpush1.msra.mxu0 %v149
    %2182 = vmatprep.subr.mxu0 0.0
    %2183 = vmatpush1.msra.mxu0 %v150
    %2184 = vmatprep.subr.mxu0 0.0
    %2185 = vmatpush1.msra.mxu0 %v151
    %2186 = vmatprep.subr.mxu0 0.0
    %2187 = vmatpush1.msra.mxu0 %v152
    %2188 = vmatprep.subr.mxu0 0.0
    %2189 = vmatpush1.msra.mxu0 %v153
    %2190 = vmatprep.subr.mxu0 0.0
    %2191 = vmatpush1.msra.mxu0 %v154
    %2192 = vmatprep.subr.mxu0 0.0
    %2193 = vmatpush1.msra.mxu0 %v155
    %2194 = vmatprep.subr.mxu0 0.0
    %2195 = vmatpush1.msra.mxu0 %v156
    %2196 = vmatprep.subr.mxu0 0.0
    %2197 = vmatpush1.msra.mxu0 %v157
    %2198 = vmatprep.subr.mxu0 0.0
    %2199 = vmatpush1.msra.mxu0 %v158
    %2200 = vmatprep.subr.mxu0 0.0
    %2201 = vmatpush1.msra.mxu0 %v159
    %2202 = vmatprep.subr.mxu0 0.0
    %2203 = vmatpush1.msra.mxu0 %v160
    %2204 = vmatprep.subr.mxu0 0.0
    %2205 = vmatpush1.msra.mxu0 %v161
    %2206 = vmatprep.subr.mxu0 0.0
    %2207 = vmatpush1.msra.mxu0 %v162
    %2208 = vmatprep.subr.mxu0 0.0
    %2209 = vmatpush1.msra.mxu0 %v163
    %2210 = vmatprep.subr.mxu0 0.0
    %2211 = vmatpush1.msra.mxu0 %v164
    %2212 = vmatprep.subr.mxu0 0.0
    %2213 = vmatpush1.msra.mxu0 %v165
    %2214 = vmatprep.subr.mxu0 0.0
    %2215 = vmatpush1.msra.mxu0 %v166
    %2216 = vmatprep.subr.mxu0 0.0
    %2217 = vmatpush1.msra.mxu0 %v167
    %2218 = vmatprep.mubr.f32.mxu0 %v2153
    %2219 = vmatmul.mubr.f32.gmra.mrb[0].mxu0 %v2152
    %v2220 = vpop.f32.mrb[0].mxu0
    %v2221 = vadd.f32 0.0, %v2220
    %v2222 = vpop.f32.mrb[0].mxu0
    %2223 = vdwg.mxu0
    %v2224 = vsel %vm562, %v2221, -inf
    %2225 = vmax.xlane.f32.xlu0 %v2224
    %v2226 = vpop.xlane.xlu0 %2225
    %v2227 = vsub.f32 %v2221, %v2226
    %v2228 = vmul.f32 %v2227, 1.442695
    %v2229 = vpow.pop %v2228
    %v2230 = vsel %vm562, %v2229, 0.0
    %2231 = vadd.xlane.f32.xlu0 %v2230
    %v2232 = vpop.xlane.xlu0 %2231
    %v2233 = vrcp.pop %v2232
    %v2234 = vmul.f32 %v2229, %v2233
    %v2235 = vlaneseq
    %v2236 = vshrl.u32 %v2235, 7
    %v2237 = vsub.s32 0, %v2236
    %v2238 = vrot.slane %v2234, %v2237
    %2240 = vbcast.lane.b32.xlu0 %v2238, 256
    %v2241 = vpop.permute.xlu0 %2240
    %v2242 = vlaneseq
    %v2243 = vshrl.u32 %v2242, 7
    %v2244 = vsub.s32 1, %v2243
    %v2245 = vrot.slane %v2234, %v2244
    %2247 = vbcast.lane.b32.xlu0 %v2245, 256
    %v2248 = vpop.permute.xlu0 %2247
    %v2249 = vlaneseq
    %v2250 = vshrl.u32 %v2249, 7
    %v2251 = vsub.s32 2, %v2250
    %v2252 = vrot.slane %v2234, %v2251
    %2254 = vbcast.lane.b32.xlu0 %v2252, 256
    %v2255 = vpop.permute.xlu0 %2254
    %v2256 = vlaneseq
    %v2257 = vshrl.u32 %v2256, 7
    %v2258 = vsub.s32 3, %v2257
    %v2259 = vrot.slane %v2234, %v2258
    %2261 = vbcast.lane.b32.xlu0 %v2259, 256
    %v2262 = vpop.permute.xlu0 %2261
    %v2263 = vlaneseq
    %v2264 = vshrl.u32 %v2263, 7
    %v2265 = vsub.s32 4, %v2264
    %v2266 = vrot.slane %v2234, %v2265
    %2268 = vbcast.lane.b32.xlu0 %v2266, 256
    %v2269 = vpop.permute.xlu0 %2268
    %v2270 = vlaneseq
    %v2271 = vshrl.u32 %v2270, 7
    %v2272 = vsub.s32 5, %v2271
    %v2273 = vrot.slane %v2234, %v2272
    %2275 = vbcast.lane.b32.xlu0 %v2273, 256
    %v2276 = vpop.permute.xlu0 %2275
    %v2277 = vlaneseq
    %v2278 = vshrl.u32 %v2277, 7
    %v2279 = vsub.s32 6, %v2278
    %v2280 = vrot.slane %v2234, %v2279
    %2282 = vbcast.lane.b32.xlu0 %v2280, 256
    %v2283 = vpop.permute.xlu0 %2282
    %v2284 = vlaneseq
    %v2285 = vshrl.u32 %v2284, 7
    %v2286 = vsub.s32 7, %v2285
    %v2287 = vrot.slane %v2234, %v2286
    %2289 = vbcast.lane.b32.xlu0 %v2287, 256
    %v2290 = vpop.permute.xlu0 %2289
    %v2291 = vmul.f32 %v2241, %v40
    %v2292 = vmul.f32 %v2248, %v41
    %v2293 = vmul.f32 %v2255, %v42
    %v2294 = vmul.f32 %v2262, %v43
    %v2295 = vmul.f32 %v2269, %v44
    %v2296 = vmul.f32 %v2276, %v45
    %v2297 = vmul.f32 %v2283, %v46
    %v2298 = vmul.f32 %v2290, %v47
    %v2299 = vsel %vm306, %v2291, 0.0
    %v2300 = vrot.slane %v2299, 4
    %v2301 = vadd.f32 %v2299, %v2300
    %v2302 = vrot.slane %v2301, 2
    %v2303 = vadd.f32 %v2301, %v2302
    %v2304 = vrot.slane %v2303, 1
    %v2305 = vadd.f32 %v2303, %v2304
    %v2306 = vsel %vm306, %v2292, 0.0
    %v2307 = vrot.slane %v2306, 4
    %v2308 = vadd.f32 %v2306, %v2307
    %v2309 = vrot.slane %v2308, 2
    %v2310 = vadd.f32 %v2308, %v2309
    %v2311 = vrot.slane %v2310, 1
    %v2312 = vadd.f32 %v2310, %v2311
    %v2313 = vsel %vm306, %v2293, 0.0
    %v2314 = vrot.slane %v2313, 4
    %v2315 = vadd.f32 %v2313, %v2314
    %v2316 = vrot.slane %v2315, 2
    %v2317 = vadd.f32 %v2315, %v2316
    %v2318 = vrot.slane %v2317, 1
    %v2319 = vadd.f32 %v2317, %v2318
    %v2320 = vsel %vm306, %v2294, 0.0
    %v2321 = vrot.slane %v2320, 4
    %v2322 = vadd.f32 %v2320, %v2321
    %v2323 = vrot.slane %v2322, 2
    %v2324 = vadd.f32 %v2322, %v2323
    %v2325 = vrot.slane %v2324, 1
    %v2326 = vadd.f32 %v2324, %v2325
    %v2327 = vsel %vm306, %v2295, 0.0
    %v2328 = vrot.slane %v2327, 4
    %v2329 = vadd.f32 %v2327, %v2328
    %v2330 = vrot.slane %v2329, 2
    %v2331 = vadd.f32 %v2329, %v2330
    %v2332 = vrot.slane %v2331, 1
    %v2333 = vadd.f32 %v2331, %v2332
    %v2334 = vsel %vm306, %v2296, 0.0
    %v2335 = vrot.slane %v2334, 4
    %v2336 = vadd.f32 %v2334, %v2335
    %v2337 = vrot.slane %v2336, 2
    %v2338 = vadd.f32 %v2336, %v2337
    %v2339 = vrot.slane %v2338, 1
    %v2340 = vadd.f32 %v2338, %v2339
    %v2341 = vsel %vm306, %v2297, 0.0
    %v2342 = vrot.slane %v2341, 4
    %v2343 = vadd.f32 %v2341, %v2342
    %v2344 = vrot.slane %v2343, 2
    %v2345 = vadd.f32 %v2343, %v2344
    %v2346 = vrot.slane %v2345, 1
    %v2347 = vadd.f32 %v2345, %v2346
    %v2348 = vsel %vm306, %v2298, 0.0
    %v2349 = vrot.slane %v2348, 4
    %v2350 = vadd.f32 %v2348, %v2349
    %v2351 = vrot.slane %v2350, 2
    %v2352 = vadd.f32 %v2350, %v2351
    %v2353 = vrot.slane %v2352, 1
    %v2354 = vadd.f32 %v2352, %v2353
    %s2355 = scalar_lea.vmem %s2, 24
    %v2356 = vld [vmem:[%s2355] sm:$0xff]
    %2357 = vmatprep.subr.mxu0 0.0
    %2358 = vmatpush1.msra.mxu0 %v168
    %2359 = vmatprep.subr.mxu0 0.0
    %2360 = vmatpush1.msra.mxu0 %v169
    %2361 = vmatprep.subr.mxu0 0.0
    %2362 = vmatpush1.msra.mxu0 %v170
    %2363 = vmatprep.subr.mxu0 0.0
    %2364 = vmatpush1.msra.mxu0 %v171
    %2365 = vmatprep.subr.mxu0 0.0
    %2366 = vmatpush1.msra.mxu0 0.0
    %2367 = vmatprep.subr.mxu0 0.0
    %2368 = vmatpush1.msra.mxu0 0.0
    %2369 = vmatprep.subr.mxu0 0.0
    %2370 = vmatpush1.msra.mxu0 0.0
    %2371 = vmatprep.subr.mxu0 0.0
    %2372 = vmatpush1.msra.mxu0 0.0
    %2373 = vmatprep.subr.mxu0 0.0
    %2374 = vmatpush1.msra.mxu0 0.0
    %2375 = vmatprep.subr.mxu0 0.0
    %2376 = vmatpush1.msra.mxu0 0.0
    %2377 = vmatprep.subr.mxu0 0.0
    %2378 = vmatpush1.msra.mxu0 0.0
    %2379 = vmatprep.subr.mxu0 0.0
    %2380 = vmatpush1.msra.mxu0 0.0
    %2381 = vmatprep.subr.mxu0 0.0
    %2382 = vmatpush1.msra.mxu0 0.0
    %2383 = vmatprep.subr.mxu0 0.0
    %2384 = vmatpush1.msra.mxu0 0.0
    %2385 = vmatprep.subr.mxu0 0.0
    %2386 = vmatpush1.msra.mxu0 0.0
    %2387 = vmatprep.subr.mxu0 0.0
    %2388 = vmatpush1.msra.mxu0 0.0
    %2389 = vmatprep.subr.mxu0 0.0
    %2390 = vmatpush1.msra.mxu0 0.0
    %2391 = vmatprep.subr.mxu0 0.0
    %2392 = vmatpush1.msra.mxu0 0.0
    %2393 = vmatprep.subr.mxu0 0.0
    %2394 = vmatpush1.msra.mxu0 0.0
    %2395 = vmatprep.subr.mxu0 0.0
    %2396 = vmatpush1.msra.mxu0 0.0
    %2397 = vmatprep.subr.mxu0 0.0
    %2398 = vmatpush1.msra.mxu0 0.0
    %2399 = vmatprep.subr.mxu0 0.0
    %2400 = vmatpush1.msra.mxu0 0.0
    %2401 = vmatprep.subr.mxu0 0.0
    %2402 = vmatpush1.msra.mxu0 0.0
    %2403 = vmatprep.subr.mxu0 0.0
    %2404 = vmatpush1.msra.mxu0 0.0
    %2405 = vmatprep.subr.mxu0 0.0
    %2406 = vmatpush1.msra.mxu0 0.0
    %2407 = vmatprep.subr.mxu0 0.0
    %2408 = vmatpush1.msra.mxu0 0.0
    %2409 = vmatprep.subr.mxu0 0.0
    %2410 = vmatpush1.msra.mxu0 0.0
    %2411 = vmatprep.subr.mxu0 0.0
    %2412 = vmatpush1.msra.mxu0 0.0
    %2413 = vmatprep.subr.mxu0 0.0
    %2414 = vmatpush1.msra.mxu0 0.0
    %2415 = vmatprep.subr.mxu0 0.0
    %2416 = vmatpush1.msra.mxu0 0.0
    %2417 = vmatprep.subr.mxu0 0.0
    %2418 = vmatpush1.msra.mxu0 0.0
    %2419 = vmatprep.subr.mxu0 0.0
    %2420 = vmatpush1.msra.mxu0 0.0
    %2421 = vmatprep.mubr.f32.mxu0 0.0
    %2422 = vmatmul.mubr.f32.gmra.mrb[0].mxu0 %v2077
    %v2423 = vpop.f32.mrb[0].mxu0
    %v2424 = vadd.f32 0.0, %v2423
    %v2425 = vpop.f32.mrb[0].mxu0
    %2426 = vdwg.mxu0
    %v2435 = vsel %vm773, %v2312, %v2305
    %v2436 = vsel %vm775, %v2319, %v2435
    %v2437 = vsel %vm777, %v2326, %v2436
    %v2438 = vsel %vm779, %v2333, %v2437
    %v2439 = vsel %vm781, %v2340, %v2438
    %v2440 = vsel %vm783, %v2347, %v2439
    %v2441 = vsel %vm785, %v2354, %v2440
    %v2442 = vsel %vm306, %v2441, 0
    %2444 = vmatprep.subr.mxu0 0.0
    %2445 = vmatpush1.msra.mxu0 %v172
    %2446 = vmatprep.subr.mxu0 0.0
    %2447 = vmatpush1.msra.mxu0 %v173
    %2448 = vmatprep.subr.mxu0 0.0
    %2449 = vmatpush1.msra.mxu0 %v174
    %2450 = vmatprep.subr.mxu0 0.0
    %2451 = vmatpush1.msra.mxu0 %v175
    %2452 = vmatprep.subr.mxu0 0.0
    %2453 = vmatpush1.msra.mxu0 0.0
    %2454 = vmatprep.subr.mxu0 0.0
    %2455 = vmatpush1.msra.mxu0 0.0
    %2456 = vmatprep.subr.mxu0 0.0
    %2457 = vmatpush1.msra.mxu0 0.0
    %2458 = vmatprep.subr.mxu0 0.0
    %2459 = vmatpush1.msra.mxu0 0.0
    %2460 = vmatprep.subr.mxu0 0.0
    %2461 = vmatpush1.msra.mxu0 0.0
    %2462 = vmatprep.subr.mxu0 0.0
    %2463 = vmatpush1.msra.mxu0 0.0
    %2464 = vmatprep.subr.mxu0 0.0
    %2465 = vmatpush1.msra.mxu0 0.0
    %2466 = vmatprep.subr.mxu0 0.0
    %2467 = vmatpush1.msra.mxu0 0.0
    %2468 = vmatprep.subr.mxu0 0.0
    %2469 = vmatpush1.msra.mxu0 0.0
    %2470 = vmatprep.subr.mxu0 0.0
    %2471 = vmatpush1.msra.mxu0 0.0
    %2472 = vmatprep.subr.mxu0 0.0
    %2473 = vmatpush1.msra.mxu0 0.0
    %2474 = vmatprep.subr.mxu0 0.0
    %2475 = vmatpush1.msra.mxu0 0.0
    %2476 = vmatprep.subr.mxu0 0.0
    %2477 = vmatpush1.msra.mxu0 0.0
    %2478 = vmatprep.subr.mxu0 0.0
    %2479 = vmatpush1.msra.mxu0 0.0
    %2480 = vmatprep.subr.mxu0 0.0
    %2481 = vmatpush1.msra.mxu0 0.0
    %2482 = vmatprep.subr.mxu0 0.0
    %2483 = vmatpush1.msra.mxu0 0.0
    %2484 = vmatprep.subr.mxu0 0.0
    %2485 = vmatpush1.msra.mxu0 0.0
    %2486 = vmatprep.subr.mxu0 0.0
    %2487 = vmatpush1.msra.mxu0 0.0
    %2488 = vmatprep.subr.mxu0 0.0
    %2489 = vmatpush1.msra.mxu0 0.0
    %2490 = vmatprep.subr.mxu0 0.0
    %2491 = vmatpush1.msra.mxu0 0.0
    %2492 = vmatprep.subr.mxu0 0.0
    %2493 = vmatpush1.msra.mxu0 0.0
    %2494 = vmatprep.subr.mxu0 0.0
    %2495 = vmatpush1.msra.mxu0 0.0
    %2496 = vmatprep.subr.mxu0 0.0
    %2497 = vmatpush1.msra.mxu0 0.0
    %2498 = vmatprep.subr.mxu0 0.0
    %2499 = vmatpush1.msra.mxu0 0.0
    %2500 = vmatprep.subr.mxu0 0.0
    %2501 = vmatpush1.msra.mxu0 0.0
    %2502 = vmatprep.subr.mxu0 0.0
    %2503 = vmatpush1.msra.mxu0 0.0
    %2504 = vmatprep.subr.mxu0 0.0
    %2505 = vmatpush1.msra.mxu0 0.0
    %2506 = vmatprep.subr.mxu0 0.0
    %2507 = vmatpush1.msra.mxu0 0.0
    %2508 = vmatprep.mubr.f32.mxu0 0.0
    %2509 = vmatmul.mubr.f32.gmra.mrb[0].mxu0 %v2442
    %v2510 = vpop.f32.mrb[0].mxu0
    %v2511 = vadd.f32 %v2424, %v2510
    %v2512 = vpop.f32.mrb[0].mxu0
    %2513 = vdwg.mxu0
    %2515 = vset.pattern.permute.xlu0 0
    %2516 = vperm.xlu0 %2515, %v2356
    %v2517 = vpop.permute.xlu0 %2516
    %v2519 = vmul.f32 %v2517, %v867
    %v2520 = vadd.f32 %v2511, %v2519
    %v2521 = vadd.f32 %v2520, %v873
    %v2522 = vxor.u32 %v2521, 2147483648
    %v2523 = vmul.f32 %v2522, 1.442695
    %v2524 = vpow.pop %v2523
    %v2525 = vadd.f32 %v2524, 1.0
    %v2526 = vrcp.pop %v2525
    %v2527 = vmul.f32 1.0, %v2526
    %v2528 = vmul.f32 %v2527, 2.0
    %v2529 = vsub.f32 %v2528, 1.0
    %v2530 = vmul.f32 %v2527, %v1991
    %2532 = vrot.lane.b32.xlu0 %v2529, 64
    %v2533 = vpop.permute.xlu0 %2532
    %v2535 = vmul.f32 %v2527, %v2533
    %2537 = vrot.lane.b32.xlu0 %v2535, 32
    %v2538 = vpop.permute.xlu0 %2537
    %v2540 = vadd.f32 %v2530, %v2538
    %v2541 = vtanh.pop %v2540
    %2543 = vrot.lane.b32.xlu0 %v2541, 64
    %v2544 = vpop.permute.xlu0 %2543
    %v2546 = vmul.f32 %v2527, %v2544
    %2548 = vrot.lane.b32.xlu0 %v2540, 96
    %v2549 = vpop.permute.xlu0 %2548
    %v2550 = vsel %vm306, %v2549, 0
    %2552 = vmatprep.subr.mxu0 %v285
    %2553 = vmatpush1.msra.mxu0 %v282
    %2554 = vmatprep.subr.mxu0 %v289
    %2555 = vmatpush1.msra.mxu0 %v287
    %2556 = vmatprep.subr.mxu0 %v293
    %2557 = vmatpush1.msra.mxu0 %v291
    %2558 = vmatprep.subr.mxu0 %v297
    %2559 = vmatpush1.msra.mxu0 %v295
    %2560 = vmatprep.subr.mxu0 0.0
    %2561 = vmatpush1.msra.mxu0 0.0
    %2562 = vmatprep.subr.mxu0 0.0
    %2563 = vmatpush1.msra.mxu0 0.0
    %2564 = vmatprep.subr.mxu0 0.0
    %2565 = vmatpush1.msra.mxu0 0.0
    %2566 = vmatprep.subr.mxu0 0.0
    %2567 = vmatpush1.msra.mxu0 0.0
    %2568 = vmatprep.subr.mxu0 0.0
    %2569 = vmatpush1.msra.mxu0 0.0
    %2570 = vmatprep.subr.mxu0 0.0
    %2571 = vmatpush1.msra.mxu0 0.0
    %2572 = vmatprep.subr.mxu0 0.0
    %2573 = vmatpush1.msra.mxu0 0.0
    %2574 = vmatprep.subr.mxu0 0.0
    %2575 = vmatpush1.msra.mxu0 0.0
    %2576 = vmatprep.subr.mxu0 0.0
    %2577 = vmatpush1.msra.mxu0 0.0
    %2578 = vmatprep.subr.mxu0 0.0
    %2579 = vmatpush1.msra.mxu0 0.0
    %2580 = vmatprep.subr.mxu0 0.0
    %2581 = vmatpush1.msra.mxu0 0.0
    %2582 = vmatprep.subr.mxu0 0.0
    %2583 = vmatpush1.msra.mxu0 0.0
    %2584 = vmatprep.subr.mxu0 0.0
    %2585 = vmatpush1.msra.mxu0 0.0
    %2586 = vmatprep.subr.mxu0 0.0
    %2587 = vmatpush1.msra.mxu0 0.0
    %2588 = vmatprep.subr.mxu0 0.0
    %2589 = vmatpush1.msra.mxu0 0.0
    %2590 = vmatprep.subr.mxu0 0.0
    %2591 = vmatpush1.msra.mxu0 0.0
    %2592 = vmatprep.subr.mxu0 0.0
    %2593 = vmatpush1.msra.mxu0 0.0
    %2594 = vmatprep.subr.mxu0 0.0
    %2595 = vmatpush1.msra.mxu0 0.0
    %2596 = vmatprep.subr.mxu0 0.0
    %2597 = vmatpush1.msra.mxu0 0.0
    %2598 = vmatprep.subr.mxu0 0.0
    %2599 = vmatpush1.msra.mxu0 0.0
    %2600 = vmatprep.subr.mxu0 0.0
    %2601 = vmatpush1.msra.mxu0 0.0
    %2602 = vmatprep.subr.mxu0 0.0
    %2603 = vmatpush1.msra.mxu0 0.0
    %2604 = vmatprep.subr.mxu0 0.0
    %2605 = vmatpush1.msra.mxu0 0.0
    %2606 = vmatprep.subr.mxu0 0.0
    %2607 = vmatpush1.msra.mxu0 0.0
    %2608 = vmatprep.subr.mxu0 0.0
    %2609 = vmatpush1.msra.mxu0 0.0
    %2610 = vmatprep.subr.mxu0 0.0
    %2611 = vmatpush1.msra.mxu0 0.0
    %2612 = vmatprep.subr.mxu0 0.0
    %2613 = vmatpush1.msra.mxu0 0.0
    %2614 = vmatprep.subr.mxu0 0.0
    %2615 = vmatpush1.msra.mxu0 0.0
    %2616 = vmatprep.mubr.f32.mxu0 0.0
    %2617 = vmatmul.mubr.f32.gmra.mrb[0].mxu0 %v2550
    %v2618 = vpop.f32.mrb[0].mxu0
    %v2619 = vadd.f32 0.0, %v2618
    %v2620 = vpop.f32.mrb[0].mxu0
    %v2621 = vadd.f32 0.0, %v2620
    %2622 = vdwg.mxu0
    %2624 = vrot.lane.b32.xlu0 %v2546, 32
    %v2625 = vpop.permute.xlu0 %2624
    %v2626 = vsel %vm306, %v2625, 0
    %2628 = vmatprep.subr.mxu0 %v396
    %2629 = vmatpush1.msra.mxu0 %v393
    %2630 = vmatprep.subr.mxu0 %v400
    %2631 = vmatpush1.msra.mxu0 %v398
    %2632 = vmatprep.subr.mxu0 %v404
    %2633 = vmatpush1.msra.mxu0 %v402
    %2634 = vmatprep.subr.mxu0 %v408
    %2635 = vmatpush1.msra.mxu0 %v406
    %2636 = vmatprep.subr.mxu0 0.0
    %2637 = vmatpush1.msra.mxu0 0.0
    %2638 = vmatprep.subr.mxu0 0.0
    %2639 = vmatpush1.msra.mxu0 0.0
    %2640 = vmatprep.subr.mxu0 0.0
    %2641 = vmatpush1.msra.mxu0 0.0
    %2642 = vmatprep.subr.mxu0 0.0
    %2643 = vmatpush1.msra.mxu0 0.0
    %2644 = vmatprep.subr.mxu0 0.0
    %2645 = vmatpush1.msra.mxu0 0.0
    %2646 = vmatprep.subr.mxu0 0.0
    %2647 = vmatpush1.msra.mxu0 0.0
    %2648 = vmatprep.subr.mxu0 0.0
    %2649 = vmatpush1.msra.mxu0 0.0
    %2650 = vmatprep.subr.mxu0 0.0
    %2651 = vmatpush1.msra.mxu0 0.0
    %2652 = vmatprep.subr.mxu0 0.0
    %2653 = vmatpush1.msra.mxu0 0.0
    %2654 = vmatprep.subr.mxu0 0.0
    %2655 = vmatpush1.msra.mxu0 0.0
    %2656 = vmatprep.subr.mxu0 0.0
    %2657 = vmatpush1.msra.mxu0 0.0
    %2658 = vmatprep.subr.mxu0 0.0
    %2659 = vmatpush1.msra.mxu0 0.0
    %2660 = vmatprep.subr.mxu0 0.0
    %2661 = vmatpush1.msra.mxu0 0.0
    %2662 = vmatprep.subr.mxu0 0.0
    %2663 = vmatpush1.msra.mxu0 0.0
    %2664 = vmatprep.subr.mxu0 0.0
    %2665 = vmatpush1.msra.mxu0 0.0
    %2666 = vmatprep.subr.mxu0 0.0
    %2667 = vmatpush1.msra.mxu0 0.0
    %2668 = vmatprep.subr.mxu0 0.0
    %2669 = vmatpush1.msra.mxu0 0.0
    %2670 = vmatprep.subr.mxu0 0.0
    %2671 = vmatpush1.msra.mxu0 0.0
    %2672 = vmatprep.subr.mxu0 0.0
    %2673 = vmatpush1.msra.mxu0 0.0
    %2674 = vmatprep.subr.mxu0 0.0
    %2675 = vmatpush1.msra.mxu0 0.0
    %2676 = vmatprep.subr.mxu0 0.0
    %2677 = vmatpush1.msra.mxu0 0.0
    %2678 = vmatprep.subr.mxu0 0.0
    %2679 = vmatpush1.msra.mxu0 0.0
    %2680 = vmatprep.subr.mxu0 0.0
    %2681 = vmatpush1.msra.mxu0 0.0
    %2682 = vmatprep.subr.mxu0 0.0
    %2683 = vmatpush1.msra.mxu0 0.0
    %2684 = vmatprep.subr.mxu0 0.0
    %2685 = vmatpush1.msra.mxu0 0.0
    %2686 = vmatprep.subr.mxu0 0.0
    %2687 = vmatpush1.msra.mxu0 0.0
    %2688 = vmatprep.subr.mxu0 0.0
    %2689 = vmatpush1.msra.mxu0 0.0
    %2690 = vmatprep.subr.mxu0 0.0
    %2691 = vmatpush1.msra.mxu0 0.0
    %2692 = vmatprep.mubr.f32.mxu0 0.0
    %2693 = vmatmul.mubr.f32.gmra.mrb[0].mxu0 %v2626
    %v2694 = vpop.f32.mrb[0].mxu0
    %v2695 = vadd.f32 %v2619, %v2694
    %v2696 = vpop.f32.mrb[0].mxu0
    %v2697 = vadd.f32 %v2621, %v2696
    %2698 = vdwg.mxu0
    %v2699 = vadd.f32 %v265, %v2695
    %v2700 = vadd.f32 %v267, %v2697
    %v2701 = vtanh.pop %v2699
    %v2702 = vtanh.pop %v2700
    %2703 = vmatprep.subr.mxu0 0.0
    %2704 = vmatpush1.msra.mxu0 %v136
    %2705 = vmatprep.subr.mxu0 0.0
    %2706 = vmatpush1.msra.mxu0 %v137
    %2707 = vmatprep.subr.mxu0 0.0
    %2708 = vmatpush1.msra.mxu0 %v138
    %2709 = vmatprep.subr.mxu0 0.0
    %2710 = vmatpush1.msra.mxu0 %v139
    %2711 = vmatprep.subr.mxu0 0.0
    %2712 = vmatpush1.msra.mxu0 %v140
    %2713 = vmatprep.subr.mxu0 0.0
    %2714 = vmatpush1.msra.mxu0 %v141
    %2715 = vmatprep.subr.mxu0 0.0
    %2716 = vmatpush1.msra.mxu0 %v142
    %2717 = vmatprep.subr.mxu0 0.0
    %2718 = vmatpush1.msra.mxu0 %v143
    %2719 = vmatprep.subr.mxu0 0.0
    %2720 = vmatpush1.msra.mxu0 %v144
    %2721 = vmatprep.subr.mxu0 0.0
    %2722 = vmatpush1.msra.mxu0 %v145
    %2723 = vmatprep.subr.mxu0 0.0
    %2724 = vmatpush1.msra.mxu0 %v146
    %2725 = vmatprep.subr.mxu0 0.0
    %2726 = vmatpush1.msra.mxu0 %v147
    %2727 = vmatprep.subr.mxu0 0.0
    %2728 = vmatpush1.msra.mxu0 %v148
    %2729 = vmatprep.subr.mxu0 0.0
    %2730 = vmatpush1.msra.mxu0 %v149
    %2731 = vmatprep.subr.mxu0 0.0
    %2732 = vmatpush1.msra.mxu0 %v150
    %2733 = vmatprep.subr.mxu0 0.0
    %2734 = vmatpush1.msra.mxu0 %v151
    %2735 = vmatprep.subr.mxu0 0.0
    %2736 = vmatpush1.msra.mxu0 %v152
    %2737 = vmatprep.subr.mxu0 0.0
    %2738 = vmatpush1.msra.mxu0 %v153
    %2739 = vmatprep.subr.mxu0 0.0
    %2740 = vmatpush1.msra.mxu0 %v154
    %2741 = vmatprep.subr.mxu0 0.0
    %2742 = vmatpush1.msra.mxu0 %v155
    %2743 = vmatprep.subr.mxu0 0.0
    %2744 = vmatpush1.msra.mxu0 %v156
    %2745 = vmatprep.subr.mxu0 0.0
    %2746 = vmatpush1.msra.mxu0 %v157
    %2747 = vmatprep.subr.mxu0 0.0
    %2748 = vmatpush1.msra.mxu0 %v158
    %2749 = vmatprep.subr.mxu0 0.0
    %2750 = vmatpush1.msra.mxu0 %v159
    %2751 = vmatprep.subr.mxu0 0.0
    %2752 = vmatpush1.msra.mxu0 %v160
    %2753 = vmatprep.subr.mxu0 0.0
    %2754 = vmatpush1.msra.mxu0 %v161
    %2755 = vmatprep.subr.mxu0 0.0
    %2756 = vmatpush1.msra.mxu0 %v162
    %2757 = vmatprep.subr.mxu0 0.0
    %2758 = vmatpush1.msra.mxu0 %v163
    %2759 = vmatprep.subr.mxu0 0.0
    %2760 = vmatpush1.msra.mxu0 %v164
    %2761 = vmatprep.subr.mxu0 0.0
    %2762 = vmatpush1.msra.mxu0 %v165
    %2763 = vmatprep.subr.mxu0 0.0
    %2764 = vmatpush1.msra.mxu0 %v166
    %2765 = vmatprep.subr.mxu0 0.0
    %2766 = vmatpush1.msra.mxu0 %v167
    %2767 = vmatprep.mubr.f32.mxu0 %v2702
    %2768 = vmatmul.mubr.f32.gmra.mrb[0].mxu0 %v2701
    %v2769 = vpop.f32.mrb[0].mxu0
    %v2770 = vadd.f32 0.0, %v2769
    %v2771 = vpop.f32.mrb[0].mxu0
    %2772 = vdwg.mxu0
    %v2773 = vsel %vm562, %v2770, -inf
    %2774 = vmax.xlane.f32.xlu0 %v2773
    %v2775 = vpop.xlane.xlu0 %2774
    %v2776 = vsub.f32 %v2770, %v2775
    %v2777 = vmul.f32 %v2776, 1.442695
    %v2778 = vpow.pop %v2777
    %v2779 = vsel %vm562, %v2778, 0.0
    %2780 = vadd.xlane.f32.xlu0 %v2779
    %v2781 = vpop.xlane.xlu0 %2780
    %v2782 = vrcp.pop %v2781
    %v2783 = vmul.f32 %v2778, %v2782
    %v2784 = vlaneseq
    %v2785 = vshrl.u32 %v2784, 7
    %v2786 = vsub.s32 0, %v2785
    %v2787 = vrot.slane %v2783, %v2786
    %2789 = vbcast.lane.b32.xlu0 %v2787, 256
    %v2790 = vpop.permute.xlu0 %2789
    %v2791 = vlaneseq
    %v2792 = vshrl.u32 %v2791, 7
    %v2793 = vsub.s32 1, %v2792
    %v2794 = vrot.slane %v2783, %v2793
    %2796 = vbcast.lane.b32.xlu0 %v2794, 256
    %v2797 = vpop.permute.xlu0 %2796
    %v2798 = vlaneseq
    %v2799 = vshrl.u32 %v2798, 7
    %v2800 = vsub.s32 2, %v2799
    %v2801 = vrot.slane %v2783, %v2800
    %2803 = vbcast.lane.b32.xlu0 %v2801, 256
    %v2804 = vpop.permute.xlu0 %2803
    %v2805 = vlaneseq
    %v2806 = vshrl.u32 %v2805, 7
    %v2807 = vsub.s32 3, %v2806
    %v2808 = vrot.slane %v2783, %v2807
    %2810 = vbcast.lane.b32.xlu0 %v2808, 256
    %v2811 = vpop.permute.xlu0 %2810
    %v2812 = vlaneseq
    %v2813 = vshrl.u32 %v2812, 7
    %v2814 = vsub.s32 4, %v2813
    %v2815 = vrot.slane %v2783, %v2814
    %2817 = vbcast.lane.b32.xlu0 %v2815, 256
    %v2818 = vpop.permute.xlu0 %2817
    %v2819 = vlaneseq
    %v2820 = vshrl.u32 %v2819, 7
    %v2821 = vsub.s32 5, %v2820
    %v2822 = vrot.slane %v2783, %v2821
    %2824 = vbcast.lane.b32.xlu0 %v2822, 256
    %v2825 = vpop.permute.xlu0 %2824
    %v2826 = vlaneseq
    %v2827 = vshrl.u32 %v2826, 7
    %v2828 = vsub.s32 6, %v2827
    %v2829 = vrot.slane %v2783, %v2828
    %2831 = vbcast.lane.b32.xlu0 %v2829, 256
    %v2832 = vpop.permute.xlu0 %2831
    %v2833 = vlaneseq
    %v2834 = vshrl.u32 %v2833, 7
    %v2835 = vsub.s32 7, %v2834
    %v2836 = vrot.slane %v2783, %v2835
    %2838 = vbcast.lane.b32.xlu0 %v2836, 256
    %v2839 = vpop.permute.xlu0 %2838
    %v2840 = vmul.f32 %v2790, %v40
    %v2841 = vmul.f32 %v2797, %v41
    %v2842 = vmul.f32 %v2804, %v42
    %v2843 = vmul.f32 %v2811, %v43
    %v2844 = vmul.f32 %v2818, %v44
    %v2845 = vmul.f32 %v2825, %v45
    %v2846 = vmul.f32 %v2832, %v46
    %v2847 = vmul.f32 %v2839, %v47
    %v2848 = vsel %vm306, %v2840, 0.0
    %v2849 = vrot.slane %v2848, 4
    %v2850 = vadd.f32 %v2848, %v2849
    %v2851 = vrot.slane %v2850, 2
    %v2852 = vadd.f32 %v2850, %v2851
    %v2853 = vrot.slane %v2852, 1
    %v2854 = vadd.f32 %v2852, %v2853
    %v2855 = vsel %vm306, %v2841, 0.0
    %v2856 = vrot.slane %v2855, 4
    %v2857 = vadd.f32 %v2855, %v2856
    %v2858 = vrot.slane %v2857, 2
    %v2859 = vadd.f32 %v2857, %v2858
    %v2860 = vrot.slane %v2859, 1
    %v2861 = vadd.f32 %v2859, %v2860
    %v2862 = vsel %vm306, %v2842, 0.0
    %v2863 = vrot.slane %v2862, 4
    %v2864 = vadd.f32 %v2862, %v2863
    %v2865 = vrot.slane %v2864, 2
    %v2866 = vadd.f32 %v2864, %v2865
    %v2867 = vrot.slane %v2866, 1
    %v2868 = vadd.f32 %v2866, %v2867
    %v2869 = vsel %vm306, %v2843, 0.0
    %v2870 = vrot.slane %v2869, 4
    %v2871 = vadd.f32 %v2869, %v2870
    %v2872 = vrot.slane %v2871, 2
    %v2873 = vadd.f32 %v2871, %v2872
    %v2874 = vrot.slane %v2873, 1
    %v2875 = vadd.f32 %v2873, %v2874
    %v2876 = vsel %vm306, %v2844, 0.0
    %v2877 = vrot.slane %v2876, 4
    %v2878 = vadd.f32 %v2876, %v2877
    %v2879 = vrot.slane %v2878, 2
    %v2880 = vadd.f32 %v2878, %v2879
    %v2881 = vrot.slane %v2880, 1
    %v2882 = vadd.f32 %v2880, %v2881
    %v2883 = vsel %vm306, %v2845, 0.0
    %v2884 = vrot.slane %v2883, 4
    %v2885 = vadd.f32 %v2883, %v2884
    %v2886 = vrot.slane %v2885, 2
    %v2887 = vadd.f32 %v2885, %v2886
    %v2888 = vrot.slane %v2887, 1
    %v2889 = vadd.f32 %v2887, %v2888
    %v2890 = vsel %vm306, %v2846, 0.0
    %v2891 = vrot.slane %v2890, 4
    %v2892 = vadd.f32 %v2890, %v2891
    %v2893 = vrot.slane %v2892, 2
    %v2894 = vadd.f32 %v2892, %v2893
    %v2895 = vrot.slane %v2894, 1
    %v2896 = vadd.f32 %v2894, %v2895
    %v2897 = vsel %vm306, %v2847, 0.0
    %v2898 = vrot.slane %v2897, 4
    %v2899 = vadd.f32 %v2897, %v2898
    %v2900 = vrot.slane %v2899, 2
    %v2901 = vadd.f32 %v2899, %v2900
    %v2902 = vrot.slane %v2901, 1
    %v2903 = vadd.f32 %v2901, %v2902
    %s2904 = scalar_lea.vmem %s2, 32
    %v2905 = vld [vmem:[%s2904] sm:$0xff]
    %2906 = vmatprep.subr.mxu0 0.0
    %2907 = vmatpush1.msra.mxu0 %v168
    %2908 = vmatprep.subr.mxu0 0.0
    %2909 = vmatpush1.msra.mxu0 %v169
    %2910 = vmatprep.subr.mxu0 0.0
    %2911 = vmatpush1.msra.mxu0 %v170
    %2912 = vmatprep.subr.mxu0 0.0
    %2913 = vmatpush1.msra.mxu0 %v171
    %2914 = vmatprep.subr.mxu0 0.0
    %2915 = vmatpush1.msra.mxu0 0.0
    %2916 = vmatprep.subr.mxu0 0.0
    %2917 = vmatpush1.msra.mxu0 0.0
    %2918 = vmatprep.subr.mxu0 0.0
    %2919 = vmatpush1.msra.mxu0 0.0
    %2920 = vmatprep.subr.mxu0 0.0
    %2921 = vmatpush1.msra.mxu0 0.0
    %2922 = vmatprep.subr.mxu0 0.0
    %2923 = vmatpush1.msra.mxu0 0.0
    %2924 = vmatprep.subr.mxu0 0.0
    %2925 = vmatpush1.msra.mxu0 0.0
    %2926 = vmatprep.subr.mxu0 0.0
    %2927 = vmatpush1.msra.mxu0 0.0
    %2928 = vmatprep.subr.mxu0 0.0
    %2929 = vmatpush1.msra.mxu0 0.0
    %2930 = vmatprep.subr.mxu0 0.0
    %2931 = vmatpush1.msra.mxu0 0.0
    %2932 = vmatprep.subr.mxu0 0.0
    %2933 = vmatpush1.msra.mxu0 0.0
    %2934 = vmatprep.subr.mxu0 0.0
    %2935 = vmatpush1.msra.mxu0 0.0
    %2936 = vmatprep.subr.mxu0 0.0
    %2937 = vmatpush1.msra.mxu0 0.0
    %2938 = vmatprep.subr.mxu0 0.0
    %2939 = vmatpush1.msra.mxu0 0.0
    %2940 = vmatprep.subr.mxu0 0.0
    %2941 = vmatpush1.msra.mxu0 0.0
    %2942 = vmatprep.subr.mxu0 0.0
    %2943 = vmatpush1.msra.mxu0 0.0
    %2944 = vmatprep.subr.mxu0 0.0
    %2945 = vmatpush1.msra.mxu0 0.0
    %2946 = vmatprep.subr.mxu0 0.0
    %2947 = vmatpush1.msra.mxu0 0.0
    %2948 = vmatprep.subr.mxu0 0.0
    %2949 = vmatpush1.msra.mxu0 0.0
    %2950 = vmatprep.subr.mxu0 0.0
    %2951 = vmatpush1.msra.mxu0 0.0
    %2952 = vmatprep.subr.mxu0 0.0
    %2953 = vmatpush1.msra.mxu0 0.0
    %2954 = vmatprep.subr.mxu0 0.0
    %2955 = vmatpush1.msra.mxu0 0.0
    %2956 = vmatprep.subr.mxu0 0.0
    %2957 = vmatpush1.msra.mxu0 0.0
    %2958 = vmatprep.subr.mxu0 0.0
    %2959 = vmatpush1.msra.mxu0 0.0
    %2960 = vmatprep.subr.mxu0 0.0
    %2961 = vmatpush1.msra.mxu0 0.0
    %2962 = vmatprep.subr.mxu0 0.0
    %2963 = vmatpush1.msra.mxu0 0.0
    %2964 = vmatprep.subr.mxu0 0.0
    %2965 = vmatpush1.msra.mxu0 0.0
    %2966 = vmatprep.subr.mxu0 0.0
    %2967 = vmatpush1.msra.mxu0 0.0
    %2968 = vmatprep.subr.mxu0 0.0
    %2969 = vmatpush1.msra.mxu0 0.0
    %2970 = vmatprep.mubr.f32.mxu0 0.0
    %2971 = vmatmul.mubr.f32.gmra.mrb[0].mxu0 %v2626
    %v2972 = vpop.f32.mrb[0].mxu0
    %v2973 = vadd.f32 0.0, %v2972
    %v2974 = vpop.f32.mrb[0].mxu0
    %2975 = vdwg.mxu0
    %v2984 = vsel %vm773, %v2861, %v2854
    %v2985 = vsel %vm775, %v2868, %v2984
    %v2986 = vsel %vm777, %v2875, %v2985
    %v2987 = vsel %vm779, %v2882, %v2986
    %v2988 = vsel %vm781, %v2889, %v2987
    %v2989 = vsel %vm783, %v2896, %v2988
    %v2990 = vsel %vm785, %v2903, %v2989
    %v2991 = vsel %vm306, %v2990, 0
    %2993 = vmatprep.subr.mxu0 0.0
    %2994 = vmatpush1.msra.mxu0 %v172
    %2995 = vmatprep.subr.mxu0 0.0
    %2996 = vmatpush1.msra.mxu0 %v173
    %2997 = vmatprep.subr.mxu0 0.0
    %2998 = vmatpush1.msra.mxu0 %v174
    %2999 = vmatprep.subr.mxu0 0.0
    %3000 = vmatpush1.msra.mxu0 %v175
    %3001 = vmatprep.subr.mxu0 0.0
    %3002 = vmatpush1.msra.mxu0 0.0
    %3003 = vmatprep.subr.mxu0 0.0
    %3004 = vmatpush1.msra.mxu0 0.0
    %3005 = vmatprep.subr.mxu0 0.0
    %3006 = vmatpush1.msra.mxu0 0.0
    %3007 = vmatprep.subr.mxu0 0.0
    %3008 = vmatpush1.msra.mxu0 0.0
    %3009 = vmatprep.subr.mxu0 0.0
    %3010 = vmatpush1.msra.mxu0 0.0
    %3011 = vmatprep.subr.mxu0 0.0
    %3012 = vmatpush1.msra.mxu0 0.0
    %3013 = vmatprep.subr.mxu0 0.0
    %3014 = vmatpush1.msra.mxu0 0.0
    %3015 = vmatprep.subr.mxu0 0.0
    %3016 = vmatpush1.msra.mxu0 0.0
    %3017 = vmatprep.subr.mxu0 0.0
    %3018 = vmatpush1.msra.mxu0 0.0
    %3019 = vmatprep.subr.mxu0 0.0
    %3020 = vmatpush1.msra.mxu0 0.0
    %3021 = vmatprep.subr.mxu0 0.0
    %3022 = vmatpush1.msra.mxu0 0.0
    %3023 = vmatprep.subr.mxu0 0.0
    %3024 = vmatpush1.msra.mxu0 0.0
    %3025 = vmatprep.subr.mxu0 0.0
    %3026 = vmatpush1.msra.mxu0 0.0
    %3027 = vmatprep.subr.mxu0 0.0
    %3028 = vmatpush1.msra.mxu0 0.0
    %3029 = vmatprep.subr.mxu0 0.0
    %3030 = vmatpush1.msra.mxu0 0.0
    %3031 = vmatprep.subr.mxu0 0.0
    %3032 = vmatpush1.msra.mxu0 0.0
    %3033 = vmatprep.subr.mxu0 0.0
    %3034 = vmatpush1.msra.mxu0 0.0
    %3035 = vmatprep.subr.mxu0 0.0
    %3036 = vmatpush1.msra.mxu0 0.0
    %3037 = vmatprep.subr.mxu0 0.0
    %3038 = vmatpush1.msra.mxu0 0.0
    %3039 = vmatprep.subr.mxu0 0.0
    %3040 = vmatpush1.msra.mxu0 0.0
    %3041 = vmatprep.subr.mxu0 0.0
    %3042 = vmatpush1.msra.mxu0 0.0
    %3043 = vmatprep.subr.mxu0 0.0
    %3044 = vmatpush1.msra.mxu0 0.0
    %3045 = vmatprep.subr.mxu0 0.0
    %3046 = vmatpush1.msra.mxu0 0.0
    %3047 = vmatprep.subr.mxu0 0.0
    %3048 = vmatpush1.msra.mxu0 0.0
    %3049 = vmatprep.subr.mxu0 0.0
    %3050 = vmatpush1.msra.mxu0 0.0
    %3051 = vmatprep.subr.mxu0 0.0
    %3052 = vmatpush1.msra.mxu0 0.0
    %3053 = vmatprep.subr.mxu0 0.0
    %3054 = vmatpush1.msra.mxu0 0.0
    %3055 = vmatprep.subr.mxu0 0.0
    %3056 = vmatpush1.msra.mxu0 0.0
    %3057 = vmatprep.mubr.f32.mxu0 0.0
    %3058 = vmatmul.mubr.f32.gmra.mrb[0].mxu0 %v2991
    %v3059 = vpop.f32.mrb[0].mxu0
    %v3060 = vadd.f32 %v2973, %v3059
    %v3061 = vpop.f32.mrb[0].mxu0
    %3062 = vdwg.mxu0
    %3064 = vset.pattern.permute.xlu0 0
    %3065 = vperm.xlu0 %3064, %v2905
    %v3066 = vpop.permute.xlu0 %3065
    %v3068 = vmul.f32 %v3066, %v867
    %v3069 = vadd.f32 %v3060, %v3068
    %v3070 = vadd.f32 %v3069, %v873
    %v3071 = vxor.u32 %v3070, 2147483648
    %v3072 = vmul.f32 %v3071, 1.442695
    %v3073 = vpow.pop %v3072
    %v3074 = vadd.f32 %v3073, 1.0
    %v3075 = vrcp.pop %v3074
    %v3076 = vmul.f32 1.0, %v3075
    %v3077 = vmul.f32 %v3076, 2.0
    %v3078 = vsub.f32 %v3077, 1.0
    %v3079 = vmul.f32 %v3076, %v2540
    %3081 = vrot.lane.b32.xlu0 %v3078, 64
    %v3082 = vpop.permute.xlu0 %3081
    %v3084 = vmul.f32 %v3076, %v3082
    %3086 = vrot.lane.b32.xlu0 %v3084, 32
    %v3087 = vpop.permute.xlu0 %3086
    %v3089 = vadd.f32 %v3079, %v3087
    %v3090 = vtanh.pop %v3089
    %3092 = vrot.lane.b32.xlu0 %v3090, 64
    %v3093 = vpop.permute.xlu0 %3092
    %v3095 = vmul.f32 %v3076, %v3093
    %3097 = vrot.lane.b32.xlu0 %v3089, 96
    %v3098 = vpop.permute.xlu0 %3097
    %v3099 = vsel %vm306, %v3098, 0
    %3101 = vmatprep.subr.mxu0 %v285
    %3102 = vmatpush1.msra.mxu0 %v282
    %3103 = vmatprep.subr.mxu0 %v289
    %3104 = vmatpush1.msra.mxu0 %v287
    %3105 = vmatprep.subr.mxu0 %v293
    %3106 = vmatpush1.msra.mxu0 %v291
    %3107 = vmatprep.subr.mxu0 %v297
    %3108 = vmatpush1.msra.mxu0 %v295
    %3109 = vmatprep.subr.mxu0 0.0
    %3110 = vmatpush1.msra.mxu0 0.0
    %3111 = vmatprep.subr.mxu0 0.0
    %3112 = vmatpush1.msra.mxu0 0.0
    %3113 = vmatprep.subr.mxu0 0.0
    %3114 = vmatpush1.msra.mxu0 0.0
    %3115 = vmatprep.subr.mxu0 0.0
    %3116 = vmatpush1.msra.mxu0 0.0
    %3117 = vmatprep.subr.mxu0 0.0
    %3118 = vmatpush1.msra.mxu0 0.0
    %3119 = vmatprep.subr.mxu0 0.0
    %3120 = vmatpush1.msra.mxu0 0.0
    %3121 = vmatprep.subr.mxu0 0.0
    %3122 = vmatpush1.msra.mxu0 0.0
    %3123 = vmatprep.subr.mxu0 0.0
    %3124 = vmatpush1.msra.mxu0 0.0
    %3125 = vmatprep.subr.mxu0 0.0
    %3126 = vmatpush1.msra.mxu0 0.0
    %3127 = vmatprep.subr.mxu0 0.0
    %3128 = vmatpush1.msra.mxu0 0.0
    %3129 = vmatprep.subr.mxu0 0.0
    %3130 = vmatpush1.msra.mxu0 0.0
    %3131 = vmatprep.subr.mxu0 0.0
    %3132 = vmatpush1.msra.mxu0 0.0
    %3133 = vmatprep.subr.mxu0 0.0
    %3134 = vmatpush1.msra.mxu0 0.0
    %3135 = vmatprep.subr.mxu0 0.0
    %3136 = vmatpush1.msra.mxu0 0.0
    %3137 = vmatprep.subr.mxu0 0.0
    %3138 = vmatpush1.msra.mxu0 0.0
    %3139 = vmatprep.subr.mxu0 0.0
    %3140 = vmatpush1.msra.mxu0 0.0
    %3141 = vmatprep.subr.mxu0 0.0
    %3142 = vmatpush1.msra.mxu0 0.0
    %3143 = vmatprep.subr.mxu0 0.0
    %3144 = vmatpush1.msra.mxu0 0.0
    %3145 = vmatprep.subr.mxu0 0.0
    %3146 = vmatpush1.msra.mxu0 0.0
    %3147 = vmatprep.subr.mxu0 0.0
    %3148 = vmatpush1.msra.mxu0 0.0
    %3149 = vmatprep.subr.mxu0 0.0
    %3150 = vmatpush1.msra.mxu0 0.0
    %3151 = vmatprep.subr.mxu0 0.0
    %3152 = vmatpush1.msra.mxu0 0.0
    %3153 = vmatprep.subr.mxu0 0.0
    %3154 = vmatpush1.msra.mxu0 0.0
    %3155 = vmatprep.subr.mxu0 0.0
    %3156 = vmatpush1.msra.mxu0 0.0
    %3157 = vmatprep.subr.mxu0 0.0
    %3158 = vmatpush1.msra.mxu0 0.0
    %3159 = vmatprep.subr.mxu0 0.0
    %3160 = vmatpush1.msra.mxu0 0.0
    %3161 = vmatprep.subr.mxu0 0.0
    %3162 = vmatpush1.msra.mxu0 0.0
    %3163 = vmatprep.subr.mxu0 0.0
    %3164 = vmatpush1.msra.mxu0 0.0
    %3165 = vmatprep.mubr.f32.mxu0 0.0
    %3166 = vmatmul.mubr.f32.gmra.mrb[0].mxu0 %v3099
    %v3167 = vpop.f32.mrb[0].mxu0
    %v3168 = vadd.f32 0.0, %v3167
    %v3169 = vpop.f32.mrb[0].mxu0
    %v3170 = vadd.f32 0.0, %v3169
    %3171 = vdwg.mxu0
    %3173 = vrot.lane.b32.xlu0 %v3095, 32
    %v3174 = vpop.permute.xlu0 %3173
    %v3175 = vsel %vm306, %v3174, 0
    %3177 = vmatprep.subr.mxu0 %v396
    %3178 = vmatpush1.msra.mxu0 %v393
    %3179 = vmatprep.subr.mxu0 %v400
    %3180 = vmatpush1.msra.mxu0 %v398
    %3181 = vmatprep.subr.mxu0 %v404
    %3182 = vmatpush1.msra.mxu0 %v402
    %3183 = vmatprep.subr.mxu0 %v408
    %3184 = vmatpush1.msra.mxu0 %v406
    %3185 = vmatprep.subr.mxu0 0.0
    %3186 = vmatpush1.msra.mxu0 0.0
    %3187 = vmatprep.subr.mxu0 0.0
    %3188 = vmatpush1.msra.mxu0 0.0
    %3189 = vmatprep.subr.mxu0 0.0
    %3190 = vmatpush1.msra.mxu0 0.0
    %3191 = vmatprep.subr.mxu0 0.0
    %3192 = vmatpush1.msra.mxu0 0.0
    %3193 = vmatprep.subr.mxu0 0.0
    %3194 = vmatpush1.msra.mxu0 0.0
    %3195 = vmatprep.subr.mxu0 0.0
    %3196 = vmatpush1.msra.mxu0 0.0
    %3197 = vmatprep.subr.mxu0 0.0
    %3198 = vmatpush1.msra.mxu0 0.0
    %3199 = vmatprep.subr.mxu0 0.0
    %3200 = vmatpush1.msra.mxu0 0.0
    %3201 = vmatprep.subr.mxu0 0.0
    %3202 = vmatpush1.msra.mxu0 0.0
    %3203 = vmatprep.subr.mxu0 0.0
    %3204 = vmatpush1.msra.mxu0 0.0
    %3205 = vmatprep.subr.mxu0 0.0
    %3206 = vmatpush1.msra.mxu0 0.0
    %3207 = vmatprep.subr.mxu0 0.0
    %3208 = vmatpush1.msra.mxu0 0.0
    %3209 = vmatprep.subr.mxu0 0.0
    %3210 = vmatpush1.msra.mxu0 0.0
    %3211 = vmatprep.subr.mxu0 0.0
    %3212 = vmatpush1.msra.mxu0 0.0
    %3213 = vmatprep.subr.mxu0 0.0
    %3214 = vmatpush1.msra.mxu0 0.0
    %3215 = vmatprep.subr.mxu0 0.0
    %3216 = vmatpush1.msra.mxu0 0.0
    %3217 = vmatprep.subr.mxu0 0.0
    %3218 = vmatpush1.msra.mxu0 0.0
    %3219 = vmatprep.subr.mxu0 0.0
    %3220 = vmatpush1.msra.mxu0 0.0
    %3221 = vmatprep.subr.mxu0 0.0
    %3222 = vmatpush1.msra.mxu0 0.0
    %3223 = vmatprep.subr.mxu0 0.0
    %3224 = vmatpush1.msra.mxu0 0.0
    %3225 = vmatprep.subr.mxu0 0.0
    %3226 = vmatpush1.msra.mxu0 0.0
    %3227 = vmatprep.subr.mxu0 0.0
    %3228 = vmatpush1.msra.mxu0 0.0
    %3229 = vmatprep.subr.mxu0 0.0
    %3230 = vmatpush1.msra.mxu0 0.0
    %3231 = vmatprep.subr.mxu0 0.0
    %3232 = vmatpush1.msra.mxu0 0.0
    %3233 = vmatprep.subr.mxu0 0.0
    %3234 = vmatpush1.msra.mxu0 0.0
    %3235 = vmatprep.subr.mxu0 0.0
    %3236 = vmatpush1.msra.mxu0 0.0
    %3237 = vmatprep.subr.mxu0 0.0
    %3238 = vmatpush1.msra.mxu0 0.0
    %3239 = vmatprep.subr.mxu0 0.0
    %3240 = vmatpush1.msra.mxu0 0.0
    %3241 = vmatprep.mubr.f32.mxu0 0.0
    %3242 = vmatmul.mubr.f32.gmra.mrb[0].mxu0 %v3175
    %v3243 = vpop.f32.mrb[0].mxu0
    %v3244 = vadd.f32 %v3168, %v3243
    %v3245 = vpop.f32.mrb[0].mxu0
    %v3246 = vadd.f32 %v3170, %v3245
    %3247 = vdwg.mxu0
    %v3248 = vadd.f32 %v265, %v3244
    %v3249 = vadd.f32 %v267, %v3246
    %v3250 = vtanh.pop %v3248
    %v3251 = vtanh.pop %v3249
    %3252 = vmatprep.subr.mxu0 0.0
    %3253 = vmatpush1.msra.mxu0 %v136
    %3254 = vmatprep.subr.mxu0 0.0
    %3255 = vmatpush1.msra.mxu0 %v137
    %3256 = vmatprep.subr.mxu0 0.0
    %3257 = vmatpush1.msra.mxu0 %v138
    %3258 = vmatprep.subr.mxu0 0.0
    %3259 = vmatpush1.msra.mxu0 %v139
    %3260 = vmatprep.subr.mxu0 0.0
    %3261 = vmatpush1.msra.mxu0 %v140
    %3262 = vmatprep.subr.mxu0 0.0
    %3263 = vmatpush1.msra.mxu0 %v141
    %3264 = vmatprep.subr.mxu0 0.0
    %3265 = vmatpush1.msra.mxu0 %v142
    %3266 = vmatprep.subr.mxu0 0.0
    %3267 = vmatpush1.msra.mxu0 %v143
    %3268 = vmatprep.subr.mxu0 0.0
    %3269 = vmatpush1.msra.mxu0 %v144
    %3270 = vmatprep.subr.mxu0 0.0
    %3271 = vmatpush1.msra.mxu0 %v145
    %3272 = vmatprep.subr.mxu0 0.0
    %3273 = vmatpush1.msra.mxu0 %v146
    %3274 = vmatprep.subr.mxu0 0.0
    %3275 = vmatpush1.msra.mxu0 %v147
    %3276 = vmatprep.subr.mxu0 0.0
    %3277 = vmatpush1.msra.mxu0 %v148
    %3278 = vmatprep.subr.mxu0 0.0
    %3279 = vmatpush1.msra.mxu0 %v149
    %3280 = vmatprep.subr.mxu0 0.0
    %3281 = vmatpush1.msra.mxu0 %v150
    %3282 = vmatprep.subr.mxu0 0.0
    %3283 = vmatpush1.msra.mxu0 %v151
    %3284 = vmatprep.subr.mxu0 0.0
    %3285 = vmatpush1.msra.mxu0 %v152
    %3286 = vmatprep.subr.mxu0 0.0
    %3287 = vmatpush1.msra.mxu0 %v153
    %3288 = vmatprep.subr.mxu0 0.0
    %3289 = vmatpush1.msra.mxu0 %v154
    %3290 = vmatprep.subr.mxu0 0.0
    %3291 = vmatpush1.msra.mxu0 %v155
    %3292 = vmatprep.subr.mxu0 0.0
    %3293 = vmatpush1.msra.mxu0 %v156
    %3294 = vmatprep.subr.mxu0 0.0
    %3295 = vmatpush1.msra.mxu0 %v157
    %3296 = vmatprep.subr.mxu0 0.0
    %3297 = vmatpush1.msra.mxu0 %v158
    %3298 = vmatprep.subr.mxu0 0.0
    %3299 = vmatpush1.msra.mxu0 %v159
    %3300 = vmatprep.subr.mxu0 0.0
    %3301 = vmatpush1.msra.mxu0 %v160
    %3302 = vmatprep.subr.mxu0 0.0
    %3303 = vmatpush1.msra.mxu0 %v161
    %3304 = vmatprep.subr.mxu0 0.0
    %3305 = vmatpush1.msra.mxu0 %v162
    %3306 = vmatprep.subr.mxu0 0.0
    %3307 = vmatpush1.msra.mxu0 %v163
    %3308 = vmatprep.subr.mxu0 0.0
    %3309 = vmatpush1.msra.mxu0 %v164
    %3310 = vmatprep.subr.mxu0 0.0
    %3311 = vmatpush1.msra.mxu0 %v165
    %3312 = vmatprep.subr.mxu0 0.0
    %3313 = vmatpush1.msra.mxu0 %v166
    %3314 = vmatprep.subr.mxu0 0.0
    %3315 = vmatpush1.msra.mxu0 %v167
    %3316 = vmatprep.mubr.f32.mxu0 %v3251
    %3317 = vmatmul.mubr.f32.gmra.mrb[0].mxu0 %v3250
    %v3318 = vpop.f32.mrb[0].mxu0
    %v3319 = vadd.f32 0.0, %v3318
    %v3320 = vpop.f32.mrb[0].mxu0
    %3321 = vdwg.mxu0
    %v3322 = vsel %vm562, %v3319, -inf
    %3323 = vmax.xlane.f32.xlu0 %v3322
    %v3324 = vpop.xlane.xlu0 %3323
    %v3325 = vsub.f32 %v3319, %v3324
    %v3326 = vmul.f32 %v3325, 1.442695
    %v3327 = vpow.pop %v3326
    %v3328 = vsel %vm562, %v3327, 0.0
    %3329 = vadd.xlane.f32.xlu0 %v3328
    %v3330 = vpop.xlane.xlu0 %3329
    %v3331 = vrcp.pop %v3330
    %v3332 = vmul.f32 %v3327, %v3331
    %v3333 = vlaneseq
    %v3334 = vshrl.u32 %v3333, 7
    %v3335 = vsub.s32 0, %v3334
    %v3336 = vrot.slane %v3332, %v3335
    %3338 = vbcast.lane.b32.xlu0 %v3336, 256
    %v3339 = vpop.permute.xlu0 %3338
    %v3340 = vlaneseq
    %v3341 = vshrl.u32 %v3340, 7
    %v3342 = vsub.s32 1, %v3341
    %v3343 = vrot.slane %v3332, %v3342
    %3345 = vbcast.lane.b32.xlu0 %v3343, 256
    %v3346 = vpop.permute.xlu0 %3345
    %v3347 = vlaneseq
    %v3348 = vshrl.u32 %v3347, 7
    %v3349 = vsub.s32 2, %v3348
    %v3350 = vrot.slane %v3332, %v3349
    %3352 = vbcast.lane.b32.xlu0 %v3350, 256
    %v3353 = vpop.permute.xlu0 %3352
    %v3354 = vlaneseq
    %v3355 = vshrl.u32 %v3354, 7
    %v3356 = vsub.s32 3, %v3355
    %v3357 = vrot.slane %v3332, %v3356
    %3359 = vbcast.lane.b32.xlu0 %v3357, 256
    %v3360 = vpop.permute.xlu0 %3359
    %v3361 = vlaneseq
    %v3362 = vshrl.u32 %v3361, 7
    %v3363 = vsub.s32 4, %v3362
    %v3364 = vrot.slane %v3332, %v3363
    %3366 = vbcast.lane.b32.xlu0 %v3364, 256
    %v3367 = vpop.permute.xlu0 %3366
    %v3368 = vlaneseq
    %v3369 = vshrl.u32 %v3368, 7
    %v3370 = vsub.s32 5, %v3369
    %v3371 = vrot.slane %v3332, %v3370
    %3373 = vbcast.lane.b32.xlu0 %v3371, 256
    %v3374 = vpop.permute.xlu0 %3373
    %v3375 = vlaneseq
    %v3376 = vshrl.u32 %v3375, 7
    %v3377 = vsub.s32 6, %v3376
    %v3378 = vrot.slane %v3332, %v3377
    %3380 = vbcast.lane.b32.xlu0 %v3378, 256
    %v3381 = vpop.permute.xlu0 %3380
    %v3382 = vlaneseq
    %v3383 = vshrl.u32 %v3382, 7
    %v3384 = vsub.s32 7, %v3383
    %v3385 = vrot.slane %v3332, %v3384
    %3387 = vbcast.lane.b32.xlu0 %v3385, 256
    %v3388 = vpop.permute.xlu0 %3387
    %v3389 = vmul.f32 %v3339, %v40
    %v3390 = vmul.f32 %v3346, %v41
    %v3391 = vmul.f32 %v3353, %v42
    %v3392 = vmul.f32 %v3360, %v43
    %v3393 = vmul.f32 %v3367, %v44
    %v3394 = vmul.f32 %v3374, %v45
    %v3395 = vmul.f32 %v3381, %v46
    %v3396 = vmul.f32 %v3388, %v47
    %v3397 = vsel %vm306, %v3389, 0.0
    %v3398 = vrot.slane %v3397, 4
    %v3399 = vadd.f32 %v3397, %v3398
    %v3400 = vrot.slane %v3399, 2
    %v3401 = vadd.f32 %v3399, %v3400
    %v3402 = vrot.slane %v3401, 1
    %v3403 = vadd.f32 %v3401, %v3402
    %v3404 = vsel %vm306, %v3390, 0.0
    %v3405 = vrot.slane %v3404, 4
    %v3406 = vadd.f32 %v3404, %v3405
    %v3407 = vrot.slane %v3406, 2
    %v3408 = vadd.f32 %v3406, %v3407
    %v3409 = vrot.slane %v3408, 1
    %v3410 = vadd.f32 %v3408, %v3409
    %v3411 = vsel %vm306, %v3391, 0.0
    %v3412 = vrot.slane %v3411, 4
    %v3413 = vadd.f32 %v3411, %v3412
    %v3414 = vrot.slane %v3413, 2
    %v3415 = vadd.f32 %v3413, %v3414
    %v3416 = vrot.slane %v3415, 1
    %v3417 = vadd.f32 %v3415, %v3416
    %v3418 = vsel %vm306, %v3392, 0.0
    %v3419 = vrot.slane %v3418, 4
    %v3420 = vadd.f32 %v3418, %v3419
    %v3421 = vrot.slane %v3420, 2
    %v3422 = vadd.f32 %v3420, %v3421
    %v3423 = vrot.slane %v3422, 1
    %v3424 = vadd.f32 %v3422, %v3423
    %v3425 = vsel %vm306, %v3393, 0.0
    %v3426 = vrot.slane %v3425, 4
    %v3427 = vadd.f32 %v3425, %v3426
    %v3428 = vrot.slane %v3427, 2
    %v3429 = vadd.f32 %v3427, %v3428
    %v3430 = vrot.slane %v3429, 1
    %v3431 = vadd.f32 %v3429, %v3430
    %v3432 = vsel %vm306, %v3394, 0.0
    %v3433 = vrot.slane %v3432, 4
    %v3434 = vadd.f32 %v3432, %v3433
    %v3435 = vrot.slane %v3434, 2
    %v3436 = vadd.f32 %v3434, %v3435
    %v3437 = vrot.slane %v3436, 1
    %v3438 = vadd.f32 %v3436, %v3437
    %v3439 = vsel %vm306, %v3395, 0.0
    %v3440 = vrot.slane %v3439, 4
    %v3441 = vadd.f32 %v3439, %v3440
    %v3442 = vrot.slane %v3441, 2
    %v3443 = vadd.f32 %v3441, %v3442
    %v3444 = vrot.slane %v3443, 1
    %v3445 = vadd.f32 %v3443, %v3444
    %v3446 = vsel %vm306, %v3396, 0.0
    %v3447 = vrot.slane %v3446, 4
    %v3448 = vadd.f32 %v3446, %v3447
    %v3449 = vrot.slane %v3448, 2
    %v3450 = vadd.f32 %v3448, %v3449
    %v3451 = vrot.slane %v3450, 1
    %v3452 = vadd.f32 %v3450, %v3451
    %s3453 = scalar_lea.vmem %s2, 40
    %v3454 = vld [vmem:[%s3453] sm:$0xff]
    %3455 = vmatprep.subr.mxu0 0.0
    %3456 = vmatpush1.msra.mxu0 %v168
    %3457 = vmatprep.subr.mxu0 0.0
    %3458 = vmatpush1.msra.mxu0 %v169
    %3459 = vmatprep.subr.mxu0 0.0
    %3460 = vmatpush1.msra.mxu0 %v170
    %3461 = vmatprep.subr.mxu0 0.0
    %3462 = vmatpush1.msra.mxu0 %v171
    %3463 = vmatprep.subr.mxu0 0.0
    %3464 = vmatpush1.msra.mxu0 0.0
    %3465 = vmatprep.subr.mxu0 0.0
    %3466 = vmatpush1.msra.mxu0 0.0
    %3467 = vmatprep.subr.mxu0 0.0
    %3468 = vmatpush1.msra.mxu0 0.0
    %3469 = vmatprep.subr.mxu0 0.0
    %3470 = vmatpush1.msra.mxu0 0.0
    %3471 = vmatprep.subr.mxu0 0.0
    %3472 = vmatpush1.msra.mxu0 0.0
    %3473 = vmatprep.subr.mxu0 0.0
    %3474 = vmatpush1.msra.mxu0 0.0
    %3475 = vmatprep.subr.mxu0 0.0
    %3476 = vmatpush1.msra.mxu0 0.0
    %3477 = vmatprep.subr.mxu0 0.0
    %3478 = vmatpush1.msra.mxu0 0.0
    %3479 = vmatprep.subr.mxu0 0.0
    %3480 = vmatpush1.msra.mxu0 0.0
    %3481 = vmatprep.subr.mxu0 0.0
    %3482 = vmatpush1.msra.mxu0 0.0
    %3483 = vmatprep.subr.mxu0 0.0
    %3484 = vmatpush1.msra.mxu0 0.0
    %3485 = vmatprep.subr.mxu0 0.0
    %3486 = vmatpush1.msra.mxu0 0.0
    %3487 = vmatprep.subr.mxu0 0.0
    %3488 = vmatpush1.msra.mxu0 0.0
    %3489 = vmatprep.subr.mxu0 0.0
    %3490 = vmatpush1.msra.mxu0 0.0
    %3491 = vmatprep.subr.mxu0 0.0
    %3492 = vmatpush1.msra.mxu0 0.0
    %3493 = vmatprep.subr.mxu0 0.0
    %3494 = vmatpush1.msra.mxu0 0.0
    %3495 = vmatprep.subr.mxu0 0.0
    %3496 = vmatpush1.msra.mxu0 0.0
    %3497 = vmatprep.subr.mxu0 0.0
    %3498 = vmatpush1.msra.mxu0 0.0
    %3499 = vmatprep.subr.mxu0 0.0
    %3500 = vmatpush1.msra.mxu0 0.0
    %3501 = vmatprep.subr.mxu0 0.0
    %3502 = vmatpush1.msra.mxu0 0.0
    %3503 = vmatprep.subr.mxu0 0.0
    %3504 = vmatpush1.msra.mxu0 0.0
    %3505 = vmatprep.subr.mxu0 0.0
    %3506 = vmatpush1.msra.mxu0 0.0
    %3507 = vmatprep.subr.mxu0 0.0
    %3508 = vmatpush1.msra.mxu0 0.0
    %3509 = vmatprep.subr.mxu0 0.0
    %3510 = vmatpush1.msra.mxu0 0.0
    %3511 = vmatprep.subr.mxu0 0.0
    %3512 = vmatpush1.msra.mxu0 0.0
    %3513 = vmatprep.subr.mxu0 0.0
    %3514 = vmatpush1.msra.mxu0 0.0
    %3515 = vmatprep.subr.mxu0 0.0
    %3516 = vmatpush1.msra.mxu0 0.0
    %3517 = vmatprep.subr.mxu0 0.0
    %3518 = vmatpush1.msra.mxu0 0.0
    %3519 = vmatprep.mubr.f32.mxu0 0.0
    %3520 = vmatmul.mubr.f32.gmra.mrb[0].mxu0 %v3175
    %v3521 = vpop.f32.mrb[0].mxu0
    %v3522 = vadd.f32 0.0, %v3521
    %v3523 = vpop.f32.mrb[0].mxu0
    %3524 = vdwg.mxu0
    %v3533 = vsel %vm773, %v3410, %v3403
    %v3534 = vsel %vm775, %v3417, %v3533
    %v3535 = vsel %vm777, %v3424, %v3534
    %v3536 = vsel %vm779, %v3431, %v3535
    %v3537 = vsel %vm781, %v3438, %v3536
    %v3538 = vsel %vm783, %v3445, %v3537
    %v3539 = vsel %vm785, %v3452, %v3538
    %v3540 = vsel %vm306, %v3539, 0
    %3542 = vmatprep.subr.mxu0 0.0
    %3543 = vmatpush1.msra.mxu0 %v172
    %3544 = vmatprep.subr.mxu0 0.0
    %3545 = vmatpush1.msra.mxu0 %v173
    %3546 = vmatprep.subr.mxu0 0.0
    %3547 = vmatpush1.msra.mxu0 %v174
    %3548 = vmatprep.subr.mxu0 0.0
    %3549 = vmatpush1.msra.mxu0 %v175
    %3550 = vmatprep.subr.mxu0 0.0
    %3551 = vmatpush1.msra.mxu0 0.0
    %3552 = vmatprep.subr.mxu0 0.0
    %3553 = vmatpush1.msra.mxu0 0.0
    %3554 = vmatprep.subr.mxu0 0.0
    %3555 = vmatpush1.msra.mxu0 0.0
    %3556 = vmatprep.subr.mxu0 0.0
    %3557 = vmatpush1.msra.mxu0 0.0
    %3558 = vmatprep.subr.mxu0 0.0
    %3559 = vmatpush1.msra.mxu0 0.0
    %3560 = vmatprep.subr.mxu0 0.0
    %3561 = vmatpush1.msra.mxu0 0.0
    %3562 = vmatprep.subr.mxu0 0.0
    %3563 = vmatpush1.msra.mxu0 0.0
    %3564 = vmatprep.subr.mxu0 0.0
    %3565 = vmatpush1.msra.mxu0 0.0
    %3566 = vmatprep.subr.mxu0 0.0
    %3567 = vmatpush1.msra.mxu0 0.0
    %3568 = vmatprep.subr.mxu0 0.0
    %3569 = vmatpush1.msra.mxu0 0.0
    %3570 = vmatprep.subr.mxu0 0.0
    %3571 = vmatpush1.msra.mxu0 0.0
    %3572 = vmatprep.subr.mxu0 0.0
    %3573 = vmatpush1.msra.mxu0 0.0
    %3574 = vmatprep.subr.mxu0 0.0
    %3575 = vmatpush1.msra.mxu0 0.0
    %3576 = vmatprep.subr.mxu0 0.0
    %3577 = vmatpush1.msra.mxu0 0.0
    %3578 = vmatprep.subr.mxu0 0.0
    %3579 = vmatpush1.msra.mxu0 0.0
    %3580 = vmatprep.subr.mxu0 0.0
    %3581 = vmatpush1.msra.mxu0 0.0
    %3582 = vmatprep.subr.mxu0 0.0
    %3583 = vmatpush1.msra.mxu0 0.0
    %3584 = vmatprep.subr.mxu0 0.0
    %3585 = vmatpush1.msra.mxu0 0.0
    %3586 = vmatprep.subr.mxu0 0.0
    %3587 = vmatpush1.msra.mxu0 0.0
    %3588 = vmatprep.subr.mxu0 0.0
    %3589 = vmatpush1.msra.mxu0 0.0
    %3590 = vmatprep.subr.mxu0 0.0
    %3591 = vmatpush1.msra.mxu0 0.0
    %3592 = vmatprep.subr.mxu0 0.0
    %3593 = vmatpush1.msra.mxu0 0.0
    %3594 = vmatprep.subr.mxu0 0.0
    %3595 = vmatpush1.msra.mxu0 0.0
    %3596 = vmatprep.subr.mxu0 0.0
    %3597 = vmatpush1.msra.mxu0 0.0
    %3598 = vmatprep.subr.mxu0 0.0
    %3599 = vmatpush1.msra.mxu0 0.0
    %3600 = vmatprep.subr.mxu0 0.0
    %3601 = vmatpush1.msra.mxu0 0.0
    %3602 = vmatprep.subr.mxu0 0.0
    %3603 = vmatpush1.msra.mxu0 0.0
    %3604 = vmatprep.subr.mxu0 0.0
    %3605 = vmatpush1.msra.mxu0 0.0
    %3606 = vmatprep.mubr.f32.mxu0 0.0
    %3607 = vmatmul.mubr.f32.gmra.mrb[0].mxu0 %v3540
    %v3608 = vpop.f32.mrb[0].mxu0
    %v3609 = vadd.f32 %v3522, %v3608
    %v3610 = vpop.f32.mrb[0].mxu0
    %3611 = vdwg.mxu0
    %3613 = vset.pattern.permute.xlu0 0
    %3614 = vperm.xlu0 %3613, %v3454
    %v3615 = vpop.permute.xlu0 %3614
    %v3617 = vmul.f32 %v3615, %v867
    %v3618 = vadd.f32 %v3609, %v3617
    %v3619 = vadd.f32 %v3618, %v873
    %v3620 = vxor.u32 %v3619, 2147483648
    %v3621 = vmul.f32 %v3620, 1.442695
    %v3622 = vpow.pop %v3621
    %v3623 = vadd.f32 %v3622, 1.0
    %v3624 = vrcp.pop %v3623
    %v3625 = vmul.f32 1.0, %v3624
    %v3626 = vmul.f32 %v3625, 2.0
    %v3627 = vsub.f32 %v3626, 1.0
    %v3628 = vmul.f32 %v3625, %v3089
    %3630 = vrot.lane.b32.xlu0 %v3627, 64
    %v3631 = vpop.permute.xlu0 %3630
    %v3633 = vmul.f32 %v3625, %v3631
    %3635 = vrot.lane.b32.xlu0 %v3633, 32
    %v3636 = vpop.permute.xlu0 %3635
    %v3638 = vadd.f32 %v3628, %v3636
    %v3639 = vtanh.pop %v3638
    %3641 = vrot.lane.b32.xlu0 %v3639, 64
    %v3642 = vpop.permute.xlu0 %3641
    %v3644 = vmul.f32 %v3625, %v3642
    %3646 = vrot.lane.b32.xlu0 %v3638, 96
    %v3647 = vpop.permute.xlu0 %3646
    %v3648 = vsel %vm306, %v3647, 0
    %3650 = vmatprep.subr.mxu0 %v285
    %3651 = vmatpush1.msra.mxu0 %v282
    %3652 = vmatprep.subr.mxu0 %v289
    %3653 = vmatpush1.msra.mxu0 %v287
    %3654 = vmatprep.subr.mxu0 %v293
    %3655 = vmatpush1.msra.mxu0 %v291
    %3656 = vmatprep.subr.mxu0 %v297
    %3657 = vmatpush1.msra.mxu0 %v295
    %3658 = vmatprep.subr.mxu0 0.0
    %3659 = vmatpush1.msra.mxu0 0.0
    %3660 = vmatprep.subr.mxu0 0.0
    %3661 = vmatpush1.msra.mxu0 0.0
    %3662 = vmatprep.subr.mxu0 0.0
    %3663 = vmatpush1.msra.mxu0 0.0
    %3664 = vmatprep.subr.mxu0 0.0
    %3665 = vmatpush1.msra.mxu0 0.0
    %3666 = vmatprep.subr.mxu0 0.0
    %3667 = vmatpush1.msra.mxu0 0.0
    %3668 = vmatprep.subr.mxu0 0.0
    %3669 = vmatpush1.msra.mxu0 0.0
    %3670 = vmatprep.subr.mxu0 0.0
    %3671 = vmatpush1.msra.mxu0 0.0
    %3672 = vmatprep.subr.mxu0 0.0
    %3673 = vmatpush1.msra.mxu0 0.0
    %3674 = vmatprep.subr.mxu0 0.0
    %3675 = vmatpush1.msra.mxu0 0.0
    %3676 = vmatprep.subr.mxu0 0.0
    %3677 = vmatpush1.msra.mxu0 0.0
    %3678 = vmatprep.subr.mxu0 0.0
    %3679 = vmatpush1.msra.mxu0 0.0
    %3680 = vmatprep.subr.mxu0 0.0
    %3681 = vmatpush1.msra.mxu0 0.0
    %3682 = vmatprep.subr.mxu0 0.0
    %3683 = vmatpush1.msra.mxu0 0.0
    %3684 = vmatprep.subr.mxu0 0.0
    %3685 = vmatpush1.msra.mxu0 0.0
    %3686 = vmatprep.subr.mxu0 0.0
    %3687 = vmatpush1.msra.mxu0 0.0
    %3688 = vmatprep.subr.mxu0 0.0
    %3689 = vmatpush1.msra.mxu0 0.0
    %3690 = vmatprep.subr.mxu0 0.0
    %3691 = vmatpush1.msra.mxu0 0.0
    %3692 = vmatprep.subr.mxu0 0.0
    %3693 = vmatpush1.msra.mxu0 0.0
    %3694 = vmatprep.subr.mxu0 0.0
    %3695 = vmatpush1.msra.mxu0 0.0
    %3696 = vmatprep.subr.mxu0 0.0
    %3697 = vmatpush1.msra.mxu0 0.0
    %3698 = vmatprep.subr.mxu0 0.0
    %3699 = vmatpush1.msra.mxu0 0.0
    %3700 = vmatprep.subr.mxu0 0.0
    %3701 = vmatpush1.msra.mxu0 0.0
    %3702 = vmatprep.subr.mxu0 0.0
    %3703 = vmatpush1.msra.mxu0 0.0
    %3704 = vmatprep.subr.mxu0 0.0
    %3705 = vmatpush1.msra.mxu0 0.0
    %3706 = vmatprep.subr.mxu0 0.0
    %3707 = vmatpush1.msra.mxu0 0.0
    %3708 = vmatprep.subr.mxu0 0.0
    %3709 = vmatpush1.msra.mxu0 0.0
    %3710 = vmatprep.subr.mxu0 0.0
    %3711 = vmatpush1.msra.mxu0 0.0
    %3712 = vmatprep.subr.mxu0 0.0
    %3713 = vmatpush1.msra.mxu0 0.0
    %3714 = vmatprep.mubr.f32.mxu0 0.0
    %3715 = vmatmul.mubr.f32.gmra.mrb[0].mxu0 %v3648
    %v3716 = vpop.f32.mrb[0].mxu0
    %v3717 = vadd.f32 0.0, %v3716
    %v3718 = vpop.f32.mrb[0].mxu0
    %v3719 = vadd.f32 0.0, %v3718
    %3720 = vdwg.mxu0
    %3722 = vrot.lane.b32.xlu0 %v3644, 32
    %v3723 = vpop.permute.xlu0 %3722
    %v3724 = vsel %vm306, %v3723, 0
    %3726 = vmatprep.subr.mxu0 %v396
    %3727 = vmatpush1.msra.mxu0 %v393
    %3728 = vmatprep.subr.mxu0 %v400
    %3729 = vmatpush1.msra.mxu0 %v398
    %3730 = vmatprep.subr.mxu0 %v404
    %3731 = vmatpush1.msra.mxu0 %v402
    %3732 = vmatprep.subr.mxu0 %v408
    %3733 = vmatpush1.msra.mxu0 %v406
    %3734 = vmatprep.subr.mxu0 0.0
    %3735 = vmatpush1.msra.mxu0 0.0
    %3736 = vmatprep.subr.mxu0 0.0
    %3737 = vmatpush1.msra.mxu0 0.0
    %3738 = vmatprep.subr.mxu0 0.0
    %3739 = vmatpush1.msra.mxu0 0.0
    %3740 = vmatprep.subr.mxu0 0.0
    %3741 = vmatpush1.msra.mxu0 0.0
    %3742 = vmatprep.subr.mxu0 0.0
    %3743 = vmatpush1.msra.mxu0 0.0
    %3744 = vmatprep.subr.mxu0 0.0
    %3745 = vmatpush1.msra.mxu0 0.0
    %3746 = vmatprep.subr.mxu0 0.0
    %3747 = vmatpush1.msra.mxu0 0.0
    %3748 = vmatprep.subr.mxu0 0.0
    %3749 = vmatpush1.msra.mxu0 0.0
    %3750 = vmatprep.subr.mxu0 0.0
    %3751 = vmatpush1.msra.mxu0 0.0
    %3752 = vmatprep.subr.mxu0 0.0
    %3753 = vmatpush1.msra.mxu0 0.0
    %3754 = vmatprep.subr.mxu0 0.0
    %3755 = vmatpush1.msra.mxu0 0.0
    %3756 = vmatprep.subr.mxu0 0.0
    %3757 = vmatpush1.msra.mxu0 0.0
    %3758 = vmatprep.subr.mxu0 0.0
    %3759 = vmatpush1.msra.mxu0 0.0
    %3760 = vmatprep.subr.mxu0 0.0
    %3761 = vmatpush1.msra.mxu0 0.0
    %3762 = vmatprep.subr.mxu0 0.0
    %3763 = vmatpush1.msra.mxu0 0.0
    %3764 = vmatprep.subr.mxu0 0.0
    %3765 = vmatpush1.msra.mxu0 0.0
    %3766 = vmatprep.subr.mxu0 0.0
    %3767 = vmatpush1.msra.mxu0 0.0
    %3768 = vmatprep.subr.mxu0 0.0
    %3769 = vmatpush1.msra.mxu0 0.0
    %3770 = vmatprep.subr.mxu0 0.0
    %3771 = vmatpush1.msra.mxu0 0.0
    %3772 = vmatprep.subr.mxu0 0.0
    %3773 = vmatpush1.msra.mxu0 0.0
    %3774 = vmatprep.subr.mxu0 0.0
    %3775 = vmatpush1.msra.mxu0 0.0
    %3776 = vmatprep.subr.mxu0 0.0
    %3777 = vmatpush1.msra.mxu0 0.0
    %3778 = vmatprep.subr.mxu0 0.0
    %3779 = vmatpush1.msra.mxu0 0.0
    %3780 = vmatprep.subr.mxu0 0.0
    %3781 = vmatpush1.msra.mxu0 0.0
    %3782 = vmatprep.subr.mxu0 0.0
    %3783 = vmatpush1.msra.mxu0 0.0
    %3784 = vmatprep.subr.mxu0 0.0
    %3785 = vmatpush1.msra.mxu0 0.0
    %3786 = vmatprep.subr.mxu0 0.0
    %3787 = vmatpush1.msra.mxu0 0.0
    %3788 = vmatprep.subr.mxu0 0.0
    %3789 = vmatpush1.msra.mxu0 0.0
    %3790 = vmatprep.mubr.f32.mxu0 0.0
    %3791 = vmatmul.mubr.f32.gmra.mrb[0].mxu0 %v3724
    %v3792 = vpop.f32.mrb[0].mxu0
    %v3793 = vadd.f32 %v3717, %v3792
    %v3794 = vpop.f32.mrb[0].mxu0
    %v3795 = vadd.f32 %v3719, %v3794
    %3796 = vdwg.mxu0
    %v3797 = vadd.f32 %v265, %v3793
    %v3798 = vadd.f32 %v267, %v3795
    %v3799 = vtanh.pop %v3797
    %v3800 = vtanh.pop %v3798
    %3801 = vmatprep.subr.mxu0 0.0
    %3802 = vmatpush1.msra.mxu0 %v136
    %3803 = vmatprep.subr.mxu0 0.0
    %3804 = vmatpush1.msra.mxu0 %v137
    %3805 = vmatprep.subr.mxu0 0.0
    %3806 = vmatpush1.msra.mxu0 %v138
    %3807 = vmatprep.subr.mxu0 0.0
    %3808 = vmatpush1.msra.mxu0 %v139
    %3809 = vmatprep.subr.mxu0 0.0
    %3810 = vmatpush1.msra.mxu0 %v140
    %3811 = vmatprep.subr.mxu0 0.0
    %3812 = vmatpush1.msra.mxu0 %v141
    %3813 = vmatprep.subr.mxu0 0.0
    %3814 = vmatpush1.msra.mxu0 %v142
    %3815 = vmatprep.subr.mxu0 0.0
    %3816 = vmatpush1.msra.mxu0 %v143
    %3817 = vmatprep.subr.mxu0 0.0
    %3818 = vmatpush1.msra.mxu0 %v144
    %3819 = vmatprep.subr.mxu0 0.0
    %3820 = vmatpush1.msra.mxu0 %v145
    %3821 = vmatprep.subr.mxu0 0.0
    %3822 = vmatpush1.msra.mxu0 %v146
    %3823 = vmatprep.subr.mxu0 0.0
    %3824 = vmatpush1.msra.mxu0 %v147
    %3825 = vmatprep.subr.mxu0 0.0
    %3826 = vmatpush1.msra.mxu0 %v148
    %3827 = vmatprep.subr.mxu0 0.0
    %3828 = vmatpush1.msra.mxu0 %v149
    %3829 = vmatprep.subr.mxu0 0.0
    %3830 = vmatpush1.msra.mxu0 %v150
    %3831 = vmatprep.subr.mxu0 0.0
    %3832 = vmatpush1.msra.mxu0 %v151
    %3833 = vmatprep.subr.mxu0 0.0
    %3834 = vmatpush1.msra.mxu0 %v152
    %3835 = vmatprep.subr.mxu0 0.0
    %3836 = vmatpush1.msra.mxu0 %v153
    %3837 = vmatprep.subr.mxu0 0.0
    %3838 = vmatpush1.msra.mxu0 %v154
    %3839 = vmatprep.subr.mxu0 0.0
    %3840 = vmatpush1.msra.mxu0 %v155
    %3841 = vmatprep.subr.mxu0 0.0
    %3842 = vmatpush1.msra.mxu0 %v156
    %3843 = vmatprep.subr.mxu0 0.0
    %3844 = vmatpush1.msra.mxu0 %v157
    %3845 = vmatprep.subr.mxu0 0.0
    %3846 = vmatpush1.msra.mxu0 %v158
    %3847 = vmatprep.subr.mxu0 0.0
    %3848 = vmatpush1.msra.mxu0 %v159
    %3849 = vmatprep.subr.mxu0 0.0
    %3850 = vmatpush1.msra.mxu0 %v160
    %3851 = vmatprep.subr.mxu0 0.0
    %3852 = vmatpush1.msra.mxu0 %v161
    %3853 = vmatprep.subr.mxu0 0.0
    %3854 = vmatpush1.msra.mxu0 %v162
    %3855 = vmatprep.subr.mxu0 0.0
    %3856 = vmatpush1.msra.mxu0 %v163
    %3857 = vmatprep.subr.mxu0 0.0
    %3858 = vmatpush1.msra.mxu0 %v164
    %3859 = vmatprep.subr.mxu0 0.0
    %3860 = vmatpush1.msra.mxu0 %v165
    %3861 = vmatprep.subr.mxu0 0.0
    %3862 = vmatpush1.msra.mxu0 %v166
    %3863 = vmatprep.subr.mxu0 0.0
    %3864 = vmatpush1.msra.mxu0 %v167
    %3865 = vmatprep.mubr.f32.mxu0 %v3800
    %3866 = vmatmul.mubr.f32.gmra.mrb[0].mxu0 %v3799
    %v3867 = vpop.f32.mrb[0].mxu0
    %v3868 = vadd.f32 0.0, %v3867
    %v3869 = vpop.f32.mrb[0].mxu0
    %3870 = vdwg.mxu0
    %v3871 = vsel %vm562, %v3868, -inf
    %3872 = vmax.xlane.f32.xlu0 %v3871
    %v3873 = vpop.xlane.xlu0 %3872
    %v3874 = vsub.f32 %v3868, %v3873
    %v3875 = vmul.f32 %v3874, 1.442695
    %v3876 = vpow.pop %v3875
    %v3877 = vsel %vm562, %v3876, 0.0
    %3878 = vadd.xlane.f32.xlu0 %v3877
    %v3879 = vpop.xlane.xlu0 %3878
    %v3880 = vrcp.pop %v3879
    %v3881 = vmul.f32 %v3876, %v3880
    %v3882 = vlaneseq
    %v3883 = vshrl.u32 %v3882, 7
    %v3884 = vsub.s32 0, %v3883
    %v3885 = vrot.slane %v3881, %v3884
    %3887 = vbcast.lane.b32.xlu0 %v3885, 256
    %v3888 = vpop.permute.xlu0 %3887
    %v3889 = vlaneseq
    %v3890 = vshrl.u32 %v3889, 7
    %v3891 = vsub.s32 1, %v3890
    %v3892 = vrot.slane %v3881, %v3891
    %3894 = vbcast.lane.b32.xlu0 %v3892, 256
    %v3895 = vpop.permute.xlu0 %3894
    %v3896 = vlaneseq
    %v3897 = vshrl.u32 %v3896, 7
    %v3898 = vsub.s32 2, %v3897
    %v3899 = vrot.slane %v3881, %v3898
    %3901 = vbcast.lane.b32.xlu0 %v3899, 256
    %v3902 = vpop.permute.xlu0 %3901
    %v3903 = vlaneseq
    %v3904 = vshrl.u32 %v3903, 7
    %v3905 = vsub.s32 3, %v3904
    %v3906 = vrot.slane %v3881, %v3905
    %3908 = vbcast.lane.b32.xlu0 %v3906, 256
    %v3909 = vpop.permute.xlu0 %3908
    %v3910 = vlaneseq
    %v3911 = vshrl.u32 %v3910, 7
    %v3912 = vsub.s32 4, %v3911
    %v3913 = vrot.slane %v3881, %v3912
    %3915 = vbcast.lane.b32.xlu0 %v3913, 256
    %v3916 = vpop.permute.xlu0 %3915
    %v3917 = vlaneseq
    %v3918 = vshrl.u32 %v3917, 7
    %v3919 = vsub.s32 5, %v3918
    %v3920 = vrot.slane %v3881, %v3919
    %3922 = vbcast.lane.b32.xlu0 %v3920, 256
    %v3923 = vpop.permute.xlu0 %3922
    %v3924 = vlaneseq
    %v3925 = vshrl.u32 %v3924, 7
    %v3926 = vsub.s32 6, %v3925
    %v3927 = vrot.slane %v3881, %v3926
    %3929 = vbcast.lane.b32.xlu0 %v3927, 256
    %v3930 = vpop.permute.xlu0 %3929
    %v3931 = vlaneseq
    %v3932 = vshrl.u32 %v3931, 7
    %v3933 = vsub.s32 7, %v3932
    %v3934 = vrot.slane %v3881, %v3933
    %3936 = vbcast.lane.b32.xlu0 %v3934, 256
    %v3937 = vpop.permute.xlu0 %3936
    %v3938 = vmul.f32 %v3888, %v40
    %v3939 = vmul.f32 %v3895, %v41
    %v3940 = vmul.f32 %v3902, %v42
    %v3941 = vmul.f32 %v3909, %v43
    %v3942 = vmul.f32 %v3916, %v44
    %v3943 = vmul.f32 %v3923, %v45
    %v3944 = vmul.f32 %v3930, %v46
    %v3945 = vmul.f32 %v3937, %v47
    %v3946 = vsel %vm306, %v3938, 0.0
    %v3947 = vrot.slane %v3946, 4
    %v3948 = vadd.f32 %v3946, %v3947
    %v3949 = vrot.slane %v3948, 2
    %v3950 = vadd.f32 %v3948, %v3949
    %v3951 = vrot.slane %v3950, 1
    %v3952 = vadd.f32 %v3950, %v3951
    %v3953 = vsel %vm306, %v3939, 0.0
    %v3954 = vrot.slane %v3953, 4
    %v3955 = vadd.f32 %v3953, %v3954
    %v3956 = vrot.slane %v3955, 2
    %v3957 = vadd.f32 %v3955, %v3956
    %v3958 = vrot.slane %v3957, 1
    %v3959 = vadd.f32 %v3957, %v3958
    %v3960 = vsel %vm306, %v3940, 0.0
    %v3961 = vrot.slane %v3960, 4
    %v3962 = vadd.f32 %v3960, %v3961
    %v3963 = vrot.slane %v3962, 2
    %v3964 = vadd.f32 %v3962, %v3963
    %v3965 = vrot.slane %v3964, 1
    %v3966 = vadd.f32 %v3964, %v3965
    %v3967 = vsel %vm306, %v3941, 0.0
    %v3968 = vrot.slane %v3967, 4
    %v3969 = vadd.f32 %v3967, %v3968
    %v3970 = vrot.slane %v3969, 2
    %v3971 = vadd.f32 %v3969, %v3970
    %v3972 = vrot.slane %v3971, 1
    %v3973 = vadd.f32 %v3971, %v3972
    %v3974 = vsel %vm306, %v3942, 0.0
    %v3975 = vrot.slane %v3974, 4
    %v3976 = vadd.f32 %v3974, %v3975
    %v3977 = vrot.slane %v3976, 2
    %v3978 = vadd.f32 %v3976, %v3977
    %v3979 = vrot.slane %v3978, 1
    %v3980 = vadd.f32 %v3978, %v3979
    %v3981 = vsel %vm306, %v3943, 0.0
    %v3982 = vrot.slane %v3981, 4
    %v3983 = vadd.f32 %v3981, %v3982
    %v3984 = vrot.slane %v3983, 2
    %v3985 = vadd.f32 %v3983, %v3984
    %v3986 = vrot.slane %v3985, 1
    %v3987 = vadd.f32 %v3985, %v3986
    %v3988 = vsel %vm306, %v3944, 0.0
    %v3989 = vrot.slane %v3988, 4
    %v3990 = vadd.f32 %v3988, %v3989
    %v3991 = vrot.slane %v3990, 2
    %v3992 = vadd.f32 %v3990, %v3991
    %v3993 = vrot.slane %v3992, 1
    %v3994 = vadd.f32 %v3992, %v3993
    %v3995 = vsel %vm306, %v3945, 0.0
    %v3996 = vrot.slane %v3995, 4
    %v3997 = vadd.f32 %v3995, %v3996
    %v3998 = vrot.slane %v3997, 2
    %v3999 = vadd.f32 %v3997, %v3998
    %v4000 = vrot.slane %v3999, 1
    %v4001 = vadd.f32 %v3999, %v4000
    %s4002 = scalar_lea.vmem %s2, 48
    %v4003 = vld [vmem:[%s4002] sm:$0xff]
    %4004 = vmatprep.subr.mxu0 0.0
    %4005 = vmatpush1.msra.mxu0 %v168
    %4006 = vmatprep.subr.mxu0 0.0
    %4007 = vmatpush1.msra.mxu0 %v169
    %4008 = vmatprep.subr.mxu0 0.0
    %4009 = vmatpush1.msra.mxu0 %v170
    %4010 = vmatprep.subr.mxu0 0.0
    %4011 = vmatpush1.msra.mxu0 %v171
    %4012 = vmatprep.subr.mxu0 0.0
    %4013 = vmatpush1.msra.mxu0 0.0
    %4014 = vmatprep.subr.mxu0 0.0
    %4015 = vmatpush1.msra.mxu0 0.0
    %4016 = vmatprep.subr.mxu0 0.0
    %4017 = vmatpush1.msra.mxu0 0.0
    %4018 = vmatprep.subr.mxu0 0.0
    %4019 = vmatpush1.msra.mxu0 0.0
    %4020 = vmatprep.subr.mxu0 0.0
    %4021 = vmatpush1.msra.mxu0 0.0
    %4022 = vmatprep.subr.mxu0 0.0
    %4023 = vmatpush1.msra.mxu0 0.0
    %4024 = vmatprep.subr.mxu0 0.0
    %4025 = vmatpush1.msra.mxu0 0.0
    %4026 = vmatprep.subr.mxu0 0.0
    %4027 = vmatpush1.msra.mxu0 0.0
    %4028 = vmatprep.subr.mxu0 0.0
    %4029 = vmatpush1.msra.mxu0 0.0
    %4030 = vmatprep.subr.mxu0 0.0
    %4031 = vmatpush1.msra.mxu0 0.0
    %4032 = vmatprep.subr.mxu0 0.0
    %4033 = vmatpush1.msra.mxu0 0.0
    %4034 = vmatprep.subr.mxu0 0.0
    %4035 = vmatpush1.msra.mxu0 0.0
    %4036 = vmatprep.subr.mxu0 0.0
    %4037 = vmatpush1.msra.mxu0 0.0
    %4038 = vmatprep.subr.mxu0 0.0
    %4039 = vmatpush1.msra.mxu0 0.0
    %4040 = vmatprep.subr.mxu0 0.0
    %4041 = vmatpush1.msra.mxu0 0.0
    %4042 = vmatprep.subr.mxu0 0.0
    %4043 = vmatpush1.msra.mxu0 0.0
    %4044 = vmatprep.subr.mxu0 0.0
    %4045 = vmatpush1.msra.mxu0 0.0
    %4046 = vmatprep.subr.mxu0 0.0
    %4047 = vmatpush1.msra.mxu0 0.0
    %4048 = vmatprep.subr.mxu0 0.0
    %4049 = vmatpush1.msra.mxu0 0.0
    %4050 = vmatprep.subr.mxu0 0.0
    %4051 = vmatpush1.msra.mxu0 0.0
    %4052 = vmatprep.subr.mxu0 0.0
    %4053 = vmatpush1.msra.mxu0 0.0
    %4054 = vmatprep.subr.mxu0 0.0
    %4055 = vmatpush1.msra.mxu0 0.0
    %4056 = vmatprep.subr.mxu0 0.0
    %4057 = vmatpush1.msra.mxu0 0.0
    %4058 = vmatprep.subr.mxu0 0.0
    %4059 = vmatpush1.msra.mxu0 0.0
    %4060 = vmatprep.subr.mxu0 0.0
    %4061 = vmatpush1.msra.mxu0 0.0
    %4062 = vmatprep.subr.mxu0 0.0
    %4063 = vmatpush1.msra.mxu0 0.0
    %4064 = vmatprep.subr.mxu0 0.0
    %4065 = vmatpush1.msra.mxu0 0.0
    %4066 = vmatprep.subr.mxu0 0.0
    %4067 = vmatpush1.msra.mxu0 0.0
    %4068 = vmatprep.mubr.f32.mxu0 0.0
    %4069 = vmatmul.mubr.f32.gmra.mrb[0].mxu0 %v3724
    %v4070 = vpop.f32.mrb[0].mxu0
    %v4071 = vadd.f32 0.0, %v4070
    %v4072 = vpop.f32.mrb[0].mxu0
    %4073 = vdwg.mxu0
    %v4082 = vsel %vm773, %v3959, %v3952
    %v4083 = vsel %vm775, %v3966, %v4082
    %v4084 = vsel %vm777, %v3973, %v4083
    %v4085 = vsel %vm779, %v3980, %v4084
    %v4086 = vsel %vm781, %v3987, %v4085
    %v4087 = vsel %vm783, %v3994, %v4086
    %v4088 = vsel %vm785, %v4001, %v4087
    %v4089 = vsel %vm306, %v4088, 0
    %4091 = vmatprep.subr.mxu0 0.0
    %4092 = vmatpush1.msra.mxu0 %v172
    %4093 = vmatprep.subr.mxu0 0.0
    %4094 = vmatpush1.msra.mxu0 %v173
    %4095 = vmatprep.subr.mxu0 0.0
    %4096 = vmatpush1.msra.mxu0 %v174
    %4097 = vmatprep.subr.mxu0 0.0
    %4098 = vmatpush1.msra.mxu0 %v175
    %4099 = vmatprep.subr.mxu0 0.0
    %4100 = vmatpush1.msra.mxu0 0.0
    %4101 = vmatprep.subr.mxu0 0.0
    %4102 = vmatpush1.msra.mxu0 0.0
    %4103 = vmatprep.subr.mxu0 0.0
    %4104 = vmatpush1.msra.mxu0 0.0
    %4105 = vmatprep.subr.mxu0 0.0
    %4106 = vmatpush1.msra.mxu0 0.0
    %4107 = vmatprep.subr.mxu0 0.0
    %4108 = vmatpush1.msra.mxu0 0.0
    %4109 = vmatprep.subr.mxu0 0.0
    %4110 = vmatpush1.msra.mxu0 0.0
    %4111 = vmatprep.subr.mxu0 0.0
    %4112 = vmatpush1.msra.mxu0 0.0
    %4113 = vmatprep.subr.mxu0 0.0
    %4114 = vmatpush1.msra.mxu0 0.0
    %4115 = vmatprep.subr.mxu0 0.0
    %4116 = vmatpush1.msra.mxu0 0.0
    %4117 = vmatprep.subr.mxu0 0.0
    %4118 = vmatpush1.msra.mxu0 0.0
    %4119 = vmatprep.subr.mxu0 0.0
    %4120 = vmatpush1.msra.mxu0 0.0
    %4121 = vmatprep.subr.mxu0 0.0
    %4122 = vmatpush1.msra.mxu0 0.0
    %4123 = vmatprep.subr.mxu0 0.0
    %4124 = vmatpush1.msra.mxu0 0.0
    %4125 = vmatprep.subr.mxu0 0.0
    %4126 = vmatpush1.msra.mxu0 0.0
    %4127 = vmatprep.subr.mxu0 0.0
    %4128 = vmatpush1.msra.mxu0 0.0
    %4129 = vmatprep.subr.mxu0 0.0
    %4130 = vmatpush1.msra.mxu0 0.0
    %4131 = vmatprep.subr.mxu0 0.0
    %4132 = vmatpush1.msra.mxu0 0.0
    %4133 = vmatprep.subr.mxu0 0.0
    %4134 = vmatpush1.msra.mxu0 0.0
    %4135 = vmatprep.subr.mxu0 0.0
    %4136 = vmatpush1.msra.mxu0 0.0
    %4137 = vmatprep.subr.mxu0 0.0
    %4138 = vmatpush1.msra.mxu0 0.0
    %4139 = vmatprep.subr.mxu0 0.0
    %4140 = vmatpush1.msra.mxu0 0.0
    %4141 = vmatprep.subr.mxu0 0.0
    %4142 = vmatpush1.msra.mxu0 0.0
    %4143 = vmatprep.subr.mxu0 0.0
    %4144 = vmatpush1.msra.mxu0 0.0
    %4145 = vmatprep.subr.mxu0 0.0
    %4146 = vmatpush1.msra.mxu0 0.0
    %4147 = vmatprep.subr.mxu0 0.0
    %4148 = vmatpush1.msra.mxu0 0.0
    %4149 = vmatprep.subr.mxu0 0.0
    %4150 = vmatpush1.msra.mxu0 0.0
    %4151 = vmatprep.subr.mxu0 0.0
    %4152 = vmatpush1.msra.mxu0 0.0
    %4153 = vmatprep.subr.mxu0 0.0
    %4154 = vmatpush1.msra.mxu0 0.0
    %4155 = vmatprep.mubr.f32.mxu0 0.0
    %4156 = vmatmul.mubr.f32.gmra.mrb[0].mxu0 %v4089
    %v4157 = vpop.f32.mrb[0].mxu0
    %v4158 = vadd.f32 %v4071, %v4157
    %v4159 = vpop.f32.mrb[0].mxu0
    %4160 = vdwg.mxu0
    %4162 = vset.pattern.permute.xlu0 0
    %4163 = vperm.xlu0 %4162, %v4003
    %v4164 = vpop.permute.xlu0 %4163
    %v4166 = vmul.f32 %v4164, %v867
    %v4167 = vadd.f32 %v4158, %v4166
    %v4168 = vadd.f32 %v4167, %v873
    %v4169 = vxor.u32 %v4168, 2147483648
    %v4170 = vmul.f32 %v4169, 1.442695
    %v4171 = vpow.pop %v4170
    %v4172 = vadd.f32 %v4171, 1.0
    %v4173 = vrcp.pop %v4172
    %v4174 = vmul.f32 1.0, %v4173
    %v4175 = vmul.f32 %v4174, 2.0
    %v4176 = vsub.f32 %v4175, 1.0
    %v4177 = vmul.f32 %v4174, %v3638
    %4179 = vrot.lane.b32.xlu0 %v4176, 64
    %v4180 = vpop.permute.xlu0 %4179
    %v4182 = vmul.f32 %v4174, %v4180
    %4184 = vrot.lane.b32.xlu0 %v4182, 32
    %v4185 = vpop.permute.xlu0 %4184
    %v4187 = vadd.f32 %v4177, %v4185
    %v4188 = vtanh.pop %v4187
    %4190 = vrot.lane.b32.xlu0 %v4188, 64
    %v4191 = vpop.permute.xlu0 %4190
    %v4193 = vmul.f32 %v4174, %v4191
    %4195 = vrot.lane.b32.xlu0 %v4187, 96
    %v4196 = vpop.permute.xlu0 %4195
    %v4197 = vsel %vm306, %v4196, 0
    %4199 = vmatprep.subr.mxu0 %v285
    %4200 = vmatpush1.msra.mxu0 %v282
    %4201 = vmatprep.subr.mxu0 %v289
    %4202 = vmatpush1.msra.mxu0 %v287
    %4203 = vmatprep.subr.mxu0 %v293
    %4204 = vmatpush1.msra.mxu0 %v291
    %4205 = vmatprep.subr.mxu0 %v297
    %4206 = vmatpush1.msra.mxu0 %v295
    %4207 = vmatprep.subr.mxu0 0.0
    %4208 = vmatpush1.msra.mxu0 0.0
    %4209 = vmatprep.subr.mxu0 0.0
    %4210 = vmatpush1.msra.mxu0 0.0
    %4211 = vmatprep.subr.mxu0 0.0
    %4212 = vmatpush1.msra.mxu0 0.0
    %4213 = vmatprep.subr.mxu0 0.0
    %4214 = vmatpush1.msra.mxu0 0.0
    %4215 = vmatprep.subr.mxu0 0.0
    %4216 = vmatpush1.msra.mxu0 0.0
    %4217 = vmatprep.subr.mxu0 0.0
    %4218 = vmatpush1.msra.mxu0 0.0
    %4219 = vmatprep.subr.mxu0 0.0
    %4220 = vmatpush1.msra.mxu0 0.0
    %4221 = vmatprep.subr.mxu0 0.0
    %4222 = vmatpush1.msra.mxu0 0.0
    %4223 = vmatprep.subr.mxu0 0.0
    %4224 = vmatpush1.msra.mxu0 0.0
    %4225 = vmatprep.subr.mxu0 0.0
    %4226 = vmatpush1.msra.mxu0 0.0
    %4227 = vmatprep.subr.mxu0 0.0
    %4228 = vmatpush1.msra.mxu0 0.0
    %4229 = vmatprep.subr.mxu0 0.0
    %4230 = vmatpush1.msra.mxu0 0.0
    %4231 = vmatprep.subr.mxu0 0.0
    %4232 = vmatpush1.msra.mxu0 0.0
    %4233 = vmatprep.subr.mxu0 0.0
    %4234 = vmatpush1.msra.mxu0 0.0
    %4235 = vmatprep.subr.mxu0 0.0
    %4236 = vmatpush1.msra.mxu0 0.0
    %4237 = vmatprep.subr.mxu0 0.0
    %4238 = vmatpush1.msra.mxu0 0.0
    %4239 = vmatprep.subr.mxu0 0.0
    %4240 = vmatpush1.msra.mxu0 0.0
    %4241 = vmatprep.subr.mxu0 0.0
    %4242 = vmatpush1.msra.mxu0 0.0
    %4243 = vmatprep.subr.mxu0 0.0
    %4244 = vmatpush1.msra.mxu0 0.0
    %4245 = vmatprep.subr.mxu0 0.0
    %4246 = vmatpush1.msra.mxu0 0.0
    %4247 = vmatprep.subr.mxu0 0.0
    %4248 = vmatpush1.msra.mxu0 0.0
    %4249 = vmatprep.subr.mxu0 0.0
    %4250 = vmatpush1.msra.mxu0 0.0
    %4251 = vmatprep.subr.mxu0 0.0
    %4252 = vmatpush1.msra.mxu0 0.0
    %4253 = vmatprep.subr.mxu0 0.0
    %4254 = vmatpush1.msra.mxu0 0.0
    %4255 = vmatprep.subr.mxu0 0.0
    %4256 = vmatpush1.msra.mxu0 0.0
    %4257 = vmatprep.subr.mxu0 0.0
    %4258 = vmatpush1.msra.mxu0 0.0
    %4259 = vmatprep.subr.mxu0 0.0
    %4260 = vmatpush1.msra.mxu0 0.0
    %4261 = vmatprep.subr.mxu0 0.0
    %4262 = vmatpush1.msra.mxu0 0.0
    %4263 = vmatprep.mubr.f32.mxu0 0.0
    %4264 = vmatmul.mubr.f32.gmra.mrb[0].mxu0 %v4197
    %v4265 = vpop.f32.mrb[0].mxu0
    %v4266 = vadd.f32 0.0, %v4265
    %v4267 = vpop.f32.mrb[0].mxu0
    %v4268 = vadd.f32 0.0, %v4267
    %4269 = vdwg.mxu0
    %4271 = vrot.lane.b32.xlu0 %v4193, 32
    %v4272 = vpop.permute.xlu0 %4271
    %v4273 = vsel %vm306, %v4272, 0
    %4275 = vmatprep.subr.mxu0 %v396
    %4276 = vmatpush1.msra.mxu0 %v393
    %4277 = vmatprep.subr.mxu0 %v400
    %4278 = vmatpush1.msra.mxu0 %v398
    %4279 = vmatprep.subr.mxu0 %v404
    %4280 = vmatpush1.msra.mxu0 %v402
    %4281 = vmatprep.subr.mxu0 %v408
    %4282 = vmatpush1.msra.mxu0 %v406
    %4283 = vmatprep.subr.mxu0 0.0
    %4284 = vmatpush1.msra.mxu0 0.0
    %4285 = vmatprep.subr.mxu0 0.0
    %4286 = vmatpush1.msra.mxu0 0.0
    %4287 = vmatprep.subr.mxu0 0.0
    %4288 = vmatpush1.msra.mxu0 0.0
    %4289 = vmatprep.subr.mxu0 0.0
    %4290 = vmatpush1.msra.mxu0 0.0
    %4291 = vmatprep.subr.mxu0 0.0
    %4292 = vmatpush1.msra.mxu0 0.0
    %4293 = vmatprep.subr.mxu0 0.0
    %4294 = vmatpush1.msra.mxu0 0.0
    %4295 = vmatprep.subr.mxu0 0.0
    %4296 = vmatpush1.msra.mxu0 0.0
    %4297 = vmatprep.subr.mxu0 0.0
    %4298 = vmatpush1.msra.mxu0 0.0
    %4299 = vmatprep.subr.mxu0 0.0
    %4300 = vmatpush1.msra.mxu0 0.0
    %4301 = vmatprep.subr.mxu0 0.0
    %4302 = vmatpush1.msra.mxu0 0.0
    %4303 = vmatprep.subr.mxu0 0.0
    %4304 = vmatpush1.msra.mxu0 0.0
    %4305 = vmatprep.subr.mxu0 0.0
    %4306 = vmatpush1.msra.mxu0 0.0
    %4307 = vmatprep.subr.mxu0 0.0
    %4308 = vmatpush1.msra.mxu0 0.0
    %4309 = vmatprep.subr.mxu0 0.0
    %4310 = vmatpush1.msra.mxu0 0.0
    %4311 = vmatprep.subr.mxu0 0.0
    %4312 = vmatpush1.msra.mxu0 0.0
    %4313 = vmatprep.subr.mxu0 0.0
    %4314 = vmatpush1.msra.mxu0 0.0
    %4315 = vmatprep.subr.mxu0 0.0
    %4316 = vmatpush1.msra.mxu0 0.0
    %4317 = vmatprep.subr.mxu0 0.0
    %4318 = vmatpush1.msra.mxu0 0.0
    %4319 = vmatprep.subr.mxu0 0.0
    %4320 = vmatpush1.msra.mxu0 0.0
    %4321 = vmatprep.subr.mxu0 0.0
    %4322 = vmatpush1.msra.mxu0 0.0
    %4323 = vmatprep.subr.mxu0 0.0
    %4324 = vmatpush1.msra.mxu0 0.0
    %4325 = vmatprep.subr.mxu0 0.0
    %4326 = vmatpush1.msra.mxu0 0.0
    %4327 = vmatprep.subr.mxu0 0.0
    %4328 = vmatpush1.msra.mxu0 0.0
    %4329 = vmatprep.subr.mxu0 0.0
    %4330 = vmatpush1.msra.mxu0 0.0
    %4331 = vmatprep.subr.mxu0 0.0
    %4332 = vmatpush1.msra.mxu0 0.0
    %4333 = vmatprep.subr.mxu0 0.0
    %4334 = vmatpush1.msra.mxu0 0.0
    %4335 = vmatprep.subr.mxu0 0.0
    %4336 = vmatpush1.msra.mxu0 0.0
    %4337 = vmatprep.subr.mxu0 0.0
    %4338 = vmatpush1.msra.mxu0 0.0
    %4339 = vmatprep.mubr.f32.mxu0 0.0
    %4340 = vmatmul.mubr.f32.gmra.mrb[0].mxu0 %v4273
    %v4341 = vpop.f32.mrb[0].mxu0
    %v4342 = vadd.f32 %v4266, %v4341
    %v4343 = vpop.f32.mrb[0].mxu0
    %v4344 = vadd.f32 %v4268, %v4343
    %4345 = vdwg.mxu0
    %v4346 = vadd.f32 %v265, %v4342
    %v4347 = vadd.f32 %v267, %v4344
    %v4348 = vtanh.pop %v4346
    %v4349 = vtanh.pop %v4347
    %4350 = vmatprep.subr.mxu0 0.0
    %4351 = vmatpush1.msra.mxu0 %v136
    %4352 = vmatprep.subr.mxu0 0.0
    %4353 = vmatpush1.msra.mxu0 %v137
    %4354 = vmatprep.subr.mxu0 0.0
    %4355 = vmatpush1.msra.mxu0 %v138
    %4356 = vmatprep.subr.mxu0 0.0
    %4357 = vmatpush1.msra.mxu0 %v139
    %4358 = vmatprep.subr.mxu0 0.0
    %4359 = vmatpush1.msra.mxu0 %v140
    %4360 = vmatprep.subr.mxu0 0.0
    %4361 = vmatpush1.msra.mxu0 %v141
    %4362 = vmatprep.subr.mxu0 0.0
    %4363 = vmatpush1.msra.mxu0 %v142
    %4364 = vmatprep.subr.mxu0 0.0
    %4365 = vmatpush1.msra.mxu0 %v143
    %4366 = vmatprep.subr.mxu0 0.0
    %4367 = vmatpush1.msra.mxu0 %v144
    %4368 = vmatprep.subr.mxu0 0.0
    %4369 = vmatpush1.msra.mxu0 %v145
    %4370 = vmatprep.subr.mxu0 0.0
    %4371 = vmatpush1.msra.mxu0 %v146
    %4372 = vmatprep.subr.mxu0 0.0
    %4373 = vmatpush1.msra.mxu0 %v147
    %4374 = vmatprep.subr.mxu0 0.0
    %4375 = vmatpush1.msra.mxu0 %v148
    %4376 = vmatprep.subr.mxu0 0.0
    %4377 = vmatpush1.msra.mxu0 %v149
    %4378 = vmatprep.subr.mxu0 0.0
    %4379 = vmatpush1.msra.mxu0 %v150
    %4380 = vmatprep.subr.mxu0 0.0
    %4381 = vmatpush1.msra.mxu0 %v151
    %4382 = vmatprep.subr.mxu0 0.0
    %4383 = vmatpush1.msra.mxu0 %v152
    %4384 = vmatprep.subr.mxu0 0.0
    %4385 = vmatpush1.msra.mxu0 %v153
    %4386 = vmatprep.subr.mxu0 0.0
    %4387 = vmatpush1.msra.mxu0 %v154
    %4388 = vmatprep.subr.mxu0 0.0
    %4389 = vmatpush1.msra.mxu0 %v155
    %4390 = vmatprep.subr.mxu0 0.0
    %4391 = vmatpush1.msra.mxu0 %v156
    %4392 = vmatprep.subr.mxu0 0.0
    %4393 = vmatpush1.msra.mxu0 %v157
    %4394 = vmatprep.subr.mxu0 0.0
    %4395 = vmatpush1.msra.mxu0 %v158
    %4396 = vmatprep.subr.mxu0 0.0
    %4397 = vmatpush1.msra.mxu0 %v159
    %4398 = vmatprep.subr.mxu0 0.0
    %4399 = vmatpush1.msra.mxu0 %v160
    %4400 = vmatprep.subr.mxu0 0.0
    %4401 = vmatpush1.msra.mxu0 %v161
    %4402 = vmatprep.subr.mxu0 0.0
    %4403 = vmatpush1.msra.mxu0 %v162
    %4404 = vmatprep.subr.mxu0 0.0
    %4405 = vmatpush1.msra.mxu0 %v163
    %4406 = vmatprep.subr.mxu0 0.0
    %4407 = vmatpush1.msra.mxu0 %v164
    %4408 = vmatprep.subr.mxu0 0.0
    %4409 = vmatpush1.msra.mxu0 %v165
    %4410 = vmatprep.subr.mxu0 0.0
    %4411 = vmatpush1.msra.mxu0 %v166
    %4412 = vmatprep.subr.mxu0 0.0
    %4413 = vmatpush1.msra.mxu0 %v167
    %4414 = vmatprep.mubr.f32.mxu0 %v4349
    %4415 = vmatmul.mubr.f32.gmra.mrb[0].mxu0 %v4348
    %v4416 = vpop.f32.mrb[0].mxu0
    %v4417 = vadd.f32 0.0, %v4416
    %v4418 = vpop.f32.mrb[0].mxu0
    %4419 = vdwg.mxu0
    %v4420 = vsel %vm562, %v4417, -inf
    %4421 = vmax.xlane.f32.xlu0 %v4420
    %v4422 = vpop.xlane.xlu0 %4421
    %v4423 = vsub.f32 %v4417, %v4422
    %v4424 = vmul.f32 %v4423, 1.442695
    %v4425 = vpow.pop %v4424
    %v4426 = vsel %vm562, %v4425, 0.0
    %4427 = vadd.xlane.f32.xlu0 %v4426
    %v4428 = vpop.xlane.xlu0 %4427
    %v4429 = vrcp.pop %v4428
    %v4430 = vmul.f32 %v4425, %v4429
    %v4431 = vlaneseq
    %v4432 = vshrl.u32 %v4431, 7
    %v4433 = vsub.s32 0, %v4432
    %v4434 = vrot.slane %v4430, %v4433
    %4436 = vbcast.lane.b32.xlu0 %v4434, 256
    %v4437 = vpop.permute.xlu0 %4436
    %v4438 = vlaneseq
    %v4439 = vshrl.u32 %v4438, 7
    %v4440 = vsub.s32 1, %v4439
    %v4441 = vrot.slane %v4430, %v4440
    %4443 = vbcast.lane.b32.xlu0 %v4441, 256
    %v4444 = vpop.permute.xlu0 %4443
    %v4445 = vlaneseq
    %v4446 = vshrl.u32 %v4445, 7
    %v4447 = vsub.s32 2, %v4446
    %v4448 = vrot.slane %v4430, %v4447
    %4450 = vbcast.lane.b32.xlu0 %v4448, 256
    %v4451 = vpop.permute.xlu0 %4450
    %v4452 = vlaneseq
    %v4453 = vshrl.u32 %v4452, 7
    %v4454 = vsub.s32 3, %v4453
    %v4455 = vrot.slane %v4430, %v4454
    %4457 = vbcast.lane.b32.xlu0 %v4455, 256
    %v4458 = vpop.permute.xlu0 %4457
    %v4459 = vlaneseq
    %v4460 = vshrl.u32 %v4459, 7
    %v4461 = vsub.s32 4, %v4460
    %v4462 = vrot.slane %v4430, %v4461
    %4464 = vbcast.lane.b32.xlu0 %v4462, 256
    %v4465 = vpop.permute.xlu0 %4464
    %v4466 = vlaneseq
    %v4467 = vshrl.u32 %v4466, 7
    %v4468 = vsub.s32 5, %v4467
    %v4469 = vrot.slane %v4430, %v4468
    %4471 = vbcast.lane.b32.xlu0 %v4469, 256
    %v4472 = vpop.permute.xlu0 %4471
    %v4473 = vlaneseq
    %v4474 = vshrl.u32 %v4473, 7
    %v4475 = vsub.s32 6, %v4474
    %v4476 = vrot.slane %v4430, %v4475
    %4478 = vbcast.lane.b32.xlu0 %v4476, 256
    %v4479 = vpop.permute.xlu0 %4478
    %v4480 = vlaneseq
    %v4481 = vshrl.u32 %v4480, 7
    %v4482 = vsub.s32 7, %v4481
    %v4483 = vrot.slane %v4430, %v4482
    %4485 = vbcast.lane.b32.xlu0 %v4483, 256
    %v4486 = vpop.permute.xlu0 %4485
    %v4487 = vmul.f32 %v4437, %v40
    %v4488 = vmul.f32 %v4444, %v41
    %v4489 = vmul.f32 %v4451, %v42
    %v4490 = vmul.f32 %v4458, %v43
    %v4491 = vmul.f32 %v4465, %v44
    %v4492 = vmul.f32 %v4472, %v45
    %v4493 = vmul.f32 %v4479, %v46
    %v4494 = vmul.f32 %v4486, %v47
    %v4495 = vsel %vm306, %v4487, 0.0
    %v4496 = vrot.slane %v4495, 4
    %v4497 = vadd.f32 %v4495, %v4496
    %v4498 = vrot.slane %v4497, 2
    %v4499 = vadd.f32 %v4497, %v4498
    %v4500 = vrot.slane %v4499, 1
    %v4501 = vadd.f32 %v4499, %v4500
    %v4502 = vsel %vm306, %v4488, 0.0
    %v4503 = vrot.slane %v4502, 4
    %v4504 = vadd.f32 %v4502, %v4503
    %v4505 = vrot.slane %v4504, 2
    %v4506 = vadd.f32 %v4504, %v4505
    %v4507 = vrot.slane %v4506, 1
    %v4508 = vadd.f32 %v4506, %v4507
    %v4509 = vsel %vm306, %v4489, 0.0
    %v4510 = vrot.slane %v4509, 4
    %v4511 = vadd.f32 %v4509, %v4510
    %v4512 = vrot.slane %v4511, 2
    %v4513 = vadd.f32 %v4511, %v4512
    %v4514 = vrot.slane %v4513, 1
    %v4515 = vadd.f32 %v4513, %v4514
    %v4516 = vsel %vm306, %v4490, 0.0
    %v4517 = vrot.slane %v4516, 4
    %v4518 = vadd.f32 %v4516, %v4517
    %v4519 = vrot.slane %v4518, 2
    %v4520 = vadd.f32 %v4518, %v4519
    %v4521 = vrot.slane %v4520, 1
    %v4522 = vadd.f32 %v4520, %v4521
    %v4523 = vsel %vm306, %v4491, 0.0
    %v4524 = vrot.slane %v4523, 4
    %v4525 = vadd.f32 %v4523, %v4524
    %v4526 = vrot.slane %v4525, 2
    %v4527 = vadd.f32 %v4525, %v4526
    %v4528 = vrot.slane %v4527, 1
    %v4529 = vadd.f32 %v4527, %v4528
    %v4530 = vsel %vm306, %v4492, 0.0
    %v4531 = vrot.slane %v4530, 4
    %v4532 = vadd.f32 %v4530, %v4531
    %v4533 = vrot.slane %v4532, 2
    %v4534 = vadd.f32 %v4532, %v4533
    %v4535 = vrot.slane %v4534, 1
    %v4536 = vadd.f32 %v4534, %v4535
    %v4537 = vsel %vm306, %v4493, 0.0
    %v4538 = vrot.slane %v4537, 4
    %v4539 = vadd.f32 %v4537, %v4538
    %v4540 = vrot.slane %v4539, 2
    %v4541 = vadd.f32 %v4539, %v4540
    %v4542 = vrot.slane %v4541, 1
    %v4543 = vadd.f32 %v4541, %v4542
    %v4544 = vsel %vm306, %v4494, 0.0
    %v4545 = vrot.slane %v4544, 4
    %v4546 = vadd.f32 %v4544, %v4545
    %v4547 = vrot.slane %v4546, 2
    %v4548 = vadd.f32 %v4546, %v4547
    %v4549 = vrot.slane %v4548, 1
    %v4550 = vadd.f32 %v4548, %v4549
    %s4551 = scalar_lea.vmem %s2, 56
    %v4552 = vld [vmem:[%s4551] sm:$0xff]
    %4553 = vmatprep.subr.mxu0 0.0
    %4554 = vmatpush1.msra.mxu0 %v168
    %4555 = vmatprep.subr.mxu0 0.0
    %4556 = vmatpush1.msra.mxu0 %v169
    %4557 = vmatprep.subr.mxu0 0.0
    %4558 = vmatpush1.msra.mxu0 %v170
    %4559 = vmatprep.subr.mxu0 0.0
    %4560 = vmatpush1.msra.mxu0 %v171
    %4561 = vmatprep.subr.mxu0 0.0
    %4562 = vmatpush1.msra.mxu0 0.0
    %4563 = vmatprep.subr.mxu0 0.0
    %4564 = vmatpush1.msra.mxu0 0.0
    %4565 = vmatprep.subr.mxu0 0.0
    %4566 = vmatpush1.msra.mxu0 0.0
    %4567 = vmatprep.subr.mxu0 0.0
    %4568 = vmatpush1.msra.mxu0 0.0
    %4569 = vmatprep.subr.mxu0 0.0
    %4570 = vmatpush1.msra.mxu0 0.0
    %4571 = vmatprep.subr.mxu0 0.0
    %4572 = vmatpush1.msra.mxu0 0.0
    %4573 = vmatprep.subr.mxu0 0.0
    %4574 = vmatpush1.msra.mxu0 0.0
    %4575 = vmatprep.subr.mxu0 0.0
    %4576 = vmatpush1.msra.mxu0 0.0
    %4577 = vmatprep.subr.mxu0 0.0
    %4578 = vmatpush1.msra.mxu0 0.0
    %4579 = vmatprep.subr.mxu0 0.0
    %4580 = vmatpush1.msra.mxu0 0.0
    %4581 = vmatprep.subr.mxu0 0.0
    %4582 = vmatpush1.msra.mxu0 0.0
    %4583 = vmatprep.subr.mxu0 0.0
    %4584 = vmatpush1.msra.mxu0 0.0
    %4585 = vmatprep.subr.mxu0 0.0
    %4586 = vmatpush1.msra.mxu0 0.0
    %4587 = vmatprep.subr.mxu0 0.0
    %4588 = vmatpush1.msra.mxu0 0.0
    %4589 = vmatprep.subr.mxu0 0.0
    %4590 = vmatpush1.msra.mxu0 0.0
    %4591 = vmatprep.subr.mxu0 0.0
    %4592 = vmatpush1.msra.mxu0 0.0
    %4593 = vmatprep.subr.mxu0 0.0
    %4594 = vmatpush1.msra.mxu0 0.0
    %4595 = vmatprep.subr.mxu0 0.0
    %4596 = vmatpush1.msra.mxu0 0.0
    %4597 = vmatprep.subr.mxu0 0.0
    %4598 = vmatpush1.msra.mxu0 0.0
    %4599 = vmatprep.subr.mxu0 0.0
    %4600 = vmatpush1.msra.mxu0 0.0
    %4601 = vmatprep.subr.mxu0 0.0
    %4602 = vmatpush1.msra.mxu0 0.0
    %4603 = vmatprep.subr.mxu0 0.0
    %4604 = vmatpush1.msra.mxu0 0.0
    %4605 = vmatprep.subr.mxu0 0.0
    %4606 = vmatpush1.msra.mxu0 0.0
    %4607 = vmatprep.subr.mxu0 0.0
    %4608 = vmatpush1.msra.mxu0 0.0
    %4609 = vmatprep.subr.mxu0 0.0
    %4610 = vmatpush1.msra.mxu0 0.0
    %4611 = vmatprep.subr.mxu0 0.0
    %4612 = vmatpush1.msra.mxu0 0.0
    %4613 = vmatprep.subr.mxu0 0.0
    %4614 = vmatpush1.msra.mxu0 0.0
    %4615 = vmatprep.subr.mxu0 0.0
    %4616 = vmatpush1.msra.mxu0 0.0
    %4617 = vmatprep.mubr.f32.mxu0 0.0
    %4618 = vmatmul.mubr.f32.gmra.mrb[0].mxu0 %v4273
    %v4619 = vpop.f32.mrb[0].mxu0
    %v4620 = vadd.f32 0.0, %v4619
    %v4621 = vpop.f32.mrb[0].mxu0
    %4622 = vdwg.mxu0
    %v4631 = vsel %vm773, %v4508, %v4501
    %v4632 = vsel %vm775, %v4515, %v4631
    %v4633 = vsel %vm777, %v4522, %v4632
    %v4634 = vsel %vm779, %v4529, %v4633
    %v4635 = vsel %vm781, %v4536, %v4634
    %v4636 = vsel %vm783, %v4543, %v4635
    %v4637 = vsel %vm785, %v4550, %v4636
    %v4638 = vsel %vm306, %v4637, 0
    %4640 = vmatprep.subr.mxu0 0.0
    %4641 = vmatpush1.msra.mxu0 %v172
    %4642 = vmatprep.subr.mxu0 0.0
    %4643 = vmatpush1.msra.mxu0 %v173
    %4644 = vmatprep.subr.mxu0 0.0
    %4645 = vmatpush1.msra.mxu0 %v174
    %4646 = vmatprep.subr.mxu0 0.0
    %4647 = vmatpush1.msra.mxu0 %v175
    %4648 = vmatprep.subr.mxu0 0.0
    %4649 = vmatpush1.msra.mxu0 0.0
    %4650 = vmatprep.subr.mxu0 0.0
    %4651 = vmatpush1.msra.mxu0 0.0
    %4652 = vmatprep.subr.mxu0 0.0
    %4653 = vmatpush1.msra.mxu0 0.0
    %4654 = vmatprep.subr.mxu0 0.0
    %4655 = vmatpush1.msra.mxu0 0.0
    %4656 = vmatprep.subr.mxu0 0.0
    %4657 = vmatpush1.msra.mxu0 0.0
    %4658 = vmatprep.subr.mxu0 0.0
    %4659 = vmatpush1.msra.mxu0 0.0
    %4660 = vmatprep.subr.mxu0 0.0
    %4661 = vmatpush1.msra.mxu0 0.0
    %4662 = vmatprep.subr.mxu0 0.0
    %4663 = vmatpush1.msra.mxu0 0.0
    %4664 = vmatprep.subr.mxu0 0.0
    %4665 = vmatpush1.msra.mxu0 0.0
    %4666 = vmatprep.subr.mxu0 0.0
    %4667 = vmatpush1.msra.mxu0 0.0
    %4668 = vmatprep.subr.mxu0 0.0
    %4669 = vmatpush1.msra.mxu0 0.0
    %4670 = vmatprep.subr.mxu0 0.0
    %4671 = vmatpush1.msra.mxu0 0.0
    %4672 = vmatprep.subr.mxu0 0.0
    %4673 = vmatpush1.msra.mxu0 0.0
    %4674 = vmatprep.subr.mxu0 0.0
    %4675 = vmatpush1.msra.mxu0 0.0
    %4676 = vmatprep.subr.mxu0 0.0
    %4677 = vmatpush1.msra.mxu0 0.0
    %4678 = vmatprep.subr.mxu0 0.0
    %4679 = vmatpush1.msra.mxu0 0.0
    %4680 = vmatprep.subr.mxu0 0.0
    %4681 = vmatpush1.msra.mxu0 0.0
    %4682 = vmatprep.subr.mxu0 0.0
    %4683 = vmatpush1.msra.mxu0 0.0
    %4684 = vmatprep.subr.mxu0 0.0
    %4685 = vmatpush1.msra.mxu0 0.0
    %4686 = vmatprep.subr.mxu0 0.0
    %4687 = vmatpush1.msra.mxu0 0.0
    %4688 = vmatprep.subr.mxu0 0.0
    %4689 = vmatpush1.msra.mxu0 0.0
    %4690 = vmatprep.subr.mxu0 0.0
    %4691 = vmatpush1.msra.mxu0 0.0
    %4692 = vmatprep.subr.mxu0 0.0
    %4693 = vmatpush1.msra.mxu0 0.0
    %4694 = vmatprep.subr.mxu0 0.0
    %4695 = vmatpush1.msra.mxu0 0.0
    %4696 = vmatprep.subr.mxu0 0.0
    %4697 = vmatpush1.msra.mxu0 0.0
    %4698 = vmatprep.subr.mxu0 0.0
    %4699 = vmatpush1.msra.mxu0 0.0
    %4700 = vmatprep.subr.mxu0 0.0
    %4701 = vmatpush1.msra.mxu0 0.0
    %4702 = vmatprep.subr.mxu0 0.0
    %4703 = vmatpush1.msra.mxu0 0.0
    %4704 = vmatprep.mubr.f32.mxu0 0.0
    %4705 = vmatmul.mubr.f32.gmra.mrb[0].mxu0 %v4638
    %v4706 = vpop.f32.mrb[0].mxu0
    %v4707 = vadd.f32 %v4620, %v4706
    %v4708 = vpop.f32.mrb[0].mxu0
    %4709 = vdwg.mxu0
    %4711 = vset.pattern.permute.xlu0 0
    %4712 = vperm.xlu0 %4711, %v4552
    %v4713 = vpop.permute.xlu0 %4712
    %v4715 = vmul.f32 %v4713, %v867
    %v4716 = vadd.f32 %v4707, %v4715
    %v4717 = vadd.f32 %v4716, %v873
    %v4718 = vxor.u32 %v4717, 2147483648
    %v4719 = vmul.f32 %v4718, 1.442695
    %v4720 = vpow.pop %v4719
    %v4721 = vadd.f32 %v4720, 1.0
    %v4722 = vrcp.pop %v4721
    %v4723 = vmul.f32 1.0, %v4722
    %v4724 = vmul.f32 %v4723, 2.0
    %v4725 = vsub.f32 %v4724, 1.0
    %v4726 = vmul.f32 %v4723, %v4187
    %4728 = vrot.lane.b32.xlu0 %v4725, 64
    %v4729 = vpop.permute.xlu0 %4728
    %v4731 = vmul.f32 %v4723, %v4729
    %4733 = vrot.lane.b32.xlu0 %v4731, 32
    %v4734 = vpop.permute.xlu0 %4733
    %v4736 = vadd.f32 %v4726, %v4734
    %v4737 = vtanh.pop %v4736
    %4739 = vrot.lane.b32.xlu0 %v4737, 64
    %v4740 = vpop.permute.xlu0 %4739
    %v4742 = vmul.f32 %v4723, %v4740
    %4743 = vmatprep.subr.mxu0 0.0
    %4744 = vmatpush1.msra.mxu0 %v182
    %4745 = vmatprep.subr.mxu0 0.0
    %4746 = vmatpush1.msra.mxu0 %v183
    %4747 = vmatprep.subr.mxu0 0.0
    %4748 = vmatpush1.msra.mxu0 %v184
    %4749 = vmatprep.subr.mxu0 0.0
    %4750 = vmatpush1.msra.mxu0 %v185
    %4751 = vmatprep.subr.mxu0 0.0
    %4752 = vmatpush1.msra.mxu0 0.0
    %4753 = vmatprep.subr.mxu0 0.0
    %4754 = vmatpush1.msra.mxu0 0.0
    %4755 = vmatprep.subr.mxu0 0.0
    %4756 = vmatpush1.msra.mxu0 0.0
    %4757 = vmatprep.subr.mxu0 0.0
    %4758 = vmatpush1.msra.mxu0 0.0
    %4759 = vmatprep.subr.mxu0 0.0
    %4760 = vmatpush1.msra.mxu0 0.0
    %4761 = vmatprep.subr.mxu0 0.0
    %4762 = vmatpush1.msra.mxu0 0.0
    %4763 = vmatprep.subr.mxu0 0.0
    %4764 = vmatpush1.msra.mxu0 0.0
    %4765 = vmatprep.subr.mxu0 0.0
    %4766 = vmatpush1.msra.mxu0 0.0
    %4767 = vmatprep.subr.mxu0 0.0
    %4768 = vmatpush1.msra.mxu0 0.0
    %4769 = vmatprep.subr.mxu0 0.0
    %4770 = vmatpush1.msra.mxu0 0.0
    %4771 = vmatprep.subr.mxu0 0.0
    %4772 = vmatpush1.msra.mxu0 0.0
    %4773 = vmatprep.subr.mxu0 0.0
    %4774 = vmatpush1.msra.mxu0 0.0
    %4775 = vmatprep.subr.mxu0 0.0
    %4776 = vmatpush1.msra.mxu0 0.0
    %4777 = vmatprep.subr.mxu0 0.0
    %4778 = vmatpush1.msra.mxu0 0.0
    %4779 = vmatprep.subr.mxu0 0.0
    %4780 = vmatpush1.msra.mxu0 0.0
    %4781 = vmatprep.subr.mxu0 0.0
    %4782 = vmatpush1.msra.mxu0 0.0
    %4783 = vmatprep.subr.mxu0 0.0
    %4784 = vmatpush1.msra.mxu0 0.0
    %4785 = vmatprep.subr.mxu0 0.0
    %4786 = vmatpush1.msra.mxu0 0.0
    %4787 = vmatprep.subr.mxu0 0.0
    %4788 = vmatpush1.msra.mxu0 0.0
    %4789 = vmatprep.subr.mxu0 0.0
    %4790 = vmatpush1.msra.mxu0 0.0
    %4791 = vmatprep.subr.mxu0 0.0
    %4792 = vmatpush1.msra.mxu0 0.0
    %4793 = vmatprep.subr.mxu0 0.0
    %4794 = vmatpush1.msra.mxu0 0.0
    %4795 = vmatprep.subr.mxu0 0.0
    %4796 = vmatpush1.msra.mxu0 0.0
    %4797 = vmatprep.subr.mxu0 0.0
    %4798 = vmatpush1.msra.mxu0 0.0
    %4799 = vmatprep.subr.mxu0 0.0
    %4800 = vmatpush1.msra.mxu0 0.0
    %4801 = vmatprep.subr.mxu0 0.0
    %4802 = vmatpush1.msra.mxu0 0.0
    %4803 = vmatprep.subr.mxu0 0.0
    %4804 = vmatpush1.msra.mxu0 0.0
    %4805 = vmatprep.subr.mxu0 0.0
    %4806 = vmatpush1.msra.mxu0 0.0
    %4807 = vmatprep.mubr.f32.mxu0 0.0
    %4808 = vmatmul.mubr.f32.gmra.mrb[0].mxu0 %v4638
    %v4809 = vpop.f32.mrb[0].mxu0
    %v4810 = vadd.f32 0.0, %v4809
    %v4811 = vpop.f32.mrb[0].mxu0
    %4812 = vdwg.mxu0
    %4814 = vrot.lane.b32.xlu0 %v4742, 32
    %v4815 = vpop.permute.xlu0 %4814
    %v4816 = vsel %vm306, %v4815, 0
    %4818 = vmatprep.subr.mxu0 0.0
    %4819 = vmatpush1.msra.mxu0 %v178
    %4820 = vmatprep.subr.mxu0 0.0
    %4821 = vmatpush1.msra.mxu0 %v179
    %4822 = vmatprep.subr.mxu0 0.0
    %4823 = vmatpush1.msra.mxu0 %v180
    %4824 = vmatprep.subr.mxu0 0.0
    %4825 = vmatpush1.msra.mxu0 %v181
    %4826 = vmatprep.subr.mxu0 0.0
    %4827 = vmatpush1.msra.mxu0 0.0
    %4828 = vmatprep.subr.mxu0 0.0
    %4829 = vmatpush1.msra.mxu0 0.0
    %4830 = vmatprep.subr.mxu0 0.0
    %4831 = vmatpush1.msra.mxu0 0.0
    %4832 = vmatprep.subr.mxu0 0.0
    %4833 = vmatpush1.msra.mxu0 0.0
    %4834 = vmatprep.subr.mxu0 0.0
    %4835 = vmatpush1.msra.mxu0 0.0
    %4836 = vmatprep.subr.mxu0 0.0
    %4837 = vmatpush1.msra.mxu0 0.0
    %4838 = vmatprep.subr.mxu0 0.0
    %4839 = vmatpush1.msra.mxu0 0.0
    %4840 = vmatprep.subr.mxu0 0.0
    %4841 = vmatpush1.msra.mxu0 0.0
    %4842 = vmatprep.subr.mxu0 0.0
    %4843 = vmatpush1.msra.mxu0 0.0
    %4844 = vmatprep.subr.mxu0 0.0
    %4845 = vmatpush1.msra.mxu0 0.0
    %4846 = vmatprep.subr.mxu0 0.0
    %4847 = vmatpush1.msra.mxu0 0.0
    %4848 = vmatprep.subr.mxu0 0.0
    %4849 = vmatpush1.msra.mxu0 0.0
    %4850 = vmatprep.subr.mxu0 0.0
    %4851 = vmatpush1.msra.mxu0 0.0
    %4852 = vmatprep.subr.mxu0 0.0
    %4853 = vmatpush1.msra.mxu0 0.0
    %4854 = vmatprep.subr.mxu0 0.0
    %4855 = vmatpush1.msra.mxu0 0.0
    %4856 = vmatprep.subr.mxu0 0.0
    %4857 = vmatpush1.msra.mxu0 0.0
    %4858 = vmatprep.subr.mxu0 0.0
    %4859 = vmatpush1.msra.mxu0 0.0
    %4860 = vmatprep.subr.mxu0 0.0
    %4861 = vmatpush1.msra.mxu0 0.0
    %4862 = vmatprep.subr.mxu0 0.0
    %4863 = vmatpush1.msra.mxu0 0.0
    %4864 = vmatprep.subr.mxu0 0.0
    %4865 = vmatpush1.msra.mxu0 0.0
    %4866 = vmatprep.subr.mxu0 0.0
    %4867 = vmatpush1.msra.mxu0 0.0
    %4868 = vmatprep.subr.mxu0 0.0
    %4869 = vmatpush1.msra.mxu0 0.0
    %4870 = vmatprep.subr.mxu0 0.0
    %4871 = vmatpush1.msra.mxu0 0.0
    %4872 = vmatprep.subr.mxu0 0.0
    %4873 = vmatpush1.msra.mxu0 0.0
    %4874 = vmatprep.subr.mxu0 0.0
    %4875 = vmatpush1.msra.mxu0 0.0
    %4876 = vmatprep.subr.mxu0 0.0
    %4877 = vmatpush1.msra.mxu0 0.0
    %4878 = vmatprep.subr.mxu0 0.0
    %4879 = vmatpush1.msra.mxu0 0.0
    %4880 = vmatprep.subr.mxu0 0.0
    %4881 = vmatpush1.msra.mxu0 0.0
    %4882 = vmatprep.mubr.f32.mxu0 0.0
    %4883 = vmatmul.mubr.f32.gmra.mrb[0].mxu0 %v4816
    %v4884 = vpop.f32.mrb[0].mxu0
    %v4885 = vadd.f32 %v4810, %v4884
    %v4886 = vpop.f32.mrb[0].mxu0
    %4887 = vdwg.mxu0
    %v4888 = vlaneseq
    %v4889 = vshrl.u32 %v4888, 7
    %v4890 = vsub.s32 0, %v4889
    %v4891 = vrot.slane %v186, %v4890
    %v4892 = vadd.f32 %v4885, %v4891
    %vm4893 = vcmask 31744
    %4894 = vst.msk [vmem:[%s7] sm:$0xff] %vm4893, %v4892
    // Predicated region
    $region34: #{tpu_custom_call.1} parent=1 // pred_check
      _
    $region35: #{tpu_custom_call.1} parent=1 // pred_check_branch
      %4896 = sbr.rel (0) target = $region37
    $region36: #{tpu_custom_call.1} parent=1 // pred_region
      _
    $region37: #{tpu_custom_call.1} parent=1 // pred_fallthru
      _
    // Predicated region
    $region38: #{tpu_custom_call.1} parent=1 // pred_check
      _
    $region39: #{tpu_custom_call.1} parent=1 // pred_check_branch
      %4898 = sbr.rel (0) target = $region41
    $region40: #{tpu_custom_call.1} parent=1 // pred_region
      _
    $region41: #{tpu_custom_call.1} parent=1 // pred_fallthru
      _
    %4899 = vsyncpa [#allocation3], 1

</llo_original>
